<compile_context>
chip_gen: v5e
topology: v5e:2x2
jax: 0.10.0
libtpu: 0.0.40
codegen_flags: <defaults>
</compile_context>

<pallas_src>
import functools

import jax
import jax.numpy as jnp
from jax.experimental import pallas as pl
from jax.experimental.pallas import tpu as pltpu


def _aspp_kernel(x_ref, w1_ref, b1_ref, w2_ref, b2_ref, w3_ref, b3_ref,
                 w4_ref, b4_ref, w5_ref, b5_ref, out_ref, pad_ref, acc_ref,
                 *, H, W, C, O, R, TH, HALO, rates):
    """One (batch element, row tile) of ASPP.

    x_ref   : (H + 2R, W, C)  compute dtype, zero padded along H only
    w*_ref  : 1x1 weights (C, O), 3x3 weights (3, 3, C, O), biases (1, O) f32
    out_ref : (TH, W, 5*O) f32 rows of this tile
    pad_ref : (TH, W + 2*HALO, C) scratch strip with zeroed W halo
    acc_ref : (TH*W, O) f32 accumulator for one dilated branch
    """
    f32 = jnp.float32
    t = pl.program_id(1)
    row0 = pl.multiple_of(t * TH, TH)          # first output row of this tile

    # Zero the W-halo columns once; the centre is rewritten per row strip.
    if any(r < W for r in rates):
        pad_ref[:, 0:HALO, :] = jnp.zeros((TH, HALO, C), pad_ref.dtype)
        pad_ref[:, HALO + W:, :] = jnp.zeros((TH, HALO, C), pad_ref.dtype)

    # ---- branch 0: 1x1 conv == per-pixel channel matmul --------------------
    centre = x_ref[pl.ds(row0 + R, TH), :, :]                  # (TH, W, C)
    y1 = jnp.dot(centre.reshape(TH * W, C), w1_ref[...],
                 preferred_element_type=f32) + b1_ref[...]
    out_ref[:, :, 0:O] = y1.reshape(TH, W, O).astype(out_ref.dtype)

    # ---- branches 1-3: dilated 3x3 convs, 9 shifted-tap matmuls each -------
    for k, (w_ref, b_ref, rate) in enumerate(
            ((w2_ref, b2_ref, rates[0]),
             (w3_ref, b3_ref, rates[1]),
             (w4_ref, b4_ref, rates[2]))):
        # accumulator starts at the bias (broadcast hoisted out of the taps)
        acc_ref[...] = jnp.broadcast_to(b_ref[...], (TH * W, O)).astype(f32)
        for ky in range(3):
            dy = (ky - 1) * rate
            if dy <= -H or dy >= H:            # whole tap row lies in zero pad
                continue
            # Full-width row strip; always in range thanks to the H halo.
            strip = x_ref[pl.ds(row0 + R + dy, TH), :, :]      # (TH, W, C)
            if rate < W:                        # shifted taps will be needed
                pad_ref[:, HALO:HALO + W, :] = strip
            for kx in range(3):
                dx = (kx - 1) * rate
                if dx <= -W or dx >= W:        # tap column entirely OOB -> 0
                    continue
                if dx == 0:
                    tap = strip
                else:
                    tap = pad_ref[:, HALO + dx:HALO + dx + W, :]
                acc_ref[...] += jnp.dot(tap.reshape(TH * W, C), w_ref[ky, kx],
                                        preferred_element_type=f32)
        out_ref[:, :, (k + 1) * O:(k + 2) * O] = (
            acc_ref[...].reshape(TH, W, O).astype(out_ref.dtype))

    # ---- branch 4: global avg pool -> 1x1 conv -> broadcast ----------------
    # (recomputed per row tile; it is a cheap reduction on the resident slab)
    img = x_ref[R:R + H, :, :].astype(f32)                      # unpadded image
    xm = jnp.sum(jnp.sum(img, axis=0), axis=0, keepdims=True) * (1.0 / (H * W))
    xm = xm.astype(x_ref.dtype)                                 # (1, C)
    y5 = jnp.dot(xm, w5_ref[...], preferred_element_type=f32) + b5_ref[...]
    out_ref[:, :, 4 * O:5 * O] = jnp.broadcast_to(
        y5.reshape(1, 1, O), (TH, W, O)).astype(out_ref.dtype)


def aspp_pallas(x_nchw, params, rates=(6, 12, 18), *, tile_h=None,
                compute_dtype=jnp.bfloat16):
    """ASPP forward.  x_nchw: (N, C, H, W) f32 -> (N, 5*O, H, W) f32."""
    w1, b1, w2, b2, w3, b3, w4, b4, w5, b5 = params
    N, C, H, W = x_nchw.shape
    O = w1.shape[1]
    R = max(rates)
    HALO = ((R + 7) // 8) * 8                   # W-halo width of the scratch

    if tile_h is None:
        tile_h = 8 if H % 8 == 0 else H         # output rows per grid step
    assert H % tile_h == 0, "tile_h must divide H"
    Hp = H + 2 * R

    # NCHW -> NHWC (channels on lanes), cast matmul operands, pad H only.
    x_nhwc = jnp.transpose(x_nchw, (0, 2, 3, 1)).astype(compute_dtype)
    xp = jnp.pad(x_nhwc, ((0, 0), (R, R), (0, 0), (0, 0)))
    w1c, w2c, w3c, w4c, w5c = (w.astype(compute_dtype)
                               for w in (w1, w2, w3, w4, w5))

    kernel = functools.partial(_aspp_kernel, H=H, W=W, C=C, O=O, R=R,
                               TH=tile_h, HALO=HALO, rates=tuple(rates))

    cmap2 = lambda n, t: (0, 0)
    cmap4 = lambda n, t: (0, 0, 0, 0)
    in_specs = [
        # per-image, H-padded input slab; resident across the row-tile axis
        pl.BlockSpec((None, Hp, W, C), lambda n, t: (n, 0, 0, 0)),
        pl.BlockSpec((C, O), cmap2), pl.BlockSpec((1, O), cmap2),        # 1x1
        pl.BlockSpec((3, 3, C, O), cmap4), pl.BlockSpec((1, O), cmap2),  # r=6
        pl.BlockSpec((3, 3, C, O), cmap4), pl.BlockSpec((1, O), cmap2),  # r=12
        pl.BlockSpec((3, 3, C, O), cmap4), pl.BlockSpec((1, O), cmap2),  # r=18
        pl.BlockSpec((C, O), cmap2), pl.BlockSpec((1, O), cmap2),        # pool
    ]
    out_specs = pl.BlockSpec((None, tile_h, W, 5 * O), lambda n, t: (n, t, 0, 0))

    out_nhwc = pl.pallas_call(
        kernel,
        out_shape=jax.ShapeDtypeStruct((N, H, W, 5 * O), jnp.float32),
        grid=(N, H // tile_h),
        in_specs=in_specs,
        out_specs=out_specs,
        scratch_shapes=[
            pltpu.VMEM((tile_h, W + 2 * HALO, C), compute_dtype),  # W-halo strip
            pltpu.VMEM((tile_h * W, O), jnp.float32),              # branch acc
        ],
        compiler_params=pltpu.CompilerParams(
            dimension_semantics=("parallel", "parallel")),
    )(xp, w1c, b1, w2c, b2, w3c, b3, w4c, b4, w5c, b5)

    return jnp.transpose(out_nhwc, (0, 3, 1, 2))                  # back to NCHW


def aspp_reference(x_nchw, params, rates=(6, 12, 18)):
    """Pure-JAX f32 reference (lax convolutions), same parameter layout."""
    w1, b1, w2, b2, w3, b3, w4, b4, w5, b5 = params
    N, C, H, W = x_nchw.shape
    O = w1.shape[1]

    def conv(inp, w_hwio, b, rate, pad):
        dn = jax.lax.conv_dimension_numbers(inp.shape, w_hwio.shape,
                                            ('NCHW', 'HWIO', 'NCHW'))
        y = jax.lax.conv_general_dilated(
            inp, w_hwio, window_strides=(1, 1),
            padding=[(pad, pad), (pad, pad)],
            rhs_dilation=(rate, rate), dimension_numbers=dn)
        return y + b.reshape(1, -1, 1, 1)

    y1 = conv(x_nchw, w1.reshape(1, 1, C, O), b1, 1, 0)
    y2 = conv(x_nchw, w2, b2, rates[0], rates[0])
    y3 = conv(x_nchw, w3, b3, rates[1], rates[1])
    y4 = conv(x_nchw, w4, b4, rates[2], rates[2])

    xm = jnp.mean(x_nchw, axis=(2, 3))                                # (N, C)
    y5 = xm @ w5 + b5.reshape(1, -1)                                  # (N, O)
    y5 = jnp.broadcast_to(y5[:, :, None, None], (N, O, H, W))

    return jnp.concatenate([y1, y2, y3, y4, y5], axis=1)


def make_params(key, in_channels, out_channels):
    """Deterministic synthetic weights.
    1x1 convs: (C, O).  3x3 convs: (3, 3, C, O) (HWIO).  Biases: (1, O)."""
    ks = jax.random.split(key, 10)
    C, O = in_channels, out_channels
    w1 = jax.random.normal(ks[0], (C, O), jnp.float32) * 0.1
    b1 = jax.random.normal(ks[1], (1, O), jnp.float32) * 0.1
    w2 = jax.random.normal(ks[2], (3, 3, C, O), jnp.float32) * 0.1
    b2 = jax.random.normal(ks[3], (1, O), jnp.float32) * 0.1
    w3 = jax.random.normal(ks[4], (3, 3, C, O), jnp.float32) * 0.1
    b3 = jax.random.normal(ks[5], (1, O), jnp.float32) * 0.1
    w4 = jax.random.normal(ks[6], (3, 3, C, O), jnp.float32) * 0.1
    b4 = jax.random.normal(ks[7], (1, O), jnp.float32) * 0.1
    w5 = jax.random.normal(ks[8], (C, O), jnp.float32) * 0.1
    b5 = jax.random.normal(ks[9], (1, O), jnp.float32) * 0.1
    return (w1, b1, w2, b2, w3, b3, w4, b4, w5, b5)


if __name__ == "__main__":
    key = jax.random.PRNGKey(0)
    k_x, k_p = jax.random.split(key)

    N, C, H, W = 2, 4, 16, 16
    O = 32
    rates = (6, 12, 18)

    x = jax.random.normal(k_x, (N, C, H, W), jnp.float32)
    params = make_params(k_p, C, O)

    out = jax.block_until_ready(aspp_pallas(x, params, rates))
    ref = jax.block_until_ready(aspp_reference(x, params, rates))

    assert out.shape == (N, 5 * O, H, W), out.shape
    max_err = float(jnp.max(jnp.abs(out - ref)))
    # bf16 matmul operands with f32 accumulation vs. an f32 reference.
    assert jnp.allclose(out, ref, atol=5e-2, rtol=5e-2), max_err

    print("KERNEL_OK")
</pallas_src>

<mosaic_0001>
module attributes {stable_mosaic.version = 11 : i64} {
  func.func @_aspp_kernel(%arg0: i32, %arg1: i32, %arg2: memref<1x52x16x4xbf16, #tpu.memory_space<vmem>>, %arg3: memref<4x32xbf16, #tpu.memory_space<vmem>>, %arg4: memref<1x32xf32, #tpu.memory_space<vmem>>, %arg5: memref<3x3x4x32xbf16, #tpu.memory_space<vmem>>, %arg6: memref<1x32xf32, #tpu.memory_space<vmem>>, %arg7: memref<3x3x4x32xbf16, #tpu.memory_space<vmem>>, %arg8: memref<1x32xf32, #tpu.memory_space<vmem>>, %arg9: memref<3x3x4x32xbf16, #tpu.memory_space<vmem>>, %arg10: memref<1x32xf32, #tpu.memory_space<vmem>>, %arg11: memref<4x32xbf16, #tpu.memory_space<vmem>>, %arg12: memref<1x32xf32, #tpu.memory_space<vmem>>, %arg13: memref<1x8x16x160xf32, #tpu.memory_space<vmem>>, %arg14: memref<8x64x4xbf16, #tpu.memory_space<vmem>>, %arg15: memref<128x32xf32, #tpu.memory_space<vmem>>) attributes {dimension_semantics = [#tpu.dimension_semantics<parallel>, #tpu.dimension_semantics<parallel>], iteration_bounds = array<i64: 2, 2>, scalar_prefetch = 0 : i64, scratch_operands = 2 : i64, tpu.core_type = #tpu.core_type<tc>, window_params = [{transform_indices = @transform_0, window_bounds = array<i64: 1, 52, 16, 4>}, {pipeline_mode = #tpu.pipeline_mode<synchronous>, transform_indices = @transform_1, window_bounds = array<i64: 4, 32>}, {pipeline_mode = #tpu.pipeline_mode<synchronous>, transform_indices = @transform_2, window_bounds = array<i64: 1, 32>}, {pipeline_mode = #tpu.pipeline_mode<synchronous>, transform_indices = @transform_3, window_bounds = array<i64: 3, 3, 4, 32>}, {pipeline_mode = #tpu.pipeline_mode<synchronous>, transform_indices = @transform_4, window_bounds = array<i64: 1, 32>}, {pipeline_mode = #tpu.pipeline_mode<synchronous>, transform_indices = @transform_5, window_bounds = array<i64: 3, 3, 4, 32>}, {pipeline_mode = #tpu.pipeline_mode<synchronous>, transform_indices = @transform_6, window_bounds = array<i64: 1, 32>}, {pipeline_mode = #tpu.pipeline_mode<synchronous>, transform_indices = @transform_7, window_bounds = array<i64: 3, 3, 4, 32>}, {pipeline_mode = #tpu.pipeline_mode<synchronous>, transform_indices = @transform_8, window_bounds = array<i64: 1, 32>}, {pipeline_mode = #tpu.pipeline_mode<synchronous>, transform_indices = @transform_9, window_bounds = array<i64: 4, 32>}, {pipeline_mode = #tpu.pipeline_mode<synchronous>, transform_indices = @transform_10, window_bounds = array<i64: 1, 32>}, {transform_indices = @transform_11, window_bounds = array<i64: 1, 8, 16, 160>}]} {
    %c8_i32 = arith.constant 8 : i32
    %0 = arith.muli %arg1, %c8_i32 : i32
    %1 = tpu.assume_multiple %0, 8 : i32
    %cst = arith.constant 0.000000e+00 : bf16
    %2 = vector.broadcast %cst : bf16 to vector<8x24x4xbf16>
    %c0 = arith.constant 0 : index
    %c0_0 = arith.constant 0 : index
    %c0_1 = arith.constant 0 : index
    %3 = vector.load %arg14[%c0, %c0_0, %c0_1] : memref<8x64x4xbf16, #tpu.memory_space<vmem>>, vector<8x24x4xbf16>
    tpu.vector_store %arg14[%c0, %c0_0, %c0_1], %2 {strides = array<i32>} : memref<8x64x4xbf16, #tpu.memory_space<vmem>>, vector<8x24x4xbf16>,
    %cst_2 = arith.constant 0.000000e+00 : bf16
    %4 = vector.broadcast %cst_2 : bf16 to vector<8x24x4xbf16>
    %c0_3 = arith.constant 0 : index
    %c40 = arith.constant 40 : index
    %c0_4 = arith.constant 0 : index
    %5 = vector.load %arg14[%c0_3, %c40, %c0_4] : memref<8x64x4xbf16, #tpu.memory_space<vmem>>, vector<8x24x4xbf16>
    tpu.vector_store %arg14[%c0_3, %c40, %c0_4], %4 {strides = array<i32>} : memref<8x64x4xbf16, #tpu.memory_space<vmem>>, vector<8x24x4xbf16>,
    %c18_i32 = arith.constant 18 : i32
    %6 = arith.addi %1, %c18_i32 : i32
    %c0_5 = arith.constant 0 : index
    %7 = arith.index_cast %6 : i32 to index
    %c0_6 = arith.constant 0 : index
    %c0_7 = arith.constant 0 : index
    %8 = vector.load %arg2[%c0_5, %7, %c0_6, %c0_7] : memref<1x52x16x4xbf16, #tpu.memory_space<vmem>>, vector<1x8x16x4xbf16>
    %9 = vector.shape_cast %8 : vector<1x8x16x4xbf16> to vector<8x16x4xbf16>
    %10 = vector.shape_cast %9 : vector<8x16x4xbf16> to vector<128x4xbf16>
    %c0_8 = arith.constant 0 : index
    %c0_9 = arith.constant 0 : index
    %11 = vector.load %arg3[%c0_8, %c0_9] : memref<4x32xbf16, #tpu.memory_space<vmem>>, vector<4x32xbf16>
    %cst_10 = arith.constant dense<0.000000e+00> : vector<128x32xf32>
    %12 = tpu.matmul %10, %11, %cst_10 {dimension_numbers = #tpu.dot_dimension_numbers<[1], [0], [0], [1], [0, 0, 1, 1], [], []>} : vector<128x4xbf16>, vector<4x32xbf16>, vector<128x32xf32> -> vector<128x32xf32>
    %c0_11 = arith.constant 0 : index
    %c0_12 = arith.constant 0 : index
    %13 = vector.load %arg4[%c0_11, %c0_12] : memref<1x32xf32, #tpu.memory_space<vmem>>, vector<1x32xf32>
    %14 = vector.broadcast %13 : vector<1x32xf32> to vector<128x32xf32>
    %15 = arith.addf %12, %14 : vector<128x32xf32>
    %16 = vector.shape_cast %15 : vector<128x32xf32> to vector<8x16x32xf32>
    %c0_13 = arith.constant 0 : index
    %c0_14 = arith.constant 0 : index
    %c0_15 = arith.constant 0 : index
    %c0_16 = arith.constant 0 : index
    %17 = vector.load %arg13[%c0_13, %c0_14, %c0_15, %c0_16] : memref<1x8x16x160xf32, #tpu.memory_space<vmem>>, vector<1x8x16x32xf32>
    %18 = vector.shape_cast %17 : vector<1x8x16x32xf32> to vector<8x16x32xf32>
    %19 = vector.shape_cast %16 : vector<8x16x32xf32> to vector<1x8x16x32xf32>
    tpu.vector_store %arg13[%c0_13, %c0_14, %c0_15, %c0_16], %19 {strides = array<i32>} : memref<1x8x16x160xf32, #tpu.memory_space<vmem>>, vector<1x8x16x32xf32>,
    %c0_17 = arith.constant 0 : index
    %c0_18 = arith.constant 0 : index
    %20 = vector.load %arg6[%c0_17, %c0_18] : memref<1x32xf32, #tpu.memory_space<vmem>>, vector<1x32xf32>
    %21 = vector.shape_cast %20 : vector<1x32xf32> to vector<1x32xf32>
    %22 = vector.broadcast %21 : vector<1x32xf32> to vector<128x32xf32>
    %c0_19 = arith.constant 0 : index
    %c0_20 = arith.constant 0 : index
    %23 = vector.load %arg15[%c0_19, %c0_20] : memref<128x32xf32, #tpu.memory_space<vmem>>, vector<128x32xf32>
    tpu.vector_store %arg15[%c0_19, %c0_20], %22 {strides = array<i32>} : memref<128x32xf32, #tpu.memory_space<vmem>>, vector<128x32xf32>,
    %c18_i32_21 = arith.constant 18 : i32
    %24 = arith.addi %1, %c18_i32_21 : i32
    %c-6_i32 = arith.constant -6 : i32
    %25 = arith.addi %24, %c-6_i32 : i32
    %c0_22 = arith.constant 0 : index
    %26 = arith.index_cast %25 : i32 to index
    %c0_23 = arith.constant 0 : index
    %c0_24 = arith.constant 0 : index
    %27 = vector.load %arg2[%c0_22, %26, %c0_23, %c0_24] : memref<1x52x16x4xbf16, #tpu.memory_space<vmem>>, vector<1x8x16x4xbf16>
    %28 = vector.shape_cast %27 : vector<1x8x16x4xbf16> to vector<8x16x4xbf16>
    %c0_25 = arith.constant 0 : index
    %c24 = arith.constant 24 : index
    %c0_26 = arith.constant 0 : index
    %29 = vector.load %arg14[%c0_25, %c24, %c0_26] : memref<8x64x4xbf16, #tpu.memory_space<vmem>>, vector<8x16x4xbf16>
    tpu.vector_store %arg14[%c0_25, %c24, %c0_26], %28 {strides = array<i32>} : memref<8x64x4xbf16, #tpu.memory_space<vmem>>, vector<8x16x4xbf16>,
    %c0_27 = arith.constant 0 : index
    %c18 = arith.constant 18 : index
    %c0_28 = arith.constant 0 : index
    %30 = vector.load %arg14[%c0_27, %c18, %c0_28] : memref<8x64x4xbf16, #tpu.memory_space<vmem>>, vector<8x16x4xbf16>
    %c0_29 = arith.constant 0 : index
    %c0_30 = arith.constant 0 : index
    %31 = vector.load %arg15[%c0_29, %c0_30] : memref<128x32xf32, #tpu.memory_space<vmem>>, vector<128x32xf32>
    %32 = vector.shape_cast %30 : vector<8x16x4xbf16> to vector<128x4xbf16>
    %c0_31 = arith.constant 0 : index
    %c0_32 = arith.constant 0 : index
    %c0_33 = arith.constant 0 : index
    %c0_34 = arith.constant 0 : index
    %33 = vector.load %arg5[%c0_31, %c0_32, %c0_33, %c0_34] : memref<3x3x4x32xbf16, #tpu.memory_space<vmem>>, vector<1x1x4x32xbf16>
    %34 = vector.shape_cast %33 : vector<1x1x4x32xbf16> to vector<4x32xbf16>
    %cst_35 = arith.constant dense<0.000000e+00> : vector<128x32xf32>
    %35 = tpu.matmul %32, %34, %cst_35 {dimension_numbers = #tpu.dot_dimension_numbers<[1], [0], [0], [1], [0, 0, 1, 1], [], []>} : vector<128x4xbf16>, vector<4x32xbf16>, vector<128x32xf32> -> vector<128x32xf32>
    %36 = arith.addf %31, %35 : vector<128x32xf32>
    %c0_36 = arith.constant 0 : index
    %c0_37 = arith.constant 0 : index
    %37 = vector.load %arg15[%c0_36, %c0_37] : memref<128x32xf32, #tpu.memory_space<vmem>>, vector<128x32xf32>
    tpu.vector_store %arg15[%c0_36, %c0_37], %36 {strides = array<i32>} : memref<128x32xf32, #tpu.memory_space<vmem>>, vector<128x32xf32>,
    %c0_38 = arith.constant 0 : index
    %c0_39 = arith.constant 0 : index
    %38 = vector.load %arg15[%c0_38, %c0_39] : memref<128x32xf32, #tpu.memory_space<vmem>>, vector<128x32xf32>
    %39 = vector.shape_cast %28 : vector<8x16x4xbf16> to vector<128x4xbf16>
    %c0_40 = arith.constant 0 : index
    %c1 = arith.constant 1 : index
    %c0_41 = arith.constant 0 : index
    %c0_42 = arith.constant 0 : index
    %40 = vector.load %arg5[%c0_40, %c1, %c0_41, %c0_42] : memref<3x3x4x32xbf16, #tpu.memory_space<vmem>>, vector<1x1x4x32xbf16>
    %41 = vector.shape_cast %40 : vector<1x1x4x32xbf16> to vector<4x32xbf16>
    %cst_43 = arith.constant dense<0.000000e+00> : vector<128x32xf32>
    %42 = tpu.matmul %39, %41, %cst_43 {dimension_numbers = #tpu.dot_dimension_numbers<[1], [0], [0], [1], [0, 0, 1, 1], [], []>} : vector<128x4xbf16>, vector<4x32xbf16>, vector<128x32xf32> -> vector<128x32xf32>
    %43 = arith.addf %38, %42 : vector<128x32xf32>
    %c0_44 = arith.constant 0 : index
    %c0_45 = arith.constant 0 : index
    %44 = vector.load %arg15[%c0_44, %c0_45] : memref<128x32xf32, #tpu.memory_space<vmem>>, vector<128x32xf32>
    tpu.vector_store %arg15[%c0_44, %c0_45], %43 {strides = array<i32>} : memref<128x32xf32, #tpu.memory_space<vmem>>, vector<128x32xf32>,
    %c0_46 = arith.constant 0 : index
    %c30 = arith.constant 30 : index
    %c0_47 = arith.constant 0 : index
    %45 = vector.load %arg14[%c0_46, %c30, %c0_47] : memref<8x64x4xbf16, #tpu.memory_space<vmem>>, vector<8x16x4xbf16>
    %c0_48 = arith.constant 0 : index
    %c0_49 = arith.constant 0 : index
    %46 = vector.load %arg15[%c0_48, %c0_49] : memref<128x32xf32, #tpu.memory_space<vmem>>, vector<128x32xf32>
    %47 = vector.shape_cast %45 : vector<8x16x4xbf16> to vector<128x4xbf16>
    %c0_50 = arith.constant 0 : index
    %c2 = arith.constant 2 : index
    %c0_51 = arith.constant 0 : index
    %c0_52 = arith.constant 0 : index
    %48 = vector.load %arg5[%c0_50, %c2, %c0_51, %c0_52] : memref<3x3x4x32xbf16, #tpu.memory_space<vmem>>, vector<1x1x4x32xbf16>
    %49 = vector.shape_cast %48 : vector<1x1x4x32xbf16> to vector<4x32xbf16>
    %cst_53 = arith.constant dense<0.000000e+00> : vector<128x32xf32>
    %50 = tpu.matmul %47, %49, %cst_53 {dimension_numbers = #tpu.dot_dimension_numbers<[1], [0], [0], [1], [0, 0, 1, 1], [], []>} : vector<128x4xbf16>, vector<4x32xbf16>, vector<128x32xf32> -> vector<128x32xf32>
    %51 = arith.addf %46, %50 : vector<128x32xf32>
    %c0_54 = arith.constant 0 : index
    %c0_55 = arith.constant 0 : index
    %52 = vector.load %arg15[%c0_54, %c0_55] : memref<128x32xf32, #tpu.memory_space<vmem>>, vector<128x32xf32>
    tpu.vector_store %arg15[%c0_54, %c0_55], %51 {strides = array<i32>} : memref<128x32xf32, #tpu.memory_space<vmem>>, vector<128x32xf32>,
    %c18_i32_56 = arith.constant 18 : i32
    %53 = arith.addi %1, %c18_i32_56 : i32
    %c0_i32 = arith.constant 0 : i32
    %54 = arith.addi %53, %c0_i32 : i32
    %c0_57 = arith.constant 0 : index
    %55 = arith.index_cast %54 : i32 to index
    %c0_58 = arith.constant 0 : index
    %c0_59 = arith.constant 0 : index
    %56 = vector.load %arg2[%c0_57, %55, %c0_58, %c0_59] : memref<1x52x16x4xbf16, #tpu.memory_space<vmem>>, vector<1x8x16x4xbf16>
    %57 = vector.shape_cast %56 : vector<1x8x16x4xbf16> to vector<8x16x4xbf16>
    %c0_60 = arith.constant 0 : index
    %c24_61 = arith.constant 24 : index
    %c0_62 = arith.constant 0 : index
    %58 = vector.load %arg14[%c0_60, %c24_61, %c0_62] : memref<8x64x4xbf16, #tpu.memory_space<vmem>>, vector<8x16x4xbf16>
    tpu.vector_store %arg14[%c0_60, %c24_61, %c0_62], %57 {strides = array<i32>} : memref<8x64x4xbf16, #tpu.memory_space<vmem>>, vector<8x16x4xbf16>,
    %c0_63 = arith.constant 0 : index
    %c18_64 = arith.constant 18 : index
    %c0_65 = arith.constant 0 : index
    %59 = vector.load %arg14[%c0_63, %c18_64, %c0_65] : memref<8x64x4xbf16, #tpu.memory_space<vmem>>, vector<8x16x4xbf16>
    %c0_66 = arith.constant 0 : index
    %c0_67 = arith.constant 0 : index
    %60 = vector.load %arg15[%c0_66, %c0_67] : memref<128x32xf32, #tpu.memory_space<vmem>>, vector<128x32xf32>
    %61 = vector.shape_cast %59 : vector<8x16x4xbf16> to vector<128x4xbf16>
    %c1_68 = arith.constant 1 : index
    %c0_69 = arith.constant 0 : index
    %c0_70 = arith.constant 0 : index
    %c0_71 = arith.constant 0 : index
    %62 = vector.load %arg5[%c1_68, %c0_69, %c0_70, %c0_71] : memref<3x3x4x32xbf16, #tpu.memory_space<vmem>>, vector<1x1x4x32xbf16>
    %63 = vector.shape_cast %62 : vector<1x1x4x32xbf16> to vector<4x32xbf16>
    %cst_72 = arith.constant dense<0.000000e+00> : vector<128x32xf32>
    %64 = tpu.matmul %61, %63, %cst_72 {dimension_numbers = #tpu.dot_dimension_numbers<[1], [0], [0], [1], [0, 0, 1, 1], [], []>} : vector<128x4xbf16>, vector<4x32xbf16>, vector<128x32xf32> -> vector<128x32xf32>
    %65 = arith.addf %60, %64 : vector<128x32xf32>
    %c0_73 = arith.constant 0 : index
    %c0_74 = arith.constant 0 : index
    %66 = vector.load %arg15[%c0_73, %c0_74] : memref<128x32xf32, #tpu.memory_space<vmem>>, vector<128x32xf32>
    tpu.vector_store %arg15[%c0_73, %c0_74], %65 {strides = array<i32>} : memref<128x32xf32, #tpu.memory_space<vmem>>, vector<128x32xf32>,
    %c0_75 = arith.constant 0 : index
    %c0_76 = arith.constant 0 : index
    %67 = vector.load %arg15[%c0_75, %c0_76] : memref<128x32xf32, #tpu.memory_space<vmem>>, vector<128x32xf32>
    %68 = vector.shape_cast %57 : vector<8x16x4xbf16> to vector<128x4xbf16>
    %c1_77 = arith.constant 1 : index
    %c1_78 = arith.constant 1 : index
    %c0_79 = arith.constant 0 : index
    %c0_80 = arith.constant 0 : index
    %69 = vector.load %arg5[%c1_77, %c1_78, %c0_79, %c0_80] : memref<3x3x4x32xbf16, #tpu.memory_space<vmem>>, vector<1x1x4x32xbf16>
    %70 = vector.shape_cast %69 : vector<1x1x4x32xbf16> to vector<4x32xbf16>
    %cst_81 = arith.constant dense<0.000000e+00> : vector<128x32xf32>
    %71 = tpu.matmul %68, %70, %cst_81 {dimension_numbers = #tpu.dot_dimension_numbers<[1], [0], [0], [1], [0, 0, 1, 1], [], []>} : vector<128x4xbf16>, vector<4x32xbf16>, vector<128x32xf32> -> vector<128x32xf32>
    %72 = arith.addf %67, %71 : vector<128x32xf32>
    %c0_82 = arith.constant 0 : index
    %c0_83 = arith.constant 0 : index
    %73 = vector.load %arg15[%c0_82, %c0_83] : memref<128x32xf32, #tpu.memory_space<vmem>>, vector<128x32xf32>
    tpu.vector_store %arg15[%c0_82, %c0_83], %72 {strides = array<i32>} : memref<128x32xf32, #tpu.memory_space<vmem>>, vector<128x32xf32>,
    %c0_84 = arith.constant 0 : index
    %c30_85 = arith.constant 30 : index
    %c0_86 = arith.constant 0 : index
    %74 = vector.load %arg14[%c0_84, %c30_85, %c0_86] : memref<8x64x4xbf16, #tpu.memory_space<vmem>>, vector<8x16x4xbf16>
    %c0_87 = arith.constant 0 : index
    %c0_88 = arith.constant 0 : index
    %75 = vector.load %arg15[%c0_87, %c0_88] : memref<128x32xf32, #tpu.memory_space<vmem>>, vector<128x32xf32>
    %76 = vector.shape_cast %74 : vector<8x16x4xbf16> to vector<128x4xbf16>
    %c1_89 = arith.constant 1 : index
    %c2_90 = arith.constant 2 : index
    %c0_91 = arith.constant 0 : index
    %c0_92 = arith.constant 0 : index
    %77 = vector.load %arg5[%c1_89, %c2_90, %c0_91, %c0_92] : memref<3x3x4x32xbf16, #tpu.memory_space<vmem>>, vector<1x1x4x32xbf16>
    %78 = vector.shape_cast %77 : vector<1x1x4x32xbf16> to vector<4x32xbf16>
    %cst_93 = arith.constant dense<0.000000e+00> : vector<128x32xf32>
    %79 = tpu.matmul %76, %78, %cst_93 {dimension_numbers = #tpu.dot_dimension_numbers<[1], [0], [0], [1], [0, 0, 1, 1], [], []>} : vector<128x4xbf16>, vector<4x32xbf16>, vector<128x32xf32> -> vector<128x32xf32>
    %80 = arith.addf %75, %79 : vector<128x32xf32>
    %c0_94 = arith.constant 0 : index
    %c0_95 = arith.constant 0 : index
    %81 = vector.load %arg15[%c0_94, %c0_95] : memref<128x32xf32, #tpu.memory_space<vmem>>, vector<128x32xf32>
    tpu.vector_store %arg15[%c0_94, %c0_95], %80 {strides = array<i32>} : memref<128x32xf32, #tpu.memory_space<vmem>>, vector<128x32xf32>,
    %c18_i32_96 = arith.constant 18 : i32
    %82 = arith.addi %1, %c18_i32_96 : i32
    %c6_i32 = arith.constant 6 : i32
    %83 = arith.addi %82, %c6_i32 : i32
    %c0_97 = arith.constant 0 : index
    %84 = arith.index_cast %83 : i32 to index
    %c0_98 = arith.constant 0 : index
    %c0_99 = arith.constant 0 : index
    %85 = vector.load %arg2[%c0_97, %84, %c0_98, %c0_99] : memref<1x52x16x4xbf16, #tpu.memory_space<vmem>>, vector<1x8x16x4xbf16>
    %86 = vector.shape_cast %85 : vector<1x8x16x4xbf16> to vector<8x16x4xbf16>
    %c0_100 = arith.constant 0 : index
    %c24_101 = arith.constant 24 : index
    %c0_102 = arith.constant 0 : index
    %87 = vector.load %arg14[%c0_100, %c24_101, %c0_102] : memref<8x64x4xbf16, #tpu.memory_space<vmem>>, vector<8x16x4xbf16>
    tpu.vector_store %arg14[%c0_100, %c24_101, %c0_102], %86 {strides = array<i32>} : memref<8x64x4xbf16, #tpu.memory_space<vmem>>, vector<8x16x4xbf16>,
    %c0_103 = arith.constant 0 : index
    %c18_104 = arith.constant 18 : index
    %c0_105 = arith.constant 0 : index
    %88 = vector.load %arg14[%c0_103, %c18_104, %c0_105] : memref<8x64x4xbf16, #tpu.memory_space<vmem>>, vector<8x16x4xbf16>
    %c0_106 = arith.constant 0 : index
    %c0_107 = arith.constant 0 : index
    %89 = vector.load %arg15[%c0_106, %c0_107] : memref<128x32xf32, #tpu.memory_space<vmem>>, vector<128x32xf32>
    %90 = vector.shape_cast %88 : vector<8x16x4xbf16> to vector<128x4xbf16>
    %c2_108 = arith.constant 2 : index
    %c0_109 = arith.constant 0 : index
    %c0_110 = arith.constant 0 : index
    %c0_111 = arith.constant 0 : index
    %91 = vector.load %arg5[%c2_108, %c0_109, %c0_110, %c0_111] : memref<3x3x4x32xbf16, #tpu.memory_space<vmem>>, vector<1x1x4x32xbf16>
    %92 = vector.shape_cast %91 : vector<1x1x4x32xbf16> to vector<4x32xbf16>
    %cst_112 = arith.constant dense<0.000000e+00> : vector<128x32xf32>
    %93 = tpu.matmul %90, %92, %cst_112 {dimension_numbers = #tpu.dot_dimension_numbers<[1], [0], [0], [1], [0, 0, 1, 1], [], []>} : vector<128x4xbf16>, vector<4x32xbf16>, vector<128x32xf32> -> vector<128x32xf32>
    %94 = arith.addf %89, %93 : vector<128x32xf32>
    %c0_113 = arith.constant 0 : index
    %c0_114 = arith.constant 0 : index
    %95 = vector.load %arg15[%c0_113, %c0_114] : memref<128x32xf32, #tpu.memory_space<vmem>>, vector<128x32xf32>
    tpu.vector_store %arg15[%c0_113, %c0_114], %94 {strides = array<i32>} : memref<128x32xf32, #tpu.memory_space<vmem>>, vector<128x32xf32>,
    %c0_115 = arith.constant 0 : index
    %c0_116 = arith.constant 0 : index
    %96 = vector.load %arg15[%c0_115, %c0_116] : memref<128x32xf32, #tpu.memory_space<vmem>>, vector<128x32xf32>
    %97 = vector.shape_cast %86 : vector<8x16x4xbf16> to vector<128x4xbf16>
    %c2_117 = arith.constant 2 : index
    %c1_118 = arith.constant 1 : index
    %c0_119 = arith.constant 0 : index
    %c0_120 = arith.constant 0 : index
    %98 = vector.load %arg5[%c2_117, %c1_118, %c0_119, %c0_120] : memref<3x3x4x32xbf16, #tpu.memory_space<vmem>>, vector<1x1x4x32xbf16>
    %99 = vector.shape_cast %98 : vector<1x1x4x32xbf16> to vector<4x32xbf16>
    %cst_121 = arith.constant dense<0.000000e+00> : vector<128x32xf32>
    %100 = tpu.matmul %97, %99, %cst_121 {dimension_numbers = #tpu.dot_dimension_numbers<[1], [0], [0], [1], [0, 0, 1, 1], [], []>} : vector<128x4xbf16>, vector<4x32xbf16>, vector<128x32xf32> -> vector<128x32xf32>
    %101 = arith.addf %96, %100 : vector<128x32xf32>
    %c0_122 = arith.constant 0 : index
    %c0_123 = arith.constant 0 : index
    %102 = vector.load %arg15[%c0_122, %c0_123] : memref<128x32xf32, #tpu.memory_space<vmem>>, vector<128x32xf32>
    tpu.vector_store %arg15[%c0_122, %c0_123], %101 {strides = array<i32>} : memref<128x32xf32, #tpu.memory_space<vmem>>, vector<128x32xf32>,
    %c0_124 = arith.constant 0 : index
    %c30_125 = arith.constant 30 : index
    %c0_126 = arith.constant 0 : index
    %103 = vector.load %arg14[%c0_124, %c30_125, %c0_126] : memref<8x64x4xbf16, #tpu.memory_space<vmem>>, vector<8x16x4xbf16>
    %c0_127 = arith.constant 0 : index
    %c0_128 = arith.constant 0 : index
    %104 = vector.load %arg15[%c0_127, %c0_128] : memref<128x32xf32, #tpu.memory_space<vmem>>, vector<128x32xf32>
    %105 = vector.shape_cast %103 : vector<8x16x4xbf16> to vector<128x4xbf16>
    %c2_129 = arith.constant 2 : index
    %c2_130 = arith.constant 2 : index
    %c0_131 = arith.constant 0 : index
    %c0_132 = arith.constant 0 : index
    %106 = vector.load %arg5[%c2_129, %c2_130, %c0_131, %c0_132] : memref<3x3x4x32xbf16, #tpu.memory_space<vmem>>, vector<1x1x4x32xbf16>
    %107 = vector.shape_cast %106 : vector<1x1x4x32xbf16> to vector<4x32xbf16>
    %cst_133 = arith.constant dense<0.000000e+00> : vector<128x32xf32>
    %108 = tpu.matmul %105, %107, %cst_133 {dimension_numbers = #tpu.dot_dimension_numbers<[1], [0], [0], [1], [0, 0, 1, 1], [], []>} : vector<128x4xbf16>, vector<4x32xbf16>, vector<128x32xf32> -> vector<128x32xf32>
    %109 = arith.addf %104, %108 : vector<128x32xf32>
    %c0_134 = arith.constant 0 : index
    %c0_135 = arith.constant 0 : index
    %110 = vector.load %arg15[%c0_134, %c0_135] : memref<128x32xf32, #tpu.memory_space<vmem>>, vector<128x32xf32>
    tpu.vector_store %arg15[%c0_134, %c0_135], %109 {strides = array<i32>} : memref<128x32xf32, #tpu.memory_space<vmem>>, vector<128x32xf32>,
    %c0_136 = arith.constant 0 : index
    %c0_137 = arith.constant 0 : index
    %111 = vector.load %arg15[%c0_136, %c0_137] : memref<128x32xf32, #tpu.memory_space<vmem>>, vector<128x32xf32>
    %112 = vector.shape_cast %111 : vector<128x32xf32> to vector<8x16x32xf32>
    %c0_138 = arith.constant 0 : index
    %c0_139 = arith.constant 0 : index
    %c0_140 = arith.constant 0 : index
    %c32 = arith.constant 32 : index
    %113 = vector.load %arg13[%c0_138, %c0_139, %c0_140, %c32] : memref<1x8x16x160xf32, #tpu.memory_space<vmem>>, vector<1x8x16x32xf32>
    %114 = vector.shape_cast %113 : vector<1x8x16x32xf32> to vector<8x16x32xf32>
    %115 = vector.shape_cast %112 : vector<8x16x32xf32> to vector<1x8x16x32xf32>
    tpu.vector_store %arg13[%c0_138, %c0_139, %c0_140, %c32], %115 {strides = array<i32>} : memref<1x8x16x160xf32, #tpu.memory_space<vmem>>, vector<1x8x16x32xf32>,
    %c0_141 = arith.constant 0 : index
    %c0_142 = arith.constant 0 : index
    %116 = vector.load %arg8[%c0_141, %c0_142] : memref<1x32xf32, #tpu.memory_space<vmem>>, vector<1x32xf32>
    %117 = vector.shape_cast %116 : vector<1x32xf32> to vector<1x32xf32>
    %118 = vector.broadcast %117 : vector<1x32xf32> to vector<128x32xf32>
    %c0_143 = arith.constant 0 : index
    %c0_144 = arith.constant 0 : index
    %119 = vector.load %arg15[%c0_143, %c0_144] : memref<128x32xf32, #tpu.memory_space<vmem>>, vector<128x32xf32>
    tpu.vector_store %arg15[%c0_143, %c0_144], %118 {strides = array<i32>} : memref<128x32xf32, #tpu.memory_space<vmem>>, vector<128x32xf32>,
    %c18_i32_145 = arith.constant 18 : i32
    %120 = arith.addi %1, %c18_i32_145 : i32
    %c-12_i32 = arith.constant -12 : i32
    %121 = arith.addi %120, %c-12_i32 : i32
    %c0_146 = arith.constant 0 : index
    %122 = arith.index_cast %121 : i32 to index
    %c0_147 = arith.constant 0 : index
    %c0_148 = arith.constant 0 : index
    %123 = vector.load %arg2[%c0_146, %122, %c0_147, %c0_148] : memref<1x52x16x4xbf16, #tpu.memory_space<vmem>>, vector<1x8x16x4xbf16>
    %124 = vector.shape_cast %123 : vector<1x8x16x4xbf16> to vector<8x16x4xbf16>
    %c0_149 = arith.constant 0 : index
    %c24_150 = arith.constant 24 : index
    %c0_151 = arith.constant 0 : index
    %125 = vector.load %arg14[%c0_149, %c24_150, %c0_151] : memref<8x64x4xbf16, #tpu.memory_space<vmem>>, vector<8x16x4xbf16>
    tpu.vector_store %arg14[%c0_149, %c24_150, %c0_151], %124 {strides = array<i32>} : memref<8x64x4xbf16, #tpu.memory_space<vmem>>, vector<8x16x4xbf16>,
    %c0_152 = arith.constant 0 : index
    %c12 = arith.constant 12 : index
    %c0_153 = arith.constant 0 : index
    %126 = vector.load %arg14[%c0_152, %c12, %c0_153] : memref<8x64x4xbf16, #tpu.memory_space<vmem>>, vector<8x16x4xbf16>
    %c0_154 = arith.constant 0 : index
    %c0_155 = arith.constant 0 : index
    %127 = vector.load %arg15[%c0_154, %c0_155] : memref<128x32xf32, #tpu.memory_space<vmem>>, vector<128x32xf32>
    %128 = vector.shape_cast %126 : vector<8x16x4xbf16> to vector<128x4xbf16>
    %c0_156 = arith.constant 0 : index
    %c0_157 = arith.constant 0 : index
    %c0_158 = arith.constant 0 : index
    %c0_159 = arith.constant 0 : index
    %129 = vector.load %arg7[%c0_156, %c0_157, %c0_158, %c0_159] : memref<3x3x4x32xbf16, #tpu.memory_space<vmem>>, vector<1x1x4x32xbf16>
    %130 = vector.shape_cast %129 : vector<1x1x4x32xbf16> to vector<4x32xbf16>
    %cst_160 = arith.constant dense<0.000000e+00> : vector<128x32xf32>
    %131 = tpu.matmul %128, %130, %cst_160 {dimension_numbers = #tpu.dot_dimension_numbers<[1], [0], [0], [1], [0, 0, 1, 1], [], []>} : vector<128x4xbf16>, vector<4x32xbf16>, vector<128x32xf32> -> vector<128x32xf32>
    %132 = arith.addf %127, %131 : vector<128x32xf32>
    %c0_161 = arith.constant 0 : index
    %c0_162 = arith.constant 0 : index
    %133 = vector.load %arg15[%c0_161, %c0_162] : memref<128x32xf32, #tpu.memory_space<vmem>>, vector<128x32xf32>
    tpu.vector_store %arg15[%c0_161, %c0_162], %132 {strides = array<i32>} : memref<128x32xf32, #tpu.memory_space<vmem>>, vector<128x32xf32>,
    %c0_163 = arith.constant 0 : index
    %c0_164 = arith.constant 0 : index
    %134 = vector.load %arg15[%c0_163, %c0_164] : memref<128x32xf32, #tpu.memory_space<vmem>>, vector<128x32xf32>
    %135 = vector.shape_cast %124 : vector<8x16x4xbf16> to vector<128x4xbf16>
    %c0_165 = arith.constant 0 : index
    %c1_166 = arith.constant 1 : index
    %c0_167 = arith.constant 0 : index
    %c0_168 = arith.constant 0 : index
    %136 = vector.load %arg7[%c0_165, %c1_166, %c0_167, %c0_168] : memref<3x3x4x32xbf16, #tpu.memory_space<vmem>>, vector<1x1x4x32xbf16>
    %137 = vector.shape_cast %136 : vector<1x1x4x32xbf16> to vector<4x32xbf16>
    %cst_169 = arith.constant dense<0.000000e+00> : vector<128x32xf32>
    %138 = tpu.matmul %135, %137, %cst_169 {dimension_numbers = #tpu.dot_dimension_numbers<[1], [0], [0], [1], [0, 0, 1, 1], [], []>} : vector<128x4xbf16>, vector<4x32xbf16>, vector<128x32xf32> -> vector<128x32xf32>
    %139 = arith.addf %134, %138 : vector<128x32xf32>
    %c0_170 = arith.constant 0 : index
    %c0_171 = arith.constant 0 : index
    %140 = vector.load %arg15[%c0_170, %c0_171] : memref<128x32xf32, #tpu.memory_space<vmem>>, vector<128x32xf32>
    tpu.vector_store %arg15[%c0_170, %c0_171], %139 {strides = array<i32>} : memref<128x32xf32, #tpu.memory_space<vmem>>, vector<128x32xf32>,
    %c0_172 = arith.constant 0 : index
    %c36 = arith.constant 36 : index
    %c0_173 = arith.constant 0 : index
    %141 = vector.load %arg14[%c0_172, %c36, %c0_173] : memref<8x64x4xbf16, #tpu.memory_space<vmem>>, vector<8x16x4xbf16>
    %c0_174 = arith.constant 0 : index
    %c0_175 = arith.constant 0 : index
    %142 = vector.load %arg15[%c0_174, %c0_175] : memref<128x32xf32, #tpu.memory_space<vmem>>, vector<128x32xf32>
    %143 = vector.shape_cast %141 : vector<8x16x4xbf16> to vector<128x4xbf16>
    %c0_176 = arith.constant 0 : index
    %c2_177 = arith.constant 2 : index
    %c0_178 = arith.constant 0 : index
    %c0_179 = arith.constant 0 : index
    %144 = vector.load %arg7[%c0_176, %c2_177, %c0_178, %c0_179] : memref<3x3x4x32xbf16, #tpu.memory_space<vmem>>, vector<1x1x4x32xbf16>
    %145 = vector.shape_cast %144 : vector<1x1x4x32xbf16> to vector<4x32xbf16>
    %cst_180 = arith.constant dense<0.000000e+00> : vector<128x32xf32>
    %146 = tpu.matmul %143, %145, %cst_180 {dimension_numbers = #tpu.dot_dimension_numbers<[1], [0], [0], [1], [0, 0, 1, 1], [], []>} : vector<128x4xbf16>, vector<4x32xbf16>, vector<128x32xf32> -> vector<128x32xf32>
    %147 = arith.addf %142, %146 : vector<128x32xf32>
    %c0_181 = arith.constant 0 : index
    %c0_182 = arith.constant 0 : index
    %148 = vector.load %arg15[%c0_181, %c0_182] : memref<128x32xf32, #tpu.memory_space<vmem>>, vector<128x32xf32>
    tpu.vector_store %arg15[%c0_181, %c0_182], %147 {strides = array<i32>} : memref<128x32xf32, #tpu.memory_space<vmem>>, vector<128x32xf32>,
    %c18_i32_183 = arith.constant 18 : i32
    %149 = arith.addi %1, %c18_i32_183 : i32
    %c0_i32_184 = arith.constant 0 : i32
    %150 = arith.addi %149, %c0_i32_184 : i32
    %c0_185 = arith.constant 0 : index
    %151 = arith.index_cast %150 : i32 to index
    %c0_186 = arith.constant 0 : index
    %c0_187 = arith.constant 0 : index
    %152 = vector.load %arg2[%c0_185, %151, %c0_186, %c0_187] : memref<1x52x16x4xbf16, #tpu.memory_space<vmem>>, vector<1x8x16x4xbf16>
    %153 = vector.shape_cast %152 : vector<1x8x16x4xbf16> to vector<8x16x4xbf16>
    %c0_188 = arith.constant 0 : index
    %c24_189 = arith.constant 24 : index
    %c0_190 = arith.constant 0 : index
    %154 = vector.load %arg14[%c0_188, %c24_189, %c0_190] : memref<8x64x4xbf16, #tpu.memory_space<vmem>>, vector<8x16x4xbf16>
    tpu.vector_store %arg14[%c0_188, %c24_189, %c0_190], %153 {strides = array<i32>} : memref<8x64x4xbf16, #tpu.memory_space<vmem>>, vector<8x16x4xbf16>,
    %c0_191 = arith.constant 0 : index
    %c12_192 = arith.constant 12 : index
    %c0_193 = arith.constant 0 : index
    %155 = vector.load %arg14[%c0_191, %c12_192, %c0_193] : memref<8x64x4xbf16, #tpu.memory_space<vmem>>, vector<8x16x4xbf16>
    %c0_194 = arith.constant 0 : index
    %c0_195 = arith.constant 0 : index
    %156 = vector.load %arg15[%c0_194, %c0_195] : memref<128x32xf32, #tpu.memory_space<vmem>>, vector<128x32xf32>
    %157 = vector.shape_cast %155 : vector<8x16x4xbf16> to vector<128x4xbf16>
    %c1_196 = arith.constant 1 : index
    %c0_197 = arith.constant 0 : index
    %c0_198 = arith.constant 0 : index
    %c0_199 = arith.constant 0 : index
    %158 = vector.load %arg7[%c1_196, %c0_197, %c0_198, %c0_199] : memref<3x3x4x32xbf16, #tpu.memory_space<vmem>>, vector<1x1x4x32xbf16>
    %159 = vector.shape_cast %158 : vector<1x1x4x32xbf16> to vector<4x32xbf16>
    %cst_200 = arith.constant dense<0.000000e+00> : vector<128x32xf32>
    %160 = tpu.matmul %157, %159, %cst_200 {dimension_numbers = #tpu.dot_dimension_numbers<[1], [0], [0], [1], [0, 0, 1, 1], [], []>} : vector<128x4xbf16>, vector<4x32xbf16>, vector<128x32xf32> -> vector<128x32xf32>
    %161 = arith.addf %156, %160 : vector<128x32xf32>
    %c0_201 = arith.constant 0 : index
    %c0_202 = arith.constant 0 : index
    %162 = vector.load %arg15[%c0_201, %c0_202] : memref<128x32xf32, #tpu.memory_space<vmem>>, vector<128x32xf32>
    tpu.vector_store %arg15[%c0_201, %c0_202], %161 {strides = array<i32>} : memref<128x32xf32, #tpu.memory_space<vmem>>, vector<128x32xf32>,
    %c0_203 = arith.constant 0 : index
    %c0_204 = arith.constant 0 : index
    %163 = vector.load %arg15[%c0_203, %c0_204] : memref<128x32xf32, #tpu.memory_space<vmem>>, vector<128x32xf32>
    %164 = vector.shape_cast %153 : vector<8x16x4xbf16> to vector<128x4xbf16>
    %c1_205 = arith.constant 1 : index
    %c1_206 = arith.constant 1 : index
    %c0_207 = arith.constant 0 : index
    %c0_208 = arith.constant 0 : index
    %165 = vector.load %arg7[%c1_205, %c1_206, %c0_207, %c0_208] : memref<3x3x4x32xbf16, #tpu.memory_space<vmem>>, vector<1x1x4x32xbf16>
    %166 = vector.shape_cast %165 : vector<1x1x4x32xbf16> to vector<4x32xbf16>
    %cst_209 = arith.constant dense<0.000000e+00> : vector<128x32xf32>
    %167 = tpu.matmul %164, %166, %cst_209 {dimension_numbers = #tpu.dot_dimension_numbers<[1], [0], [0], [1], [0, 0, 1, 1], [], []>} : vector<128x4xbf16>, vector<4x32xbf16>, vector<128x32xf32> -> vector<128x32xf32>
    %168 = arith.addf %163, %167 : vector<128x32xf32>
    %c0_210 = arith.constant 0 : index
    %c0_211 = arith.constant 0 : index
    %169 = vector.load %arg15[%c0_210, %c0_211] : memref<128x32xf32, #tpu.memory_space<vmem>>, vector<128x32xf32>
    tpu.vector_store %arg15[%c0_210, %c0_211], %168 {strides = array<i32>} : memref<128x32xf32, #tpu.memory_space<vmem>>, vector<128x32xf32>,
    %c0_212 = arith.constant 0 : index
    %c36_213 = arith.constant 36 : index
    %c0_214 = arith.constant 0 : index
    %170 = vector.load %arg14[%c0_212, %c36_213, %c0_214] : memref<8x64x4xbf16, #tpu.memory_space<vmem>>, vector<8x16x4xbf16>
    %c0_215 = arith.constant 0 : index
    %c0_216 = arith.constant 0 : index
    %171 = vector.load %arg15[%c0_215, %c0_216] : memref<128x32xf32, #tpu.memory_space<vmem>>, vector<128x32xf32>
    %172 = vector.shape_cast %170 : vector<8x16x4xbf16> to vector<128x4xbf16>
    %c1_217 = arith.constant 1 : index
    %c2_218 = arith.constant 2 : index
    %c0_219 = arith.constant 0 : index
    %c0_220 = arith.constant 0 : index
    %173 = vector.load %arg7[%c1_217, %c2_218, %c0_219, %c0_220] : memref<3x3x4x32xbf16, #tpu.memory_space<vmem>>, vector<1x1x4x32xbf16>
    %174 = vector.shape_cast %173 : vector<1x1x4x32xbf16> to vector<4x32xbf16>
    %cst_221 = arith.constant dense<0.000000e+00> : vector<128x32xf32>
    %175 = tpu.matmul %172, %174, %cst_221 {dimension_numbers = #tpu.dot_dimension_numbers<[1], [0], [0], [1], [0, 0, 1, 1], [], []>} : vector<128x4xbf16>, vector<4x32xbf16>, vector<128x32xf32> -> vector<128x32xf32>
    %176 = arith.addf %171, %175 : vector<128x32xf32>
    %c0_222 = arith.constant 0 : index
    %c0_223 = arith.constant 0 : index
    %177 = vector.load %arg15[%c0_222, %c0_223] : memref<128x32xf32, #tpu.memory_space<vmem>>, vector<128x32xf32>
    tpu.vector_store %arg15[%c0_222, %c0_223], %176 {strides = array<i32>} : memref<128x32xf32, #tpu.memory_space<vmem>>, vector<128x32xf32>,
    %c18_i32_224 = arith.constant 18 : i32
    %178 = arith.addi %1, %c18_i32_224 : i32
    %c12_i32 = arith.constant 12 : i32
    %179 = arith.addi %178, %c12_i32 : i32
    %c0_225 = arith.constant 0 : index
    %180 = arith.index_cast %179 : i32 to index
    %c0_226 = arith.constant 0 : index
    %c0_227 = arith.constant 0 : index
    %181 = vector.load %arg2[%c0_225, %180, %c0_226, %c0_227] : memref<1x52x16x4xbf16, #tpu.memory_space<vmem>>, vector<1x8x16x4xbf16>
    %182 = vector.shape_cast %181 : vector<1x8x16x4xbf16> to vector<8x16x4xbf16>
    %c0_228 = arith.constant 0 : index
    %c24_229 = arith.constant 24 : index
    %c0_230 = arith.constant 0 : index
    %183 = vector.load %arg14[%c0_228, %c24_229, %c0_230] : memref<8x64x4xbf16, #tpu.memory_space<vmem>>, vector<8x16x4xbf16>
    tpu.vector_store %arg14[%c0_228, %c24_229, %c0_230], %182 {strides = array<i32>} : memref<8x64x4xbf16, #tpu.memory_space<vmem>>, vector<8x16x4xbf16>,
    %c0_231 = arith.constant 0 : index
    %c12_232 = arith.constant 12 : index
    %c0_233 = arith.constant 0 : index
    %184 = vector.load %arg14[%c0_231, %c12_232, %c0_233] : memref<8x64x4xbf16, #tpu.memory_space<vmem>>, vector<8x16x4xbf16>
    %c0_234 = arith.constant 0 : index
    %c0_235 = arith.constant 0 : index
    %185 = vector.load %arg15[%c0_234, %c0_235] : memref<128x32xf32, #tpu.memory_space<vmem>>, vector<128x32xf32>
    %186 = vector.shape_cast %184 : vector<8x16x4xbf16> to vector<128x4xbf16>
    %c2_236 = arith.constant 2 : index
    %c0_237 = arith.constant 0 : index
    %c0_238 = arith.constant 0 : index
    %c0_239 = arith.constant 0 : index
    %187 = vector.load %arg7[%c2_236, %c0_237, %c0_238, %c0_239] : memref<3x3x4x32xbf16, #tpu.memory_space<vmem>>, vector<1x1x4x32xbf16>
    %188 = vector.shape_cast %187 : vector<1x1x4x32xbf16> to vector<4x32xbf16>
    %cst_240 = arith.constant dense<0.000000e+00> : vector<128x32xf32>
    %189 = tpu.matmul %186, %188, %cst_240 {dimension_numbers = #tpu.dot_dimension_numbers<[1], [0], [0], [1], [0, 0, 1, 1], [], []>} : vector<128x4xbf16>, vector<4x32xbf16>, vector<128x32xf32> -> vector<128x32xf32>
    %190 = arith.addf %185, %189 : vector<128x32xf32>
    %c0_241 = arith.constant 0 : index
    %c0_242 = arith.constant 0 : index
    %191 = vector.load %arg15[%c0_241, %c0_242] : memref<128x32xf32, #tpu.memory_space<vmem>>, vector<128x32xf32>
    tpu.vector_store %arg15[%c0_241, %c0_242], %190 {strides = array<i32>} : memref<128x32xf32, #tpu.memory_space<vmem>>, vector<128x32xf32>,
    %c0_243 = arith.constant 0 : index
    %c0_244 = arith.constant 0 : index
    %192 = vector.load %arg15[%c0_243, %c0_244] : memref<128x32xf32, #tpu.memory_space<vmem>>, vector<128x32xf32>
    %193 = vector.shape_cast %182 : vector<8x16x4xbf16> to vector<128x4xbf16>
    %c2_245 = arith.constant 2 : index
    %c1_246 = arith.constant 1 : index
    %c0_247 = arith.constant 0 : index
    %c0_248 = arith.constant 0 : index
    %194 = vector.load %arg7[%c2_245, %c1_246, %c0_247, %c0_248] : memref<3x3x4x32xbf16, #tpu.memory_space<vmem>>, vector<1x1x4x32xbf16>
    %195 = vector.shape_cast %194 : vector<1x1x4x32xbf16> to vector<4x32xbf16>
    %cst_249 = arith.constant dense<0.000000e+00> : vector<128x32xf32>
    %196 = tpu.matmul %193, %195, %cst_249 {dimension_numbers = #tpu.dot_dimension_numbers<[1], [0], [0], [1], [0, 0, 1, 1], [], []>} : vector<128x4xbf16>, vector<4x32xbf16>, vector<128x32xf32> -> vector<128x32xf32>
    %197 = arith.addf %192, %196 : vector<128x32xf32>
    %c0_250 = arith.constant 0 : index
    %c0_251 = arith.constant 0 : index
    %198 = vector.load %arg15[%c0_250, %c0_251] : memref<128x32xf32, #tpu.memory_space<vmem>>, vector<128x32xf32>
    tpu.vector_store %arg15[%c0_250, %c0_251], %197 {strides = array<i32>} : memref<128x32xf32, #tpu.memory_space<vmem>>, vector<128x32xf32>,
    %c0_252 = arith.constant 0 : index
    %c36_253 = arith.constant 36 : index
    %c0_254 = arith.constant 0 : index
    %199 = vector.load %arg14[%c0_252, %c36_253, %c0_254] : memref<8x64x4xbf16, #tpu.memory_space<vmem>>, vector<8x16x4xbf16>
    %c0_255 = arith.constant 0 : index
    %c0_256 = arith.constant 0 : index
    %200 = vector.load %arg15[%c0_255, %c0_256] : memref<128x32xf32, #tpu.memory_space<vmem>>, vector<128x32xf32>
    %201 = vector.shape_cast %199 : vector<8x16x4xbf16> to vector<128x4xbf16>
    %c2_257 = arith.constant 2 : index
    %c2_258 = arith.constant 2 : index
    %c0_259 = arith.constant 0 : index
    %c0_260 = arith.constant 0 : index
    %202 = vector.load %arg7[%c2_257, %c2_258, %c0_259, %c0_260] : memref<3x3x4x32xbf16, #tpu.memory_space<vmem>>, vector<1x1x4x32xbf16>
    %203 = vector.shape_cast %202 : vector<1x1x4x32xbf16> to vector<4x32xbf16>
    %cst_261 = arith.constant dense<0.000000e+00> : vector<128x32xf32>
    %204 = tpu.matmul %201, %203, %cst_261 {dimension_numbers = #tpu.dot_dimension_numbers<[1], [0], [0], [1], [0, 0, 1, 1], [], []>} : vector<128x4xbf16>, vector<4x32xbf16>, vector<128x32xf32> -> vector<128x32xf32>
    %205 = arith.addf %200, %204 : vector<128x32xf32>
    %c0_262 = arith.constant 0 : index
    %c0_263 = arith.constant 0 : index
    %206 = vector.load %arg15[%c0_262, %c0_263] : memref<128x32xf32, #tpu.memory_space<vmem>>, vector<128x32xf32>
    tpu.vector_store %arg15[%c0_262, %c0_263], %205 {strides = array<i32>} : memref<128x32xf32, #tpu.memory_space<vmem>>, vector<128x32xf32>,
    %c0_264 = arith.constant 0 : index
    %c0_265 = arith.constant 0 : index
    %207 = vector.load %arg15[%c0_264, %c0_265] : memref<128x32xf32, #tpu.memory_space<vmem>>, vector<128x32xf32>
    %208 = vector.shape_cast %207 : vector<128x32xf32> to vector<8x16x32xf32>
    %c0_266 = arith.constant 0 : index
    %c0_267 = arith.constant 0 : index
    %c0_268 = arith.constant 0 : index
    %c64 = arith.constant 64 : index
    %209 = vector.load %arg13[%c0_266, %c0_267, %c0_268, %c64] : memref<1x8x16x160xf32, #tpu.memory_space<vmem>>, vector<1x8x16x32xf32>
    %210 = vector.shape_cast %209 : vector<1x8x16x32xf32> to vector<8x16x32xf32>
    %211 = vector.shape_cast %208 : vector<8x16x32xf32> to vector<1x8x16x32xf32>
    tpu.vector_store %arg13[%c0_266, %c0_267, %c0_268, %c64], %211 {strides = array<i32>} : memref<1x8x16x160xf32, #tpu.memory_space<vmem>>, vector<1x8x16x32xf32>,
    %c0_269 = arith.constant 0 : index
    %c0_270 = arith.constant 0 : index
    %212 = vector.load %arg10[%c0_269, %c0_270] : memref<1x32xf32, #tpu.memory_space<vmem>>, vector<1x32xf32>
    %213 = vector.shape_cast %212 : vector<1x32xf32> to vector<1x32xf32>
    %214 = vector.broadcast %213 : vector<1x32xf32> to vector<128x32xf32>
    %c0_271 = arith.constant 0 : index
    %c0_272 = arith.constant 0 : index
    %215 = vector.load %arg15[%c0_271, %c0_272] : memref<128x32xf32, #tpu.memory_space<vmem>>, vector<128x32xf32>
    tpu.vector_store %arg15[%c0_271, %c0_272], %214 {strides = array<i32>} : memref<128x32xf32, #tpu.memory_space<vmem>>, vector<128x32xf32>,
    %c18_i32_273 = arith.constant 18 : i32
    %216 = arith.addi %1, %c18_i32_273 : i32
    %c0_i32_274 = arith.constant 0 : i32
    %217 = arith.addi %216, %c0_i32_274 : i32
    %c0_275 = arith.constant 0 : index
    %218 = arith.index_cast %217 : i32 to index
    %c0_276 = arith.constant 0 : index
    %c0_277 = arith.constant 0 : index
    %219 = vector.load %arg2[%c0_275, %218, %c0_276, %c0_277] : memref<1x52x16x4xbf16, #tpu.memory_space<vmem>>, vector<1x8x16x4xbf16>
    %220 = vector.shape_cast %219 : vector<1x8x16x4xbf16> to vector<8x16x4xbf16>
    %c0_278 = arith.constant 0 : index
    %c0_279 = arith.constant 0 : index
    %221 = vector.load %arg15[%c0_278, %c0_279] : memref<128x32xf32, #tpu.memory_space<vmem>>, vector<128x32xf32>
    %222 = vector.shape_cast %220 : vector<8x16x4xbf16> to vector<128x4xbf16>
    %c1_280 = arith.constant 1 : index
    %c1_281 = arith.constant 1 : index
    %c0_282 = arith.constant 0 : index
    %c0_283 = arith.constant 0 : index
    %223 = vector.load %arg9[%c1_280, %c1_281, %c0_282, %c0_283] : memref<3x3x4x32xbf16, #tpu.memory_space<vmem>>, vector<1x1x4x32xbf16>
    %224 = vector.shape_cast %223 : vector<1x1x4x32xbf16> to vector<4x32xbf16>
    %cst_284 = arith.constant dense<0.000000e+00> : vector<128x32xf32>
    %225 = tpu.matmul %222, %224, %cst_284 {dimension_numbers = #tpu.dot_dimension_numbers<[1], [0], [0], [1], [0, 0, 1, 1], [], []>} : vector<128x4xbf16>, vector<4x32xbf16>, vector<128x32xf32> -> vector<128x32xf32>
    %226 = arith.addf %221, %225 : vector<128x32xf32>
    %c0_285 = arith.constant 0 : index
    %c0_286 = arith.constant 0 : index
    %227 = vector.load %arg15[%c0_285, %c0_286] : memref<128x32xf32, #tpu.memory_space<vmem>>, vector<128x32xf32>
    tpu.vector_store %arg15[%c0_285, %c0_286], %226 {strides = array<i32>} : memref<128x32xf32, #tpu.memory_space<vmem>>, vector<128x32xf32>,
    %c0_287 = arith.constant 0 : index
    %c0_288 = arith.constant 0 : index
    %228 = vector.load %arg15[%c0_287, %c0_288] : memref<128x32xf32, #tpu.memory_space<vmem>>, vector<128x32xf32>
    %229 = vector.shape_cast %228 : vector<128x32xf32> to vector<8x16x32xf32>
    %c0_289 = arith.constant 0 : index
    %c0_290 = arith.constant 0 : index
    %c0_291 = arith.constant 0 : index
    %c96 = arith.constant 96 : index
    %230 = vector.load %arg13[%c0_289, %c0_290, %c0_291, %c96] : memref<1x8x16x160xf32, #tpu.memory_space<vmem>>, vector<1x8x16x32xf32>
    %231 = vector.shape_cast %230 : vector<1x8x16x32xf32> to vector<8x16x32xf32>
    %232 = vector.shape_cast %229 : vector<8x16x32xf32> to vector<1x8x16x32xf32>
    tpu.vector_store %arg13[%c0_289, %c0_290, %c0_291, %c96], %232 {strides = array<i32>} : memref<1x8x16x160xf32, #tpu.memory_space<vmem>>, vector<1x8x16x32xf32>,
    %c0_292 = arith.constant 0 : index
    %c18_293 = arith.constant 18 : index
    %c0_294 = arith.constant 0 : index
    %c0_295 = arith.constant 0 : index
    %233 = vector.load %arg2[%c0_292, %c18_293, %c0_294, %c0_295] : memref<1x52x16x4xbf16, #tpu.memory_space<vmem>>, vector<1x16x16x4xbf16>
    %234 = vector.shape_cast %233 : vector<1x16x16x4xbf16> to vector<16x16x4xbf16>
    %235 = arith.extf %234 : vector<16x16x4xbf16> to vector<16x16x4xf32>
    %cst_296 = arith.constant dense<0.000000e+00> : vector<16x4xf32>
    %236 = vector.multi_reduction <add>, %235, %cst_296 [0] : vector<16x16x4xf32> to vector<16x4xf32>
    %cst_297 = arith.constant dense<0.000000e+00> : vector<4xf32>
    %237 = vector.multi_reduction <add>, %236, %cst_297 [0] : vector<16x4xf32> to vector<4xf32>
    %238 = vector.shape_cast %237 : vector<4xf32> to vector<1x4xf32>
    %cst_298 = arith.constant 3.906250e-03 : f32
    %239 = vector.broadcast %cst_298 : f32 to vector<1x4xf32>
    %240 = arith.mulf %238, %239 : vector<1x4xf32>
    %241 = arith.truncf %240 : vector<1x4xf32> to vector<1x4xbf16>
    %c0_299 = arith.constant 0 : index
    %c0_300 = arith.constant 0 : index
    %242 = vector.load %arg11[%c0_299, %c0_300] : memref<4x32xbf16, #tpu.memory_space<vmem>>, vector<4x32xbf16>
    %cst_301 = arith.constant dense<0.000000e+00> : vector<1x32xf32>
    %243 = tpu.matmul %241, %242, %cst_301 {dimension_numbers = #tpu.dot_dimension_numbers<[1], [0], [0], [1], [0, 0, 1, 1], [], []>} : vector<1x4xbf16>, vector<4x32xbf16>, vector<1x32xf32> -> vector<1x32xf32>
    %c0_302 = arith.constant 0 : index
    %c0_303 = arith.constant 0 : index
    %244 = vector.load %arg12[%c0_302, %c0_303] : memref<1x32xf32, #tpu.memory_space<vmem>>, vector<1x32xf32>
    %245 = arith.addf %243, %244 : vector<1x32xf32>
    %246 = vector.shape_cast %245 : vector<1x32xf32> to vector<1x1x32xf32>
    %247 = vector.shape_cast %246 : vector<1x1x32xf32> to vector<1x1x32xf32>
    %248 = vector.broadcast %247 : vector<1x1x32xf32> to vector<8x16x32xf32>
    %c0_304 = arith.constant 0 : index
    %c0_305 = arith.constant 0 : index
    %c0_306 = arith.constant 0 : index
    %c128 = arith.constant 128 : index
    %249 = vector.load %arg13[%c0_304, %c0_305, %c0_306, %c128] : memref<1x8x16x160xf32, #tpu.memory_space<vmem>>, vector<1x8x16x32xf32>
    %250 = vector.shape_cast %249 : vector<1x8x16x32xf32> to vector<8x16x32xf32>
    %251 = vector.shape_cast %248 : vector<8x16x32xf32> to vector<1x8x16x32xf32>
    tpu.vector_store %arg13[%c0_304, %c0_305, %c0_306, %c128], %251 {strides = array<i32>} : memref<1x8x16x160xf32, #tpu.memory_space<vmem>>, vector<1x8x16x32xf32>,
    return
  }
  func.func @transform_0(%arg0: i32, %arg1: i32) -> (i32, i32, i32, i32) {
    %c0_i32 = arith.constant 0 : i32
    %c0_i32_0 = arith.constant 0 : i32
    %c0_i32_1 = arith.constant 0 : i32
    %c0_i32_2 = arith.constant 0 : i32
    return %arg0, %c0_i32, %c0_i32_0, %c0_i32_1 : i32, i32, i32, i32
  }
  func.func @transform_1(%arg0: i32, %arg1: i32) -> (i32, i32) {
    %c0_i32 = arith.constant 0 : i32
    %c0_i32_0 = arith.constant 0 : i32
    %c0_i32_1 = arith.constant 0 : i32
    return %c0_i32, %c0_i32_0 : i32, i32
  }
  func.func @transform_2(%arg0: i32, %arg1: i32) -> (i32, i32) {
    %c0_i32 = arith.constant 0 : i32
    %c0_i32_0 = arith.constant 0 : i32
    %c0_i32_1 = arith.constant 0 : i32
    return %c0_i32, %c0_i32_0 : i32, i32
  }
  func.func @transform_3(%arg0: i32, %arg1: i32) -> (i32, i32, i32, i32) {
    %c0_i32 = arith.constant 0 : i32
    %c0_i32_0 = arith.constant 0 : i32
    %c0_i32_1 = arith.constant 0 : i32
    %c0_i32_2 = arith.constant 0 : i32
    %c0_i32_3 = arith.constant 0 : i32
    return %c0_i32, %c0_i32_0, %c0_i32_1, %c0_i32_2 : i32, i32, i32, i32
  }
  func.func @transform_4(%arg0: i32, %arg1: i32) -> (i32, i32) {
    %c0_i32 = arith.constant 0 : i32
    %c0_i32_0 = arith.constant 0 : i32
    %c0_i32_1 = arith.constant 0 : i32
    return %c0_i32, %c0_i32_0 : i32, i32
  }
  func.func @transform_5(%arg0: i32, %arg1: i32) -> (i32, i32, i32, i32) {
    %c0_i32 = arith.constant 0 : i32
    %c0_i32_0 = arith.constant 0 : i32
    %c0_i32_1 = arith.constant 0 : i32
    %c0_i32_2 = arith.constant 0 : i32
    %c0_i32_3 = arith.constant 0 : i32
    return %c0_i32, %c0_i32_0, %c0_i32_1, %c0_i32_2 : i32, i32, i32, i32
  }
  func.func @transform_6(%arg0: i32, %arg1: i32) -> (i32, i32) {
    %c0_i32 = arith.constant 0 : i32
    %c0_i32_0 = arith.constant 0 : i32
    %c0_i32_1 = arith.constant 0 : i32
    return %c0_i32, %c0_i32_0 : i32, i32
  }
  func.func @transform_7(%arg0: i32, %arg1: i32) -> (i32, i32, i32, i32) {
    %c0_i32 = arith.constant 0 : i32
    %c0_i32_0 = arith.constant 0 : i32
    %c0_i32_1 = arith.constant 0 : i32
    %c0_i32_2 = arith.constant 0 : i32
    %c0_i32_3 = arith.constant 0 : i32
    return %c0_i32, %c0_i32_0, %c0_i32_1, %c0_i32_2 : i32, i32, i32, i32
  }
  func.func @transform_8(%arg0: i32, %arg1: i32) -> (i32, i32) {
    %c0_i32 = arith.constant 0 : i32
    %c0_i32_0 = arith.constant 0 : i32
    %c0_i32_1 = arith.constant 0 : i32
    return %c0_i32, %c0_i32_0 : i32, i32
  }
  func.func @transform_9(%arg0: i32, %arg1: i32) -> (i32, i32) {
    %c0_i32 = arith.constant 0 : i32
    %c0_i32_0 = arith.constant 0 : i32
    %c0_i32_1 = arith.constant 0 : i32
    return %c0_i32, %c0_i32_0 : i32, i32
  }
  func.func @transform_10(%arg0: i32, %arg1: i32) -> (i32, i32) {
    %c0_i32 = arith.constant 0 : i32
    %c0_i32_0 = arith.constant 0 : i32
    %c0_i32_1 = arith.constant 0 : i32
    return %c0_i32, %c0_i32_0 : i32, i32
  }
  func.func @transform_11(%arg0: i32, %arg1: i32) -> (i32, i32, i32, i32) {
    %c0_i32 = arith.constant 0 : i32
    %c0_i32_0 = arith.constant 0 : i32
    %c0_i32_1 = arith.constant 0 : i32
    return %arg0, %arg1, %c0_i32, %c0_i32_0 : i32, i32, i32, i32
  }
}

</mosaic_0001>

<llo_original>
// kernel: tpu_custom_call.1
$region0: #{tpu_custom_call.1}
  #allocation0 [shape = 'u32[]', space=smem, size = 0x4, offset = 0x4, fixed_abs, tag = 'smem constant byte address 0x4 - core index']
  #allocation1 [shape = 'u32[72,128]{1,0:T(1,128)}', space=vmem, size = 0x9000, scoped, tag = 'internal scratch']
  #allocation2 [shape = 'bf16[8,64,4]{2,1,0:T(8,128)(2,1)}', space=vmem, size = 0x20000, scoped, tag = 'scratch operand']
  #allocation3 [shape = 'f32[128,32]{1,0:T(8,128)}', space=vmem, size = 0x10000, scoped, tag = 'scratch operand']
  %s0 = inlined_call_operand.vmem [shape: bf16[2,52,16,4], index: 0, kind: input, shape index: {}]
  %s1 = inlined_call_operand.vmem [shape: bf16[4,32], index: 1, kind: input, shape index: {}]
  %s2 = inlined_call_operand.vmem [shape: f32[1,32], index: 2, kind: input, shape index: {}]
  %s3 = inlined_call_operand.vmem [shape: bf16[3,3,4,32], index: 3, kind: input, shape index: {}]
  %s4 = inlined_call_operand.vmem [shape: f32[1,32], index: 4, kind: input, shape index: {}]
  %s5 = inlined_call_operand.vmem [shape: bf16[3,3,4,32], index: 5, kind: input, shape index: {}]
  %s6 = inlined_call_operand.vmem [shape: f32[1,32], index: 6, kind: input, shape index: {}]
  %s7 = inlined_call_operand.vmem [shape: bf16[3,3,4,32], index: 7, kind: input, shape index: {}]
  %s8 = inlined_call_operand.vmem [shape: f32[1,32], index: 8, kind: input, shape index: {}]
  %s9 = inlined_call_operand.vmem [shape: bf16[4,32], index: 9, kind: input, shape index: {}]
  %s10 = inlined_call_operand.vmem [shape: f32[1,32], index: 10, kind: input, shape index: {}]
  %s11 = inlined_call_operand.hbm [shape: f32[2,16,16,160], index: 11, kind: output, shape index: {}]
  %s12 = sld [smem:[#allocation0]]
  $region77: #{tpu_custom_call.1} parent=0
    _
  %s14 = ssub.s32 1, %s12
  %s15 = scalar_select 0, %s14, %s12
  $region1: #{tpu_custom_call.1} parent=0
    #allocation4 [shape = 'u8[262144]{0}', space=vmem, size = 0x40000, scoped, tag = 'output window, operand 0']
    #allocation5 [shape = 's32[2]{0}', space=sflag, size = 0x8, scoped, tag = 'scoped memory for tpu_custom_call.1']
    %16 = vsyncpa [#allocation5], 0
    %s17 = scalar_lea.sflag [#allocation5], 1
    %18 = vsyncpa %s17, 0
    loop: start=0, step=1, limit=6
    $region2: #{tpu_custom_call.1} parent=1 // loop_pre_header
      _
    $region3: #{tpu_custom_call.1} parent=1 // loop_header
      %s20 = sphi 0, %s24
      %p21 = scmp.ge.s32.totalorder %s20, 6
      %s27 = sphi 0, %s39
      %s28 = sphi 0, %s35
      %s29 = sphi 0, %s27
      %s30 = sphi 0, %s28
      %s31 = sphi 0, %s29
      %s32 = sphi 0, %s30
      %s42 = sphi 0, %s44
      %s45 = sphi 0, %s42
      %s46 = sphi 0, %s45
      %s62 = sphi 0, %s46
      %s66 = sphi 0, %s66
      %s68 = sphi 0, %s66
      %s69 = sphi 0, %s68
      %s83 = sphi 0, %s69
      %s87 = sphi 0, %s87
      %s89 = sphi 0, %s87
      %s90 = sphi 0, %s89
      %s104 = sphi 0, %s90
      %s108 = sphi 0, %s108
      %s110 = sphi 0, %s108
      %s111 = sphi 0, %s110
      %s125 = sphi 0, %s111
      %s129 = sphi 0, %s129
      %s131 = sphi 0, %s129
      %s132 = sphi 0, %s131
      %s146 = sphi 0, %s132
      %s150 = sphi 0, %s150
      %s152 = sphi 0, %s150
      %s153 = sphi 0, %s152
      %s167 = sphi 0, %s153
      %s171 = sphi 0, %s171
      %s173 = sphi 0, %s171
      %s174 = sphi 0, %s173
      %s188 = sphi 0, %s174
      %s192 = sphi 0, %s192
      %s194 = sphi 0, %s192
      %s195 = sphi 0, %s194
      %s209 = sphi 0, %s195
      %s213 = sphi 0, %s213
      %s215 = sphi 0, %s213
      %s216 = sphi 0, %s215
      %s230 = sphi 0, %s216
      %s234 = sphi 0, %s234
      %s236 = sphi 0, %s234
      %s237 = sphi 0, %s236
      %s251 = sphi 0, %s237
      %s255 = sphi 0, %s255
      %s257 = sphi 0, %s255
      %s258 = sphi 0, %s257
      %s272 = sphi 0, %s258
      %s280 = sphi 0, %s282
      %s283 = sphi 0, %s280
      %s284 = sphi 0, %s283
      %s300 = sphi 0, %s284
    $region4: #{tpu_custom_call.1} parent=1 // loop_header_branch
      %23 = sbr.rel (%p21) target = $region8
    $region5: #{tpu_custom_call.1} parent=1 // loop_body
      %s25 = ssub.s32 %s20, 1
      %s26 = ssub.s32 %s20, 2
      %s33 = sadd.s32 1, %s28
      %p34 = scmp.ge.s32.totalorder %s33, 2
      %s35 = scalar_select %p34, 0, %s33
      %s36 = sadd.s32 1, %s27
      %s37 = scalar_select %p34, %s36, %s27
      %p38 = scmp.ge.s32.totalorder %s37, 2
      %s39 = scalar_select %p38, 0, %s37
      %s40 = ssub.s32 %s27, %s39
      %p41 = scmp.eq.s32.totalorder %s40, 0
      %s43 = sadd.s32 %s42, 1
      %s44 = scalar_select %p41, %s42, %s43
      %p47 = pneg %p41
      %p48 = scmp.eq.s32.totalorder %s20, 3
      %p49 = por %p47, %p48
      %p50 = scmp.ne.s32.totalorder %s42, %s45
      %p51 = scmp.eq.s32.totalorder %s20, 0
      %p52 = por %p50, %p51
      %p53 = scmp.ne.s32.totalorder %s42, %s45
      %p54 = scmp.eq.s32.totalorder %s25, 3
      %p55 = por %p53, %p54
      %p56 = scmp.ne.s32.totalorder %s45, %s46
      %p57 = scmp.eq.s32.totalorder %s25, 0
      %p58 = por %p56, %p57
      %p59 = scmp.ne.s32.totalorder %s45, %s46
      %p60 = scmp.eq.s32.totalorder %s26, 3
      %p61 = por %p59, %p60
      %p63 = scmp.ne.s32.totalorder %s46, %s62
      %p64 = scmp.eq.s32.totalorder %s26, 0
      %p65 = por %p63, %p64
      %s67 = sadd.s32 %s66, 1
      %p70 = scmp.eq.s32.totalorder %s20, 3
      %p71 = scmp.ne.s32.totalorder %s66, %s68
      %p72 = scmp.eq.s32.totalorder %s20, 0
      %p73 = por %p71, %p72
      %p74 = scmp.ne.s32.totalorder %s66, %s68
      %p75 = scmp.eq.s32.totalorder %s25, 3
      %p76 = por %p74, %p75
      %p77 = scmp.ne.s32.totalorder %s68, %s69
      %p78 = scmp.eq.s32.totalorder %s25, 0
      %p79 = por %p77, %p78
      %p80 = scmp.ne.s32.totalorder %s68, %s69
      %p81 = scmp.eq.s32.totalorder %s26, 3
      %p82 = por %p80, %p81
      %p84 = scmp.ne.s32.totalorder %s69, %s83
      %p85 = scmp.eq.s32.totalorder %s26, 0
      %p86 = por %p84, %p85
      %s88 = sadd.s32 %s87, 1
      %p91 = scmp.eq.s32.totalorder %s20, 3
      %p92 = scmp.ne.s32.totalorder %s87, %s89
      %p93 = scmp.eq.s32.totalorder %s20, 0
      %p94 = por %p92, %p93
      %p95 = scmp.ne.s32.totalorder %s87, %s89
      %p96 = scmp.eq.s32.totalorder %s25, 3
      %p97 = por %p95, %p96
      %p98 = scmp.ne.s32.totalorder %s89, %s90
      %p99 = scmp.eq.s32.totalorder %s25, 0
      %p100 = por %p98, %p99
      %p101 = scmp.ne.s32.totalorder %s89, %s90
      %p102 = scmp.eq.s32.totalorder %s26, 3
      %p103 = por %p101, %p102
      %p105 = scmp.ne.s32.totalorder %s90, %s104
      %p106 = scmp.eq.s32.totalorder %s26, 0
      %p107 = por %p105, %p106
      %s109 = sadd.s32 %s108, 1
      %p112 = scmp.eq.s32.totalorder %s20, 3
      %p113 = scmp.ne.s32.totalorder %s108, %s110
      %p114 = scmp.eq.s32.totalorder %s20, 0
      %p115 = por %p113, %p114
      %p116 = scmp.ne.s32.totalorder %s108, %s110
      %p117 = scmp.eq.s32.totalorder %s25, 3
      %p118 = por %p116, %p117
      %p119 = scmp.ne.s32.totalorder %s110, %s111
      %p120 = scmp.eq.s32.totalorder %s25, 0
      %p121 = por %p119, %p120
      %p122 = scmp.ne.s32.totalorder %s110, %s111
      %p123 = scmp.eq.s32.totalorder %s26, 3
      %p124 = por %p122, %p123
      %p126 = scmp.ne.s32.totalorder %s111, %s125
      %p127 = scmp.eq.s32.totalorder %s26, 0
      %p128 = por %p126, %p127
      %s130 = sadd.s32 %s129, 1
      %p133 = scmp.eq.s32.totalorder %s20, 3
      %p134 = scmp.ne.s32.totalorder %s129, %s131
      %p135 = scmp.eq.s32.totalorder %s20, 0
      %p136 = por %p134, %p135
      %p137 = scmp.ne.s32.totalorder %s129, %s131
      %p138 = scmp.eq.s32.totalorder %s25, 3
      %p139 = por %p137, %p138
      %p140 = scmp.ne.s32.totalorder %s131, %s132
      %p141 = scmp.eq.s32.totalorder %s25, 0
      %p142 = por %p140, %p141
      %p143 = scmp.ne.s32.totalorder %s131, %s132
      %p144 = scmp.eq.s32.totalorder %s26, 3
      %p145 = por %p143, %p144
      %p147 = scmp.ne.s32.totalorder %s132, %s146
      %p148 = scmp.eq.s32.totalorder %s26, 0
      %p149 = por %p147, %p148
      %s151 = sadd.s32 %s150, 1
      %p154 = scmp.eq.s32.totalorder %s20, 3
      %p155 = scmp.ne.s32.totalorder %s150, %s152
      %p156 = scmp.eq.s32.totalorder %s20, 0
      %p157 = por %p155, %p156
      %p158 = scmp.ne.s32.totalorder %s150, %s152
      %p159 = scmp.eq.s32.totalorder %s25, 3
      %p160 = por %p158, %p159
      %p161 = scmp.ne.s32.totalorder %s152, %s153
      %p162 = scmp.eq.s32.totalorder %s25, 0
      %p163 = por %p161, %p162
      %p164 = scmp.ne.s32.totalorder %s152, %s153
      %p165 = scmp.eq.s32.totalorder %s26, 3
      %p166 = por %p164, %p165
      %p168 = scmp.ne.s32.totalorder %s153, %s167
      %p169 = scmp.eq.s32.totalorder %s26, 0
      %p170 = por %p168, %p169
      %s172 = sadd.s32 %s171, 1
      %p175 = scmp.eq.s32.totalorder %s20, 3
      %p176 = scmp.ne.s32.totalorder %s171, %s173
      %p177 = scmp.eq.s32.totalorder %s20, 0
      %p178 = por %p176, %p177
      %p179 = scmp.ne.s32.totalorder %s171, %s173
      %p180 = scmp.eq.s32.totalorder %s25, 3
      %p181 = por %p179, %p180
      %p182 = scmp.ne.s32.totalorder %s173, %s174
      %p183 = scmp.eq.s32.totalorder %s25, 0
      %p184 = por %p182, %p183
      %p185 = scmp.ne.s32.totalorder %s173, %s174
      %p186 = scmp.eq.s32.totalorder %s26, 3
      %p187 = por %p185, %p186
      %p189 = scmp.ne.s32.totalorder %s174, %s188
      %p190 = scmp.eq.s32.totalorder %s26, 0
      %p191 = por %p189, %p190
      %s193 = sadd.s32 %s192, 1
      %p196 = scmp.eq.s32.totalorder %s20, 3
      %p197 = scmp.ne.s32.totalorder %s192, %s194
      %p198 = scmp.eq.s32.totalorder %s20, 0
      %p199 = por %p197, %p198
      %p200 = scmp.ne.s32.totalorder %s192, %s194
      %p201 = scmp.eq.s32.totalorder %s25, 3
      %p202 = por %p200, %p201
      %p203 = scmp.ne.s32.totalorder %s194, %s195
      %p204 = scmp.eq.s32.totalorder %s25, 0
      %p205 = por %p203, %p204
      %p206 = scmp.ne.s32.totalorder %s194, %s195
      %p207 = scmp.eq.s32.totalorder %s26, 3
      %p208 = por %p206, %p207
      %p210 = scmp.ne.s32.totalorder %s195, %s209
      %p211 = scmp.eq.s32.totalorder %s26, 0
      %p212 = por %p210, %p211
      %s214 = sadd.s32 %s213, 1
      %p217 = scmp.eq.s32.totalorder %s20, 3
      %p218 = scmp.ne.s32.totalorder %s213, %s215
      %p219 = scmp.eq.s32.totalorder %s20, 0
      %p220 = por %p218, %p219
      %p221 = scmp.ne.s32.totalorder %s213, %s215
      %p222 = scmp.eq.s32.totalorder %s25, 3
      %p223 = por %p221, %p222
      %p224 = scmp.ne.s32.totalorder %s215, %s216
      %p225 = scmp.eq.s32.totalorder %s25, 0
      %p226 = por %p224, %p225
      %p227 = scmp.ne.s32.totalorder %s215, %s216
      %p228 = scmp.eq.s32.totalorder %s26, 3
      %p229 = por %p227, %p228
      %p231 = scmp.ne.s32.totalorder %s216, %s230
      %p232 = scmp.eq.s32.totalorder %s26, 0
      %p233 = por %p231, %p232
      %s235 = sadd.s32 %s234, 1
      %p238 = scmp.eq.s32.totalorder %s20, 3
      %p239 = scmp.ne.s32.totalorder %s234, %s236
      %p240 = scmp.eq.s32.totalorder %s20, 0
      %p241 = por %p239, %p240
      %p242 = scmp.ne.s32.totalorder %s234, %s236
      %p243 = scmp.eq.s32.totalorder %s25, 3
      %p244 = por %p242, %p243
      %p245 = scmp.ne.s32.totalorder %s236, %s237
      %p246 = scmp.eq.s32.totalorder %s25, 0
      %p247 = por %p245, %p246
      %p248 = scmp.ne.s32.totalorder %s236, %s237
      %p249 = scmp.eq.s32.totalorder %s26, 3
      %p250 = por %p248, %p249
      %p252 = scmp.ne.s32.totalorder %s237, %s251
      %p253 = scmp.eq.s32.totalorder %s26, 0
      %p254 = por %p252, %p253
      %s256 = sadd.s32 %s255, 1
      %p259 = scmp.eq.s32.totalorder %s20, 3
      %p260 = scmp.ne.s32.totalorder %s255, %s257
      %p261 = scmp.eq.s32.totalorder %s20, 0
      %p262 = por %p260, %p261
      %p263 = scmp.ne.s32.totalorder %s255, %s257
      %p264 = scmp.eq.s32.totalorder %s25, 3
      %p265 = por %p263, %p264
      %p266 = scmp.ne.s32.totalorder %s257, %s258
      %p267 = scmp.eq.s32.totalorder %s25, 0
      %p268 = por %p266, %p267
      %p269 = scmp.ne.s32.totalorder %s257, %s258
      %p270 = scmp.eq.s32.totalorder %s26, 3
      %p271 = por %p269, %p270
      %p273 = scmp.ne.s32.totalorder %s258, %s272
      %p274 = scmp.eq.s32.totalorder %s26, 0
      %p275 = por %p273, %p274
      %s276 = ssub.s32 %s27, %s39
      %s277 = ssub.s32 %s28, %s35
      %s278 = sor.u32 %s276, %s277
      %p279 = scmp.eq.s32.totalorder %s278, 0
      %s281 = sadd.s32 %s280, 1
      %s282 = scalar_select %p279, %s280, %s281
      %p285 = pneg %p279
      %p286 = scmp.eq.s32.totalorder %s20, 3
      %p287 = por %p285, %p286
      %p288 = scmp.ne.s32.totalorder %s280, %s283
      %p289 = scmp.eq.s32.totalorder %s20, 0
      %p290 = por %p288, %p289
      %p291 = scmp.ne.s32.totalorder %s280, %s283
      %p292 = scmp.eq.s32.totalorder %s25, 3
      %p293 = por %p291, %p292
      %p294 = scmp.ne.s32.totalorder %s283, %s284
      %p295 = scmp.eq.s32.totalorder %s25, 0
      %p296 = por %p294, %p295
      %p297 = scmp.ne.s32.totalorder %s283, %s284
      %p298 = scmp.eq.s32.totalorder %s26, 3
      %p299 = por %p297, %p298
      %p301 = scmp.ne.s32.totalorder %s284, %s300
      %p302 = scmp.eq.s32.totalorder %s26, 0
      %p303 = por %p301, %p302
      %p304 = scmp.le.s32.totalorder 1, %s20
      %p305 = scmp.lt.s32.totalorder %s20, 5
      %p306 = pnand %p304, %p305
      %p307 = pneg %p306
      // Predicated region
      $region9: #{tpu_custom_call.1} parent=5 // pred_check
        _
      $region10: #{tpu_custom_call.1} parent=5 // pred_check_branch
        %309 = sbr.rel (%p306) target = $region12
      $region11: #{tpu_custom_call.1} parent=5 // pred_region
        %s310 = ssub.s32 %s20, 1
        // Predicated region
        $region13: #{tpu_custom_call.1} parent=11 // pred_check
          %p311 = pneg %p79
        $region14: #{tpu_custom_call.1} parent=11 // pred_check_branch
          %313 = sbr.rel (%p311) target = $region16
        $region15: #{tpu_custom_call.1} parent=11 // pred_region
          _
        $region16: #{tpu_custom_call.1} parent=11 // pred_fallthru
          _
        // Predicated region
        $region17: #{tpu_custom_call.1} parent=11 // pred_check
          %p314 = pneg %p100
        $region18: #{tpu_custom_call.1} parent=11 // pred_check_branch
          %316 = sbr.rel (%p314) target = $region20
        $region19: #{tpu_custom_call.1} parent=11 // pred_region
          _
        $region20: #{tpu_custom_call.1} parent=11 // pred_fallthru
          _
        // Predicated region
        $region21: #{tpu_custom_call.1} parent=11 // pred_check
          %p317 = pneg %p121
        $region22: #{tpu_custom_call.1} parent=11 // pred_check_branch
          %319 = sbr.rel (%p317) target = $region24
        $region23: #{tpu_custom_call.1} parent=11 // pred_region
          _
        $region24: #{tpu_custom_call.1} parent=11 // pred_fallthru
          _
        // Predicated region
        $region25: #{tpu_custom_call.1} parent=11 // pred_check
          %p320 = pneg %p142
        $region26: #{tpu_custom_call.1} parent=11 // pred_check_branch
          %322 = sbr.rel (%p320) target = $region28
        $region27: #{tpu_custom_call.1} parent=11 // pred_region
          _
        $region28: #{tpu_custom_call.1} parent=11 // pred_fallthru
          _
        // Predicated region
        $region29: #{tpu_custom_call.1} parent=11 // pred_check
          %p323 = pneg %p163
        $region30: #{tpu_custom_call.1} parent=11 // pred_check_branch
          %325 = sbr.rel (%p323) target = $region32
        $region31: #{tpu_custom_call.1} parent=11 // pred_region
          _
        $region32: #{tpu_custom_call.1} parent=11 // pred_fallthru
          _
        // Predicated region
        $region33: #{tpu_custom_call.1} parent=11 // pred_check
          %p326 = pneg %p184
        $region34: #{tpu_custom_call.1} parent=11 // pred_check_branch
          %328 = sbr.rel (%p326) target = $region36
        $region35: #{tpu_custom_call.1} parent=11 // pred_region
          _
        $region36: #{tpu_custom_call.1} parent=11 // pred_fallthru
          _
        // Predicated region
        $region37: #{tpu_custom_call.1} parent=11 // pred_check
          %p329 = pneg %p205
        $region38: #{tpu_custom_call.1} parent=11 // pred_check_branch
          %331 = sbr.rel (%p329) target = $region40
        $region39: #{tpu_custom_call.1} parent=11 // pred_region
          _
        $region40: #{tpu_custom_call.1} parent=11 // pred_fallthru
          _
        // Predicated region
        $region41: #{tpu_custom_call.1} parent=11 // pred_check
          %p332 = pneg %p226
        $region42: #{tpu_custom_call.1} parent=11 // pred_check_branch
          %334 = sbr.rel (%p332) target = $region44
        $region43: #{tpu_custom_call.1} parent=11 // pred_region
          _
        $region44: #{tpu_custom_call.1} parent=11 // pred_fallthru
          _
        // Predicated region
        $region45: #{tpu_custom_call.1} parent=11 // pred_check
          %p335 = pneg %p247
        $region46: #{tpu_custom_call.1} parent=11 // pred_check_branch
          %337 = sbr.rel (%p335) target = $region48
        $region47: #{tpu_custom_call.1} parent=11 // pred_region
          _
        $region48: #{tpu_custom_call.1} parent=11 // pred_fallthru
          _
        // Predicated region
        $region49: #{tpu_custom_call.1} parent=11 // pred_check
          %p338 = pneg %p268
        $region50: #{tpu_custom_call.1} parent=11 // pred_check_branch
          %340 = sbr.rel (%p338) target = $region52
        $region51: #{tpu_custom_call.1} parent=11 // pred_region
          _
        $region52: #{tpu_custom_call.1} parent=11 // pred_fallthru
          _
      $region12: #{tpu_custom_call.1} parent=5 // pred_fallthru
        _
      %p341 = scmp.lt.s32.totalorder %s20, 4
      // Predicated region
      $region53: #{tpu_custom_call.1} parent=5 // pred_check
        %p342 = pneg %p341
      $region54: #{tpu_custom_call.1} parent=5 // pred_check_branch
        %344 = sbr.rel (%p342) target = $region56
      $region55: #{tpu_custom_call.1} parent=5 // pred_region
        // Predicated region
        $region57: #{tpu_custom_call.1} parent=55 // pred_check
          %p345 = pneg %p52
        $region58: #{tpu_custom_call.1} parent=55 // pred_check_branch
          %347 = sbr.rel (%p345) target = $region60
        $region59: #{tpu_custom_call.1} parent=55 // pred_region
          %p348 = scmp.lt.s32.totalorder %s27, 1
          %s349 = scalar_select %p348, %s27, 1
          %s350 = smul.addr %s349, 104
          %s351 = smul.addr %s350, 4
          %s352 = scalar_lea.vmem %s0, %s351
        $region60: #{tpu_custom_call.1} parent=55 // pred_fallthru
          _
      $region56: #{tpu_custom_call.1} parent=5 // pred_fallthru
        _
      %p353 = scmp.le.s32.totalorder 1, %s20
      %p354 = scmp.lt.s32.totalorder %s20, 5
      %p355 = pnand %p353, %p354
      %p356 = pneg %p355
      // Predicated region
      $region61: #{tpu_custom_call.1} parent=5 // pred_check
        _
      $region62: #{tpu_custom_call.1} parent=5 // pred_check_branch
        %358 = sbr.rel (%p355) target = $region64
      $region63: #{tpu_custom_call.1} parent=5 // pred_region
        %s359 = ssub.s32 %s20, 1
        %p360 = scmp.lt.s32.totalorder %s29, 1
        %s361 = scalar_select %p360, %s29, 1
        %s362 = smul.addr %s361, 104
        %s363 = smul.addr %s362, 4
        %s364 = scalar_lea.vmem %s0, %s363
        %p365 = pneg %p58
        %p366 = pneg %p55
        %p367 = pneg %p79
        %p368 = pneg %p76
        %p369 = pneg %p100
        %p370 = pneg %p97
        %p371 = pneg %p121
        %p372 = pneg %p118
        %p373 = pneg %p142
        %p374 = pneg %p139
        %p375 = pneg %p163
        %p376 = pneg %p160
        %p377 = pneg %p184
        %p378 = pneg %p181
        %p379 = pneg %p205
        %p380 = pneg %p202
        %p381 = pneg %p226
        %p382 = pneg %p223
        %p383 = pneg %p247
        %p384 = pneg %p244
        %p385 = pneg %p268
        %p386 = pneg %p265
        %p387 = pneg %p296
        %p388 = pneg %p293
        %s389 = sand.u32 %s283, 1
        %s390 = scalar_lea.sflag [#allocation5], %s389
        %s391 = sand.u32 %s283, 1
        %s392 = smul.addr %s391, 256
        %s393 = scalar_lea.vmem [#allocation4], %s392
        %p394 = scmp.lt.s32.totalorder %s29, 1
        %s395 = scalar_select %p394, %s29, 1
        %s396 = smul.addr %s395, 104
        %s397 = smul.addr %s396, 4
        %s398 = scalar_lea.vmem %s0, %s397
        %s399 = smul.u32 8, %s30
        %s401 = smul.u32 %s30, 8
        %vm402 = vcmask 27648
        %403 = vst.msk [vmem:[#allocation2] sm:$0xf] %vm402, 0
        %404 = vst.msk [vmem:[#allocation2 + $0x4] sm:$0xf] %vm402, 0
        %405 = vst.msk [vmem:[#allocation2 + $0x8] sm:$0xf] %vm402, 0
        %406 = vst.msk [vmem:[#allocation2 + $0x20] sm:$0xf] %vm402, 0
        %407 = vst.msk [vmem:[#allocation2 + $0x24] sm:$0xf] %vm402, 0
        %408 = vst.msk [vmem:[#allocation2 + $0x28] sm:$0xf] %vm402, 0
        %409 = vst.msk [vmem:[#allocation2 + $0x40] sm:$0xf] %vm402, 0
        %410 = vst.msk [vmem:[#allocation2 + $0x44] sm:$0xf] %vm402, 0
        %411 = vst.msk [vmem:[#allocation2 + $0x48] sm:$0xf] %vm402, 0
        %412 = vst.msk [vmem:[#allocation2 + $0x60] sm:$0xf] %vm402, 0
        %413 = vst.msk [vmem:[#allocation2 + $0x64] sm:$0xf] %vm402, 0
        %414 = vst.msk [vmem:[#allocation2 + $0x68] sm:$0xf] %vm402, 0
        %415 = vst.msk [vmem:[#allocation2 + $0x80] sm:$0xf] %vm402, 0
        %416 = vst.msk [vmem:[#allocation2 + $0x84] sm:$0xf] %vm402, 0
        %417 = vst.msk [vmem:[#allocation2 + $0x88] sm:$0xf] %vm402, 0
        %418 = vst.msk [vmem:[#allocation2 + $0xa0] sm:$0xf] %vm402, 0
        %419 = vst.msk [vmem:[#allocation2 + $0xa4] sm:$0xf] %vm402, 0
        %420 = vst.msk [vmem:[#allocation2 + $0xa8] sm:$0xf] %vm402, 0
        %421 = vst.msk [vmem:[#allocation2 + $0xc0] sm:$0xf] %vm402, 0
        %422 = vst.msk [vmem:[#allocation2 + $0xc4] sm:$0xf] %vm402, 0
        %423 = vst.msk [vmem:[#allocation2 + $0xc8] sm:$0xf] %vm402, 0
        %424 = vst.msk [vmem:[#allocation2 + $0xe0] sm:$0xf] %vm402, 0
        %425 = vst.msk [vmem:[#allocation2 + $0xe4] sm:$0xf] %vm402, 0
        %426 = vst.msk [vmem:[#allocation2 + $0xe8] sm:$0xf] %vm402, 0
        %427 = vst.msk [vmem:[#allocation2 + $0x14] sm:$0xf] %vm402, 0
        %428 = vst.msk [vmem:[#allocation2 + $0x18] sm:$0xf] %vm402, 0
        %429 = vst.msk [vmem:[#allocation2 + $0x1c] sm:$0xf] %vm402, 0
        %430 = vst.msk [vmem:[#allocation2 + $0x34] sm:$0xf] %vm402, 0
        %431 = vst.msk [vmem:[#allocation2 + $0x38] sm:$0xf] %vm402, 0
        %432 = vst.msk [vmem:[#allocation2 + $0x3c] sm:$0xf] %vm402, 0
        %433 = vst.msk [vmem:[#allocation2 + $0x54] sm:$0xf] %vm402, 0
        %434 = vst.msk [vmem:[#allocation2 + $0x58] sm:$0xf] %vm402, 0
        %435 = vst.msk [vmem:[#allocation2 + $0x5c] sm:$0xf] %vm402, 0
        %436 = vst.msk [vmem:[#allocation2 + $0x74] sm:$0xf] %vm402, 0
        %437 = vst.msk [vmem:[#allocation2 + $0x78] sm:$0xf] %vm402, 0
        %438 = vst.msk [vmem:[#allocation2 + $0x7c] sm:$0xf] %vm402, 0
        %439 = vst.msk [vmem:[#allocation2 + $0x94] sm:$0xf] %vm402, 0
        %440 = vst.msk [vmem:[#allocation2 + $0x98] sm:$0xf] %vm402, 0
        %441 = vst.msk [vmem:[#allocation2 + $0x9c] sm:$0xf] %vm402, 0
        %442 = vst.msk [vmem:[#allocation2 + $0xb4] sm:$0xf] %vm402, 0
        %443 = vst.msk [vmem:[#allocation2 + $0xb8] sm:$0xf] %vm402, 0
        %444 = vst.msk [vmem:[#allocation2 + $0xbc] sm:$0xf] %vm402, 0
        %445 = vst.msk [vmem:[#allocation2 + $0xd4] sm:$0xf] %vm402, 0
        %446 = vst.msk [vmem:[#allocation2 + $0xd8] sm:$0xf] %vm402, 0
        %447 = vst.msk [vmem:[#allocation2 + $0xdc] sm:$0xf] %vm402, 0
        %448 = vst.msk [vmem:[#allocation2 + $0xf4] sm:$0xf] %vm402, 0
        %449 = vst.msk [vmem:[#allocation2 + $0xf8] sm:$0xf] %vm402, 0
        %450 = vst.msk [vmem:[#allocation2 + $0xfc] sm:$0xf] %vm402, 0
        %s451 = sadd.s32 %s401, 18
        %s452 = smul.u32 %s451, 2
        %s453 = smul.addr %s452, 4
        %s454 = scalar_lea.vmem %s398, %s453
        %v455 = vld [vmem:[%s454] sm:$0xf]
        %v456 = vld [vmem:[%s454 + $0x4] sm:$0xf]
        %v457 = vld [vmem:[%s454 + $0x8] sm:$0xf]
        %v458 = vld [vmem:[%s454 + $0xc] sm:$0xf]
        %v459 = vld [vmem:[%s454 + $0x10] sm:$0xf]
        %v460 = vld [vmem:[%s454 + $0x14] sm:$0xf]
        %v461 = vld [vmem:[%s454 + $0x18] sm:$0xf]
        %v462 = vld [vmem:[%s454 + $0x1c] sm:$0xf]
        %v463 = vld [vmem:[%s454 + $0x20] sm:$0xf]
        %v464 = vld [vmem:[%s454 + $0x24] sm:$0xf]
        %v465 = vld [vmem:[%s454 + $0x28] sm:$0xf]
        %v466 = vld [vmem:[%s454 + $0x2c] sm:$0xf]
        %v467 = vld [vmem:[%s454 + $0x30] sm:$0xf]
        %v468 = vld [vmem:[%s454 + $0x34] sm:$0xf]
        %v469 = vld [vmem:[%s454 + $0x38] sm:$0xf]
        %v470 = vld [vmem:[%s454 + $0x3c] sm:$0xf]
        %v471 = vld [vmem:[%s1] sm:$0x3]
        %v472 = vld [vmem:[%s2] sm:$0x1]
        %v474 = vperm.slane %v472, 0
        %v492 = vunpack.c.l.b16 %v455
        %v493 = vunpack.c.l.b16 %v456
        %v494 = vunpack.c.l.b16 %v457
        %v495 = vunpack.c.l.b16 %v458
        %v496 = vunpack.c.l.b16 %v459
        %v497 = vunpack.c.l.b16 %v460
        %v498 = vunpack.c.l.b16 %v461
        %v499 = vunpack.c.l.b16 %v462
        %v500 = vunpack.c.l.b16 %v463
        %v501 = vunpack.c.l.b16 %v464
        %v502 = vunpack.c.l.b16 %v465
        %v503 = vunpack.c.l.b16 %v466
        %v504 = vunpack.c.l.b16 %v467
        %v505 = vunpack.c.l.b16 %v468
        %v506 = vunpack.c.l.b16 %v469
        %v507 = vunpack.c.l.b16 %v470
        %v508 = vpack.c.b16 %v493, %v492
        %v509 = vpack.c.b16 %v495, %v494
        %v510 = vpack.c.b16 %v497, %v496
        %v511 = vpack.c.b16 %v499, %v498
        %v512 = vpack.c.b16 %v501, %v500
        %v513 = vpack.c.b16 %v503, %v502
        %v514 = vpack.c.b16 %v505, %v504
        %v515 = vpack.c.b16 %v507, %v506
        %vm516 = vcmask 31744
        %v518 = vsel %vm516, %v508, 0
        %v521 = vsel %vm516, %v509, 0
        %v524 = vsel %vm516, %v510, 0
        %v527 = vsel %vm516, %v511, 0
        %v530 = vsel %vm516, %v512, 0
        %v533 = vsel %vm516, %v513, 0
        %v536 = vsel %vm516, %v514, 0
        %v539 = vsel %vm516, %v515, 0
        %vm541 = vcmask 1041408
        %v543 = vsel %vm541, %v471, 0
        %545 = vmatpush.bf16.msra.mxu0 0
        %546 = vmatpush.bf16.msra.mxu0 0
        %547 = vmatpush.bf16.msra.mxu0 0
        %548 = vmatpush.bf16.msra.mxu0 0
        %549 = vmatpush.bf16.msra.mxu0 0
        %550 = vmatpush.bf16.msra.mxu0 0
        %551 = vmatpush.bf16.msra.mxu0 0
        %552 = vmatpush.bf16.msra.mxu0 %v543
        %553 = vmatmul.bf16.gmra.mxu0 %v518
        %v554 = vpop.f32.mrf.mxu0
        %v555 = vadd.f32 %v474, %v554
        %v556 = vpop.f32.mrf.mxu0
        %v557 = vadd.f32 %v474, %v556
        %558 = vmatmul.bf16.gmra.mxu0 %v521
        %v559 = vpop.f32.mrf.mxu0
        %v560 = vadd.f32 %v474, %v559
        %v561 = vpop.f32.mrf.mxu0
        %v562 = vadd.f32 %v474, %v561
        %563 = vmatmul.bf16.gmra.mxu0 %v524
        %v564 = vpop.f32.mrf.mxu0
        %v565 = vadd.f32 %v474, %v564
        %v566 = vpop.f32.mrf.mxu0
        %v567 = vadd.f32 %v474, %v566
        %568 = vmatmul.bf16.gmra.mxu0 %v527
        %v569 = vpop.f32.mrf.mxu0
        %v570 = vadd.f32 %v474, %v569
        %v571 = vpop.f32.mrf.mxu0
        %v572 = vadd.f32 %v474, %v571
        %573 = vmatmul.bf16.gmra.mxu0 %v530
        %v574 = vpop.f32.mrf.mxu0
        %v575 = vadd.f32 %v474, %v574
        %v576 = vpop.f32.mrf.mxu0
        %v577 = vadd.f32 %v474, %v576
        %578 = vmatmul.bf16.gmra.mxu0 %v533
        %v579 = vpop.f32.mrf.mxu0
        %v580 = vadd.f32 %v474, %v579
        %v581 = vpop.f32.mrf.mxu0
        %v582 = vadd.f32 %v474, %v581
        %583 = vmatmul.bf16.gmra.mxu0 %v536
        %v584 = vpop.f32.mrf.mxu0
        %v585 = vadd.f32 %v474, %v584
        %v586 = vpop.f32.mrf.mxu0
        %v587 = vadd.f32 %v474, %v586
        %588 = vmatmul.bf16.gmra.mxu0 %v539
        %v589 = vpop.f32.mrf.mxu0
        %v590 = vadd.f32 %v474, %v589
        %v591 = vpop.f32.mrf.mxu0
        %v592 = vadd.f32 %v474, %v591
        %593 = vdwg.mxu0
        %vm594 = vcmask 261120
        %595 = vst.msk [vmem:[%s393] sm:$0xff] %vm594, %v555
        %596 = vst.msk [vmem:[%s393 + $0x10] sm:$0xff] %vm594, %v557
        %597 = vst.msk [vmem:[%s393 + $0x20] sm:$0xff] %vm594, %v560
        %598 = vst.msk [vmem:[%s393 + $0x30] sm:$0xff] %vm594, %v562
        %599 = vst.msk [vmem:[%s393 + $0x40] sm:$0xff] %vm594, %v565
        %600 = vst.msk [vmem:[%s393 + $0x50] sm:$0xff] %vm594, %v567
        %601 = vst.msk [vmem:[%s393 + $0x60] sm:$0xff] %vm594, %v570
        %602 = vst.msk [vmem:[%s393 + $0x70] sm:$0xff] %vm594, %v572
        %603 = vst.msk [vmem:[%s393 + $0x80] sm:$0xff] %vm594, %v575
        %604 = vst.msk [vmem:[%s393 + $0x90] sm:$0xff] %vm594, %v577
        %605 = vst.msk [vmem:[%s393 + $0xa0] sm:$0xff] %vm594, %v580
        %606 = vst.msk [vmem:[%s393 + $0xb0] sm:$0xff] %vm594, %v582
        %607 = vst.msk [vmem:[%s393 + $0xc0] sm:$0xff] %vm594, %v585
        %608 = vst.msk [vmem:[%s393 + $0xd0] sm:$0xff] %vm594, %v587
        %609 = vst.msk [vmem:[%s393 + $0xe0] sm:$0xff] %vm594, %v590
        %610 = vst.msk [vmem:[%s393 + $0xf0] sm:$0xff] %vm594, %v592
        %v611 = vld [vmem:[%s4] sm:$0x1]
        %v613 = vperm.slane %v611, 0
        %615 = vst.msk [vmem:[#allocation3] sm:$0xff] %vm594, %v613
        %616 = vst.msk [vmem:[#allocation3 + $0x8] sm:$0xff] %vm594, %v613
        %617 = vst.msk [vmem:[#allocation3 + $0x10] sm:$0xff] %vm594, %v613
        %618 = vst.msk [vmem:[#allocation3 + $0x18] sm:$0xff] %vm594, %v613
        %619 = vst.msk [vmem:[#allocation3 + $0x20] sm:$0xff] %vm594, %v613
        %620 = vst.msk [vmem:[#allocation3 + $0x28] sm:$0xff] %vm594, %v613
        %621 = vst.msk [vmem:[#allocation3 + $0x30] sm:$0xff] %vm594, %v613
        %622 = vst.msk [vmem:[#allocation3 + $0x38] sm:$0xff] %vm594, %v613
        %623 = vst.msk [vmem:[#allocation3 + $0x40] sm:$0xff] %vm594, %v613
        %624 = vst.msk [vmem:[#allocation3 + $0x48] sm:$0xff] %vm594, %v613
        %625 = vst.msk [vmem:[#allocation3 + $0x50] sm:$0xff] %vm594, %v613
        %626 = vst.msk [vmem:[#allocation3 + $0x58] sm:$0xff] %vm594, %v613
        %627 = vst.msk [vmem:[#allocation3 + $0x60] sm:$0xff] %vm594, %v613
        %628 = vst.msk [vmem:[#allocation3 + $0x68] sm:$0xff] %vm594, %v613
        %629 = vst.msk [vmem:[#allocation3 + $0x70] sm:$0xff] %vm594, %v613
        %630 = vst.msk [vmem:[#allocation3 + $0x78] sm:$0xff] %vm594, %v613
        %s631 = sadd.s32 %s401, 12
        %s632 = smul.u32 %s631, 2
        %s633 = smul.addr %s632, 4
        %s634 = scalar_lea.vmem %s398, %s633
        %v635 = vld [vmem:[%s634] sm:$0xf]
        %v636 = vld [vmem:[%s634 + $0x4] sm:$0xf]
        %v637 = vld [vmem:[%s634 + $0x8] sm:$0xf]
        %v638 = vld [vmem:[%s634 + $0xc] sm:$0xf]
        %v639 = vld [vmem:[%s634 + $0x10] sm:$0xf]
        %v640 = vld [vmem:[%s634 + $0x14] sm:$0xf]
        %v641 = vld [vmem:[%s634 + $0x18] sm:$0xf]
        %v642 = vld [vmem:[%s634 + $0x1c] sm:$0xf]
        %v643 = vld [vmem:[%s634 + $0x20] sm:$0xf]
        %v644 = vld [vmem:[%s634 + $0x24] sm:$0xf]
        %v645 = vld [vmem:[%s634 + $0x28] sm:$0xf]
        %v646 = vld [vmem:[%s634 + $0x2c] sm:$0xf]
        %v647 = vld [vmem:[%s634 + $0x30] sm:$0xf]
        %v648 = vld [vmem:[%s634 + $0x34] sm:$0xf]
        %v649 = vld [vmem:[%s634 + $0x38] sm:$0xf]
        %v650 = vld [vmem:[%s634 + $0x3c] sm:$0xf]
        %651 = vst.msk [vmem:[#allocation2 + $0xc] sm:$0xf] %vm402, %v635
        %652 = vst.msk [vmem:[#allocation2 + $0x10] sm:$0xf] %vm402, %v636
        %653 = vst.msk [vmem:[#allocation2 + $0x2c] sm:$0xf] %vm402, %v637
        %654 = vst.msk [vmem:[#allocation2 + $0x30] sm:$0xf] %vm402, %v638
        %655 = vst.msk [vmem:[#allocation2 + $0x4c] sm:$0xf] %vm402, %v639
        %656 = vst.msk [vmem:[#allocation2 + $0x50] sm:$0xf] %vm402, %v640
        %657 = vst.msk [vmem:[#allocation2 + $0x6c] sm:$0xf] %vm402, %v641
        %658 = vst.msk [vmem:[#allocation2 + $0x70] sm:$0xf] %vm402, %v642
        %659 = vst.msk [vmem:[#allocation2 + $0x8c] sm:$0xf] %vm402, %v643
        %660 = vst.msk [vmem:[#allocation2 + $0x90] sm:$0xf] %vm402, %v644
        %661 = vst.msk [vmem:[#allocation2 + $0xac] sm:$0xf] %vm402, %v645
        %662 = vst.msk [vmem:[#allocation2 + $0xb0] sm:$0xf] %vm402, %v646
        %663 = vst.msk [vmem:[#allocation2 + $0xcc] sm:$0xf] %vm402, %v647
        %664 = vst.msk [vmem:[#allocation2 + $0xd0] sm:$0xf] %vm402, %v648
        %665 = vst.msk [vmem:[#allocation2 + $0xec] sm:$0xf] %vm402, %v649
        %666 = vst.msk [vmem:[#allocation2 + $0xf0] sm:$0xf] %vm402, %v650
        %v667 = vld [vmem:[#allocation2 + $0x8] sm:$0xe]
        %v668 = vld [vmem:[#allocation2 + $0xc] sm:$0xf]
        %v669 = vld [vmem:[#allocation2 + $0x10] sm:$0x1]
        %v670 = vld [vmem:[#allocation2 + $0x28] sm:$0xe]
        %v671 = vld [vmem:[#allocation2 + $0x2c] sm:$0xf]
        %v672 = vld [vmem:[#allocation2 + $0x30] sm:$0x1]
        %v673 = vld [vmem:[#allocation2 + $0x48] sm:$0xe]
        %v674 = vld [vmem:[#allocation2 + $0x4c] sm:$0xf]
        %v675 = vld [vmem:[#allocation2 + $0x50] sm:$0x1]
        %v676 = vld [vmem:[#allocation2 + $0x68] sm:$0xe]
        %v677 = vld [vmem:[#allocation2 + $0x6c] sm:$0xf]
        %v678 = vld [vmem:[#allocation2 + $0x70] sm:$0x1]
        %v679 = vld [vmem:[#allocation2 + $0x88] sm:$0xe]
        %v680 = vld [vmem:[#allocation2 + $0x8c] sm:$0xf]
        %v681 = vld [vmem:[#allocation2 + $0x90] sm:$0x1]
        %v682 = vld [vmem:[#allocation2 + $0xa8] sm:$0xe]
        %v683 = vld [vmem:[#allocation2 + $0xac] sm:$0xf]
        %v684 = vld [vmem:[#allocation2 + $0xb0] sm:$0x1]
        %v685 = vld [vmem:[#allocation2 + $0xc8] sm:$0xe]
        %v686 = vld [vmem:[#allocation2 + $0xcc] sm:$0xf]
        %v687 = vld [vmem:[#allocation2 + $0xd0] sm:$0x1]
        %v688 = vld [vmem:[#allocation2 + $0xe8] sm:$0xe]
        %v689 = vld [vmem:[#allocation2 + $0xec] sm:$0xf]
        %v690 = vld [vmem:[#allocation2 + $0xf0] sm:$0x1]
        %v691 = vld [vmem:[#allocation3] sm:$0xff]
        %v692 = vld [vmem:[#allocation3 + $0x8] sm:$0xff]
        %v693 = vld [vmem:[#allocation3 + $0x10] sm:$0xff]
        %v694 = vld [vmem:[#allocation3 + $0x18] sm:$0xff]
        %v695 = vld [vmem:[#allocation3 + $0x20] sm:$0xff]
        %v696 = vld [vmem:[#allocation3 + $0x28] sm:$0xff]
        %v697 = vld [vmem:[#allocation3 + $0x30] sm:$0xff]
        %v698 = vld [vmem:[#allocation3 + $0x38] sm:$0xff]
        %v699 = vld [vmem:[#allocation3 + $0x40] sm:$0xff]
        %v700 = vld [vmem:[#allocation3 + $0x48] sm:$0xff]
        %v701 = vld [vmem:[#allocation3 + $0x50] sm:$0xff]
        %v702 = vld [vmem:[#allocation3 + $0x58] sm:$0xff]
        %v703 = vld [vmem:[#allocation3 + $0x60] sm:$0xff]
        %v704 = vld [vmem:[#allocation3 + $0x68] sm:$0xff]
        %v705 = vld [vmem:[#allocation3 + $0x70] sm:$0xff]
        %v706 = vld [vmem:[#allocation3 + $0x78] sm:$0xff]
        %vm731 = vcmask 1042432
        %vm732 = vcmask 1046532
        %vm733 = vmor %vm731, %vm732
        %v734 = vrot.slane %v667, 5
        %v735 = vrot.slane %v734, 4
        %v736 = vrot.slane %v668, 5
        %v737 = vsel %vm733, %v735, %v736
        %v738 = vrot.slane %v736, 4
        %v739 = vrot.slane %v669, 5
        %v740 = vsel %vm733, %v738, %v739
        %v741 = vrot.slane %v670, 5
        %v742 = vrot.slane %v741, 4
        %v743 = vrot.slane %v671, 5
        %v744 = vsel %vm733, %v742, %v743
        %v745 = vrot.slane %v743, 4
        %v746 = vrot.slane %v672, 5
        %v747 = vsel %vm733, %v745, %v746
        %v748 = vrot.slane %v673, 5
        %v749 = vrot.slane %v748, 4
        %v750 = vrot.slane %v674, 5
        %v751 = vsel %vm733, %v749, %v750
        %v752 = vrot.slane %v750, 4
        %v753 = vrot.slane %v675, 5
        %v754 = vsel %vm733, %v752, %v753
        %v755 = vrot.slane %v676, 5
        %v756 = vrot.slane %v755, 4
        %v757 = vrot.slane %v677, 5
        %v758 = vsel %vm733, %v756, %v757
        %v759 = vrot.slane %v757, 4
        %v760 = vrot.slane %v678, 5
        %v761 = vsel %vm733, %v759, %v760
        %v762 = vrot.slane %v679, 5
        %v763 = vrot.slane %v762, 4
        %v764 = vrot.slane %v680, 5
        %v765 = vsel %vm733, %v763, %v764
        %v766 = vrot.slane %v764, 4
        %v767 = vrot.slane %v681, 5
        %v768 = vsel %vm733, %v766, %v767
        %v769 = vrot.slane %v682, 5
        %v770 = vrot.slane %v769, 4
        %v771 = vrot.slane %v683, 5
        %v772 = vsel %vm733, %v770, %v771
        %v773 = vrot.slane %v771, 4
        %v774 = vrot.slane %v684, 5
        %v775 = vsel %vm733, %v773, %v774
        %v776 = vrot.slane %v685, 5
        %v777 = vrot.slane %v776, 4
        %v778 = vrot.slane %v686, 5
        %v779 = vsel %vm733, %v777, %v778
        %v780 = vrot.slane %v778, 4
        %v781 = vrot.slane %v687, 5
        %v782 = vsel %vm733, %v780, %v781
        %v783 = vrot.slane %v688, 5
        %v784 = vrot.slane %v783, 4
        %v785 = vrot.slane %v689, 5
        %v786 = vsel %vm733, %v784, %v785
        %v787 = vrot.slane %v785, 4
        %v788 = vrot.slane %v690, 5
        %v789 = vsel %vm733, %v787, %v788
        %v790 = vld [vmem:[%s3] sm:$0x3]
        %v791 = vunpack.c.l.b16 %v737
        %v792 = vunpack.c.l.b16 %v740
        %v793 = vunpack.c.l.b16 %v744
        %v794 = vunpack.c.l.b16 %v747
        %v795 = vunpack.c.l.b16 %v751
        %v796 = vunpack.c.l.b16 %v754
        %v797 = vunpack.c.l.b16 %v758
        %v798 = vunpack.c.l.b16 %v761
        %v799 = vunpack.c.l.b16 %v765
        %v800 = vunpack.c.l.b16 %v768
        %v801 = vunpack.c.l.b16 %v772
        %v802 = vunpack.c.l.b16 %v775
        %v803 = vunpack.c.l.b16 %v779
        %v804 = vunpack.c.l.b16 %v782
        %v805 = vunpack.c.l.b16 %v786
        %v806 = vunpack.c.l.b16 %v789
        %v807 = vpack.c.b16 %v792, %v791
        %v808 = vpack.c.b16 %v794, %v793
        %v809 = vpack.c.b16 %v796, %v795
        %v810 = vpack.c.b16 %v798, %v797
        %v811 = vpack.c.b16 %v800, %v799
        %v812 = vpack.c.b16 %v802, %v801
        %v813 = vpack.c.b16 %v804, %v803
        %v814 = vpack.c.b16 %v806, %v805
        %v816 = vsel %vm516, %v807, 0
        %v819 = vsel %vm516, %v808, 0
        %v822 = vsel %vm516, %v809, 0
        %v825 = vsel %vm516, %v810, 0
        %v828 = vsel %vm516, %v811, 0
        %v831 = vsel %vm516, %v812, 0
        %v834 = vsel %vm516, %v813, 0
        %v837 = vsel %vm516, %v814, 0
        %v840 = vsel %vm541, %v790, 0
        %842 = vmatpush.bf16.msra.mxu0 0
        %843 = vmatpush.bf16.msra.mxu0 0
        %844 = vmatpush.bf16.msra.mxu0 0
        %845 = vmatpush.bf16.msra.mxu0 0
        %846 = vmatpush.bf16.msra.mxu0 0
        %847 = vmatpush.bf16.msra.mxu0 0
        %848 = vmatpush.bf16.msra.mxu0 0
        %849 = vmatpush.bf16.msra.mxu0 %v840
        %850 = vmatmul.bf16.gmra.mxu0 %v816
        %v851 = vpop.f32.mrf.mxu0
        %v852 = vadd.f32 0.0, %v851
        %v853 = vpop.f32.mrf.mxu0
        %v854 = vadd.f32 0.0, %v853
        %855 = vmatmul.bf16.gmra.mxu0 %v819
        %v856 = vpop.f32.mrf.mxu0
        %v857 = vadd.f32 0.0, %v856
        %v858 = vpop.f32.mrf.mxu0
        %v859 = vadd.f32 0.0, %v858
        %860 = vmatmul.bf16.gmra.mxu0 %v822
        %v861 = vpop.f32.mrf.mxu0
        %v862 = vadd.f32 0.0, %v861
        %v863 = vpop.f32.mrf.mxu0
        %v864 = vadd.f32 0.0, %v863
        %865 = vmatmul.bf16.gmra.mxu0 %v825
        %v866 = vpop.f32.mrf.mxu0
        %v867 = vadd.f32 0.0, %v866
        %v868 = vpop.f32.mrf.mxu0
        %v869 = vadd.f32 0.0, %v868
        %870 = vmatmul.bf16.gmra.mxu0 %v828
        %v871 = vpop.f32.mrf.mxu0
        %v872 = vadd.f32 0.0, %v871
        %v873 = vpop.f32.mrf.mxu0
        %v874 = vadd.f32 0.0, %v873
        %875 = vmatmul.bf16.gmra.mxu0 %v831
        %v876 = vpop.f32.mrf.mxu0
        %v877 = vadd.f32 0.0, %v876
        %v878 = vpop.f32.mrf.mxu0
        %v879 = vadd.f32 0.0, %v878
        %880 = vmatmul.bf16.gmra.mxu0 %v834
        %v881 = vpop.f32.mrf.mxu0
        %v882 = vadd.f32 0.0, %v881
        %v883 = vpop.f32.mrf.mxu0
        %v884 = vadd.f32 0.0, %v883
        %885 = vmatmul.bf16.gmra.mxu0 %v837
        %v886 = vpop.f32.mrf.mxu0
        %v887 = vadd.f32 0.0, %v886
        %v888 = vpop.f32.mrf.mxu0
        %v889 = vadd.f32 0.0, %v888
        %890 = vdwg.mxu0
        %v891 = vadd.f32 %v691, %v852
        %v892 = vadd.f32 %v692, %v854
        %v893 = vadd.f32 %v693, %v857
        %v894 = vadd.f32 %v694, %v859
        %v895 = vadd.f32 %v695, %v862
        %v896 = vadd.f32 %v696, %v864
        %v897 = vadd.f32 %v697, %v867
        %v898 = vadd.f32 %v698, %v869
        %v899 = vadd.f32 %v699, %v872
        %v900 = vadd.f32 %v700, %v874
        %v901 = vadd.f32 %v701, %v877
        %v902 = vadd.f32 %v702, %v879
        %v903 = vadd.f32 %v703, %v882
        %v904 = vadd.f32 %v704, %v884
        %v905 = vadd.f32 %v705, %v887
        %v906 = vadd.f32 %v706, %v889
        %907 = vst.msk [vmem:[#allocation3] sm:$0xff] %vm594, %v891
        %908 = vst.msk [vmem:[#allocation3 + $0x8] sm:$0xff] %vm594, %v892
        %909 = vst.msk [vmem:[#allocation3 + $0x10] sm:$0xff] %vm594, %v893
        %910 = vst.msk [vmem:[#allocation3 + $0x18] sm:$0xff] %vm594, %v894
        %911 = vst.msk [vmem:[#allocation3 + $0x20] sm:$0xff] %vm594, %v895
        %912 = vst.msk [vmem:[#allocation3 + $0x28] sm:$0xff] %vm594, %v896
        %913 = vst.msk [vmem:[#allocation3 + $0x30] sm:$0xff] %vm594, %v897
        %914 = vst.msk [vmem:[#allocation3 + $0x38] sm:$0xff] %vm594, %v898
        %915 = vst.msk [vmem:[#allocation3 + $0x40] sm:$0xff] %vm594, %v899
        %916 = vst.msk [vmem:[#allocation3 + $0x48] sm:$0xff] %vm594, %v900
        %917 = vst.msk [vmem:[#allocation3 + $0x50] sm:$0xff] %vm594, %v901
        %918 = vst.msk [vmem:[#allocation3 + $0x58] sm:$0xff] %vm594, %v902
        %919 = vst.msk [vmem:[#allocation3 + $0x60] sm:$0xff] %vm594, %v903
        %920 = vst.msk [vmem:[#allocation3 + $0x68] sm:$0xff] %vm594, %v904
        %921 = vst.msk [vmem:[#allocation3 + $0x70] sm:$0xff] %vm594, %v905
        %922 = vst.msk [vmem:[#allocation3 + $0x78] sm:$0xff] %vm594, %v906
        %v923 = vld [vmem:[#allocation3] sm:$0xff]
        %v924 = vld [vmem:[#allocation3 + $0x8] sm:$0xff]
        %v925 = vld [vmem:[#allocation3 + $0x10] sm:$0xff]
        %v926 = vld [vmem:[#allocation3 + $0x18] sm:$0xff]
        %v927 = vld [vmem:[#allocation3 + $0x20] sm:$0xff]
        %v928 = vld [vmem:[#allocation3 + $0x28] sm:$0xff]
        %v929 = vld [vmem:[#allocation3 + $0x30] sm:$0xff]
        %v930 = vld [vmem:[#allocation3 + $0x38] sm:$0xff]
        %v931 = vld [vmem:[#allocation3 + $0x40] sm:$0xff]
        %v932 = vld [vmem:[#allocation3 + $0x48] sm:$0xff]
        %v933 = vld [vmem:[#allocation3 + $0x50] sm:$0xff]
        %v934 = vld [vmem:[#allocation3 + $0x58] sm:$0xff]
        %v935 = vld [vmem:[#allocation3 + $0x60] sm:$0xff]
        %v936 = vld [vmem:[#allocation3 + $0x68] sm:$0xff]
        %v937 = vld [vmem:[#allocation3 + $0x70] sm:$0xff]
        %v938 = vld [vmem:[#allocation3 + $0x78] sm:$0xff]
        %s939 = scalar_lea.vmem %s3, 2
        %v940 = vld [vmem:[%s939] sm:$0x3]
        %v957 = vunpack.c.l.b16 %v635
        %v958 = vunpack.c.l.b16 %v636
        %v959 = vunpack.c.l.b16 %v637
        %v960 = vunpack.c.l.b16 %v638
        %v961 = vunpack.c.l.b16 %v639
        %v962 = vunpack.c.l.b16 %v640
        %v963 = vunpack.c.l.b16 %v641
        %v964 = vunpack.c.l.b16 %v642
        %v965 = vunpack.c.l.b16 %v643
        %v966 = vunpack.c.l.b16 %v644
        %v967 = vunpack.c.l.b16 %v645
        %v968 = vunpack.c.l.b16 %v646
        %v969 = vunpack.c.l.b16 %v647
        %v970 = vunpack.c.l.b16 %v648
        %v971 = vunpack.c.l.b16 %v649
        %v972 = vunpack.c.l.b16 %v650
        %v973 = vpack.c.b16 %v958, %v957
        %v974 = vpack.c.b16 %v960, %v959
        %v975 = vpack.c.b16 %v962, %v961
        %v976 = vpack.c.b16 %v964, %v963
        %v977 = vpack.c.b16 %v966, %v965
        %v978 = vpack.c.b16 %v968, %v967
        %v979 = vpack.c.b16 %v970, %v969
        %v980 = vpack.c.b16 %v972, %v971
        %v982 = vsel %vm516, %v973, 0
        %v985 = vsel %vm516, %v974, 0
        %v988 = vsel %vm516, %v975, 0
        %v991 = vsel %vm516, %v976, 0
        %v994 = vsel %vm516, %v977, 0
        %v997 = vsel %vm516, %v978, 0
        %v1000 = vsel %vm516, %v979, 0
        %v1003 = vsel %vm516, %v980, 0
        %v1006 = vsel %vm541, %v940, 0
        %1008 = vmatpush.bf16.msra.mxu0 0
        %1009 = vmatpush.bf16.msra.mxu0 0
        %1010 = vmatpush.bf16.msra.mxu0 0
        %1011 = vmatpush.bf16.msra.mxu0 0
        %1012 = vmatpush.bf16.msra.mxu0 0
        %1013 = vmatpush.bf16.msra.mxu0 0
        %1014 = vmatpush.bf16.msra.mxu0 0
        %1015 = vmatpush.bf16.msra.mxu0 %v1006
        %1016 = vmatmul.bf16.gmra.mxu0 %v982
        %v1017 = vpop.f32.mrf.mxu0
        %v1018 = vadd.f32 0.0, %v1017
        %v1019 = vpop.f32.mrf.mxu0
        %v1020 = vadd.f32 0.0, %v1019
        %1021 = vmatmul.bf16.gmra.mxu0 %v985
        %v1022 = vpop.f32.mrf.mxu0
        %v1023 = vadd.f32 0.0, %v1022
        %v1024 = vpop.f32.mrf.mxu0
        %v1025 = vadd.f32 0.0, %v1024
        %1026 = vmatmul.bf16.gmra.mxu0 %v988
        %v1027 = vpop.f32.mrf.mxu0
        %v1028 = vadd.f32 0.0, %v1027
        %v1029 = vpop.f32.mrf.mxu0
        %v1030 = vadd.f32 0.0, %v1029
        %1031 = vmatmul.bf16.gmra.mxu0 %v991
        %v1032 = vpop.f32.mrf.mxu0
        %v1033 = vadd.f32 0.0, %v1032
        %v1034 = vpop.f32.mrf.mxu0
        %v1035 = vadd.f32 0.0, %v1034
        %1036 = vmatmul.bf16.gmra.mxu0 %v994
        %v1037 = vpop.f32.mrf.mxu0
        %v1038 = vadd.f32 0.0, %v1037
        %v1039 = vpop.f32.mrf.mxu0
        %v1040 = vadd.f32 0.0, %v1039
        %1041 = vmatmul.bf16.gmra.mxu0 %v997
        %v1042 = vpop.f32.mrf.mxu0
        %v1043 = vadd.f32 0.0, %v1042
        %v1044 = vpop.f32.mrf.mxu0
        %v1045 = vadd.f32 0.0, %v1044
        %1046 = vmatmul.bf16.gmra.mxu0 %v1000
        %v1047 = vpop.f32.mrf.mxu0
        %v1048 = vadd.f32 0.0, %v1047
        %v1049 = vpop.f32.mrf.mxu0
        %v1050 = vadd.f32 0.0, %v1049
        %1051 = vmatmul.bf16.gmra.mxu0 %v1003
        %v1052 = vpop.f32.mrf.mxu0
        %v1053 = vadd.f32 0.0, %v1052
        %v1054 = vpop.f32.mrf.mxu0
        %v1055 = vadd.f32 0.0, %v1054
        %1056 = vdwg.mxu0
        %v1057 = vadd.f32 %v923, %v1018
        %v1058 = vadd.f32 %v924, %v1020
        %v1059 = vadd.f32 %v925, %v1023
        %v1060 = vadd.f32 %v926, %v1025
        %v1061 = vadd.f32 %v927, %v1028
        %v1062 = vadd.f32 %v928, %v1030
        %v1063 = vadd.f32 %v929, %v1033
        %v1064 = vadd.f32 %v930, %v1035
        %v1065 = vadd.f32 %v931, %v1038
        %v1066 = vadd.f32 %v932, %v1040
        %v1067 = vadd.f32 %v933, %v1043
        %v1068 = vadd.f32 %v934, %v1045
        %v1069 = vadd.f32 %v935, %v1048
        %v1070 = vadd.f32 %v936, %v1050
        %v1071 = vadd.f32 %v937, %v1053
        %v1072 = vadd.f32 %v938, %v1055
        %1073 = vst.msk [vmem:[#allocation3] sm:$0xff] %vm594, %v1057
        %1074 = vst.msk [vmem:[#allocation3 + $0x8] sm:$0xff] %vm594, %v1058
        %1075 = vst.msk [vmem:[#allocation3 + $0x10] sm:$0xff] %vm594, %v1059
        %1076 = vst.msk [vmem:[#allocation3 + $0x18] sm:$0xff] %vm594, %v1060
        %1077 = vst.msk [vmem:[#allocation3 + $0x20] sm:$0xff] %vm594, %v1061
        %1078 = vst.msk [vmem:[#allocation3 + $0x28] sm:$0xff] %vm594, %v1062
        %1079 = vst.msk [vmem:[#allocation3 + $0x30] sm:$0xff] %vm594, %v1063
        %1080 = vst.msk [vmem:[#allocation3 + $0x38] sm:$0xff] %vm594, %v1064
        %1081 = vst.msk [vmem:[#allocation3 + $0x40] sm:$0xff] %vm594, %v1065
        %1082 = vst.msk [vmem:[#allocation3 + $0x48] sm:$0xff] %vm594, %v1066
        %1083 = vst.msk [vmem:[#allocation3 + $0x50] sm:$0xff] %vm594, %v1067
        %1084 = vst.msk [vmem:[#allocation3 + $0x58] sm:$0xff] %vm594, %v1068
        %1085 = vst.msk [vmem:[#allocation3 + $0x60] sm:$0xff] %vm594, %v1069
        %1086 = vst.msk [vmem:[#allocation3 + $0x68] sm:$0xff] %vm594, %v1070
        %1087 = vst.msk [vmem:[#allocation3 + $0x70] sm:$0xff] %vm594, %v1071
        %1088 = vst.msk [vmem:[#allocation3 + $0x78] sm:$0xff] %vm594, %v1072
        %v1089 = vld [vmem:[#allocation2 + $0xc] sm:$0x8]
        %v1090 = vld [vmem:[#allocation2 + $0x10] sm:$0xf]
        %v1091 = vld [vmem:[#allocation2 + $0x14] sm:$0x7]
        %v1092 = vld [vmem:[#allocation2 + $0x2c] sm:$0x8]
        %v1093 = vld [vmem:[#allocation2 + $0x30] sm:$0xf]
        %v1094 = vld [vmem:[#allocation2 + $0x34] sm:$0x7]
        %v1095 = vld [vmem:[#allocation2 + $0x4c] sm:$0x8]
        %v1096 = vld [vmem:[#allocation2 + $0x50] sm:$0xf]
        %v1097 = vld [vmem:[#allocation2 + $0x54] sm:$0x7]
        %v1098 = vld [vmem:[#allocation2 + $0x6c] sm:$0x8]
        %v1099 = vld [vmem:[#allocation2 + $0x70] sm:$0xf]
        %v1100 = vld [vmem:[#allocation2 + $0x74] sm:$0x7]
        %v1101 = vld [vmem:[#allocation2 + $0x8c] sm:$0x8]
        %v1102 = vld [vmem:[#allocation2 + $0x90] sm:$0xf]
        %v1103 = vld [vmem:[#allocation2 + $0x94] sm:$0x7]
        %v1104 = vld [vmem:[#allocation2 + $0xac] sm:$0x8]
        %v1105 = vld [vmem:[#allocation2 + $0xb0] sm:$0xf]
        %v1106 = vld [vmem:[#allocation2 + $0xb4] sm:$0x7]
        %v1107 = vld [vmem:[#allocation2 + $0xcc] sm:$0x8]
        %v1108 = vld [vmem:[#allocation2 + $0xd0] sm:$0xf]
        %v1109 = vld [vmem:[#allocation2 + $0xd4] sm:$0x7]
        %v1110 = vld [vmem:[#allocation2 + $0xec] sm:$0x8]
        %v1111 = vld [vmem:[#allocation2 + $0xf0] sm:$0xf]
        %v1112 = vld [vmem:[#allocation2 + $0xf4] sm:$0x7]
        %v1113 = vld [vmem:[#allocation3] sm:$0xff]
        %v1114 = vld [vmem:[#allocation3 + $0x8] sm:$0xff]
        %v1115 = vld [vmem:[#allocation3 + $0x10] sm:$0xff]
        %v1116 = vld [vmem:[#allocation3 + $0x18] sm:$0xff]
        %v1117 = vld [vmem:[#allocation3 + $0x20] sm:$0xff]
        %v1118 = vld [vmem:[#allocation3 + $0x28] sm:$0xff]
        %v1119 = vld [vmem:[#allocation3 + $0x30] sm:$0xff]
        %v1120 = vld [vmem:[#allocation3 + $0x38] sm:$0xff]
        %v1121 = vld [vmem:[#allocation3 + $0x40] sm:$0xff]
        %v1122 = vld [vmem:[#allocation3 + $0x48] sm:$0xff]
        %v1123 = vld [vmem:[#allocation3 + $0x50] sm:$0xff]
        %v1124 = vld [vmem:[#allocation3 + $0x58] sm:$0xff]
        %v1125 = vld [vmem:[#allocation3 + $0x60] sm:$0xff]
        %v1126 = vld [vmem:[#allocation3 + $0x68] sm:$0xff]
        %v1127 = vld [vmem:[#allocation3 + $0x70] sm:$0xff]
        %v1128 = vld [vmem:[#allocation3 + $0x78] sm:$0xff]
        %vm1153 = vcmask 1040384
        %vm1154 = vcmask 1044484
        %vm1155 = vmor %vm1153, %vm1154
        %v1156 = vrot.slane %v1089, 7
        %v1157 = vrot.slane %v1156, 4
        %v1158 = vrot.slane %v1090, 7
        %v1159 = vsel %vm1155, %v1157, %v1158
        %v1160 = vrot.slane %v1158, 4
        %v1161 = vrot.slane %v1091, 7
        %v1162 = vsel %vm1155, %v1160, %v1161
        %v1163 = vrot.slane %v1092, 7
        %v1164 = vrot.slane %v1163, 4
        %v1165 = vrot.slane %v1093, 7
        %v1166 = vsel %vm1155, %v1164, %v1165
        %v1167 = vrot.slane %v1165, 4
        %v1168 = vrot.slane %v1094, 7
        %v1169 = vsel %vm1155, %v1167, %v1168
        %v1170 = vrot.slane %v1095, 7
        %v1171 = vrot.slane %v1170, 4
        %v1172 = vrot.slane %v1096, 7
        %v1173 = vsel %vm1155, %v1171, %v1172
        %v1174 = vrot.slane %v1172, 4
        %v1175 = vrot.slane %v1097, 7
        %v1176 = vsel %vm1155, %v1174, %v1175
        %v1177 = vrot.slane %v1098, 7
        %v1178 = vrot.slane %v1177, 4
        %v1179 = vrot.slane %v1099, 7
        %v1180 = vsel %vm1155, %v1178, %v1179
        %v1181 = vrot.slane %v1179, 4
        %v1182 = vrot.slane %v1100, 7
        %v1183 = vsel %vm1155, %v1181, %v1182
        %v1184 = vrot.slane %v1101, 7
        %v1185 = vrot.slane %v1184, 4
        %v1186 = vrot.slane %v1102, 7
        %v1187 = vsel %vm1155, %v1185, %v1186
        %v1188 = vrot.slane %v1186, 4
        %v1189 = vrot.slane %v1103, 7
        %v1190 = vsel %vm1155, %v1188, %v1189
        %v1191 = vrot.slane %v1104, 7
        %v1192 = vrot.slane %v1191, 4
        %v1193 = vrot.slane %v1105, 7
        %v1194 = vsel %vm1155, %v1192, %v1193
        %v1195 = vrot.slane %v1193, 4
        %v1196 = vrot.slane %v1106, 7
        %v1197 = vsel %vm1155, %v1195, %v1196
        %v1198 = vrot.slane %v1107, 7
        %v1199 = vrot.slane %v1198, 4
        %v1200 = vrot.slane %v1108, 7
        %v1201 = vsel %vm1155, %v1199, %v1200
        %v1202 = vrot.slane %v1200, 4
        %v1203 = vrot.slane %v1109, 7
        %v1204 = vsel %vm1155, %v1202, %v1203
        %v1205 = vrot.slane %v1110, 7
        %v1206 = vrot.slane %v1205, 4
        %v1207 = vrot.slane %v1111, 7
        %v1208 = vsel %vm1155, %v1206, %v1207
        %v1209 = vrot.slane %v1207, 4
        %v1210 = vrot.slane %v1112, 7
        %v1211 = vsel %vm1155, %v1209, %v1210
        %s1212 = scalar_lea.vmem %s3, 4
        %v1213 = vld [vmem:[%s1212] sm:$0x3]
        %v1214 = vunpack.c.l.b16 %v1159
        %v1215 = vunpack.c.l.b16 %v1162
        %v1216 = vunpack.c.l.b16 %v1166
        %v1217 = vunpack.c.l.b16 %v1169
        %v1218 = vunpack.c.l.b16 %v1173
        %v1219 = vunpack.c.l.b16 %v1176
        %v1220 = vunpack.c.l.b16 %v1180
        %v1221 = vunpack.c.l.b16 %v1183
        %v1222 = vunpack.c.l.b16 %v1187
        %v1223 = vunpack.c.l.b16 %v1190
        %v1224 = vunpack.c.l.b16 %v1194
        %v1225 = vunpack.c.l.b16 %v1197
        %v1226 = vunpack.c.l.b16 %v1201
        %v1227 = vunpack.c.l.b16 %v1204
        %v1228 = vunpack.c.l.b16 %v1208
        %v1229 = vunpack.c.l.b16 %v1211
        %v1230 = vpack.c.b16 %v1215, %v1214
        %v1231 = vpack.c.b16 %v1217, %v1216
        %v1232 = vpack.c.b16 %v1219, %v1218
        %v1233 = vpack.c.b16 %v1221, %v1220
        %v1234 = vpack.c.b16 %v1223, %v1222
        %v1235 = vpack.c.b16 %v1225, %v1224
        %v1236 = vpack.c.b16 %v1227, %v1226
        %v1237 = vpack.c.b16 %v1229, %v1228
        %v1239 = vsel %vm516, %v1230, 0
        %v1242 = vsel %vm516, %v1231, 0
        %v1245 = vsel %vm516, %v1232, 0
        %v1248 = vsel %vm516, %v1233, 0
        %v1251 = vsel %vm516, %v1234, 0
        %v1254 = vsel %vm516, %v1235, 0
        %v1257 = vsel %vm516, %v1236, 0
        %v1260 = vsel %vm516, %v1237, 0
        %v1263 = vsel %vm541, %v1213, 0
        %1265 = vmatpush.bf16.msra.mxu0 0
        %1266 = vmatpush.bf16.msra.mxu0 0
        %1267 = vmatpush.bf16.msra.mxu0 0
        %1268 = vmatpush.bf16.msra.mxu0 0
        %1269 = vmatpush.bf16.msra.mxu0 0
        %1270 = vmatpush.bf16.msra.mxu0 0
        %1271 = vmatpush.bf16.msra.mxu0 0
        %1272 = vmatpush.bf16.msra.mxu0 %v1263
        %1273 = vmatmul.bf16.gmra.mxu0 %v1239
        %v1274 = vpop.f32.mrf.mxu0
        %v1275 = vadd.f32 0.0, %v1274
        %v1276 = vpop.f32.mrf.mxu0
        %v1277 = vadd.f32 0.0, %v1276
        %1278 = vmatmul.bf16.gmra.mxu0 %v1242
        %v1279 = vpop.f32.mrf.mxu0
        %v1280 = vadd.f32 0.0, %v1279
        %v1281 = vpop.f32.mrf.mxu0
        %v1282 = vadd.f32 0.0, %v1281
        %1283 = vmatmul.bf16.gmra.mxu0 %v1245
        %v1284 = vpop.f32.mrf.mxu0
        %v1285 = vadd.f32 0.0, %v1284
        %v1286 = vpop.f32.mrf.mxu0
        %v1287 = vadd.f32 0.0, %v1286
        %1288 = vmatmul.bf16.gmra.mxu0 %v1248
        %v1289 = vpop.f32.mrf.mxu0
        %v1290 = vadd.f32 0.0, %v1289
        %v1291 = vpop.f32.mrf.mxu0
        %v1292 = vadd.f32 0.0, %v1291
        %1293 = vmatmul.bf16.gmra.mxu0 %v1251
        %v1294 = vpop.f32.mrf.mxu0
        %v1295 = vadd.f32 0.0, %v1294
        %v1296 = vpop.f32.mrf.mxu0
        %v1297 = vadd.f32 0.0, %v1296
        %1298 = vmatmul.bf16.gmra.mxu0 %v1254
        %v1299 = vpop.f32.mrf.mxu0
        %v1300 = vadd.f32 0.0, %v1299
        %v1301 = vpop.f32.mrf.mxu0
        %v1302 = vadd.f32 0.0, %v1301
        %1303 = vmatmul.bf16.gmra.mxu0 %v1257
        %v1304 = vpop.f32.mrf.mxu0
        %v1305 = vadd.f32 0.0, %v1304
        %v1306 = vpop.f32.mrf.mxu0
        %v1307 = vadd.f32 0.0, %v1306
        %1308 = vmatmul.bf16.gmra.mxu0 %v1260
        %v1309 = vpop.f32.mrf.mxu0
        %v1310 = vadd.f32 0.0, %v1309
        %v1311 = vpop.f32.mrf.mxu0
        %v1312 = vadd.f32 0.0, %v1311
        %1313 = vdwg.mxu0
        %v1314 = vadd.f32 %v1113, %v1275
        %v1315 = vadd.f32 %v1114, %v1277
        %v1316 = vadd.f32 %v1115, %v1280
        %v1317 = vadd.f32 %v1116, %v1282
        %v1318 = vadd.f32 %v1117, %v1285
        %v1319 = vadd.f32 %v1118, %v1287
        %v1320 = vadd.f32 %v1119, %v1290
        %v1321 = vadd.f32 %v1120, %v1292
        %v1322 = vadd.f32 %v1121, %v1295
        %v1323 = vadd.f32 %v1122, %v1297
        %v1324 = vadd.f32 %v1123, %v1300
        %v1325 = vadd.f32 %v1124, %v1302
        %v1326 = vadd.f32 %v1125, %v1305
        %v1327 = vadd.f32 %v1126, %v1307
        %v1328 = vadd.f32 %v1127, %v1310
        %v1329 = vadd.f32 %v1128, %v1312
        %1330 = vst.msk [vmem:[#allocation3] sm:$0xff] %vm594, %v1314
        %1331 = vst.msk [vmem:[#allocation3 + $0x8] sm:$0xff] %vm594, %v1315
        %1332 = vst.msk [vmem:[#allocation3 + $0x10] sm:$0xff] %vm594, %v1316
        %1333 = vst.msk [vmem:[#allocation3 + $0x18] sm:$0xff] %vm594, %v1317
        %1334 = vst.msk [vmem:[#allocation3 + $0x20] sm:$0xff] %vm594, %v1318
        %1335 = vst.msk [vmem:[#allocation3 + $0x28] sm:$0xff] %vm594, %v1319
        %1336 = vst.msk [vmem:[#allocation3 + $0x30] sm:$0xff] %vm594, %v1320
        %1337 = vst.msk [vmem:[#allocation3 + $0x38] sm:$0xff] %vm594, %v1321
        %1338 = vst.msk [vmem:[#allocation3 + $0x40] sm:$0xff] %vm594, %v1322
        %1339 = vst.msk [vmem:[#allocation3 + $0x48] sm:$0xff] %vm594, %v1323
        %1340 = vst.msk [vmem:[#allocation3 + $0x50] sm:$0xff] %vm594, %v1324
        %1341 = vst.msk [vmem:[#allocation3 + $0x58] sm:$0xff] %vm594, %v1325
        %1342 = vst.msk [vmem:[#allocation3 + $0x60] sm:$0xff] %vm594, %v1326
        %1343 = vst.msk [vmem:[#allocation3 + $0x68] sm:$0xff] %vm594, %v1327
        %1344 = vst.msk [vmem:[#allocation3 + $0x70] sm:$0xff] %vm594, %v1328
        %1345 = vst.msk [vmem:[#allocation3 + $0x78] sm:$0xff] %vm594, %v1329
        %v1346 = vld [vmem:[%s454] sm:$0xf]
        %v1347 = vld [vmem:[%s454 + $0x4] sm:$0xf]
        %v1348 = vld [vmem:[%s454 + $0x8] sm:$0xf]
        %v1349 = vld [vmem:[%s454 + $0xc] sm:$0xf]
        %v1350 = vld [vmem:[%s454 + $0x10] sm:$0xf]
        %v1351 = vld [vmem:[%s454 + $0x14] sm:$0xf]
        %v1352 = vld [vmem:[%s454 + $0x18] sm:$0xf]
        %v1353 = vld [vmem:[%s454 + $0x1c] sm:$0xf]
        %v1354 = vld [vmem:[%s454 + $0x20] sm:$0xf]
        %v1355 = vld [vmem:[%s454 + $0x24] sm:$0xf]
        %v1356 = vld [vmem:[%s454 + $0x28] sm:$0xf]
        %v1357 = vld [vmem:[%s454 + $0x2c] sm:$0xf]
        %v1358 = vld [vmem:[%s454 + $0x30] sm:$0xf]
        %v1359 = vld [vmem:[%s454 + $0x34] sm:$0xf]
        %v1360 = vld [vmem:[%s454 + $0x38] sm:$0xf]
        %v1361 = vld [vmem:[%s454 + $0x3c] sm:$0xf]
        %1362 = vst.msk [vmem:[#allocation2 + $0xc] sm:$0xf] %vm402, %v1346
        %1363 = vst.msk [vmem:[#allocation2 + $0x10] sm:$0xf] %vm402, %v1347
        %1364 = vst.msk [vmem:[#allocation2 + $0x2c] sm:$0xf] %vm402, %v1348
        %1365 = vst.msk [vmem:[#allocation2 + $0x30] sm:$0xf] %vm402, %v1349
        %1366 = vst.msk [vmem:[#allocation2 + $0x4c] sm:$0xf] %vm402, %v1350
        %1367 = vst.msk [vmem:[#allocation2 + $0x50] sm:$0xf] %vm402, %v1351
        %1368 = vst.msk [vmem:[#allocation2 + $0x6c] sm:$0xf] %vm402, %v1352
        %1369 = vst.msk [vmem:[#allocation2 + $0x70] sm:$0xf] %vm402, %v1353
        %1370 = vst.msk [vmem:[#allocation2 + $0x8c] sm:$0xf] %vm402, %v1354
        %1371 = vst.msk [vmem:[#allocation2 + $0x90] sm:$0xf] %vm402, %v1355
        %1372 = vst.msk [vmem:[#allocation2 + $0xac] sm:$0xf] %vm402, %v1356
        %1373 = vst.msk [vmem:[#allocation2 + $0xb0] sm:$0xf] %vm402, %v1357
        %1374 = vst.msk [vmem:[#allocation2 + $0xcc] sm:$0xf] %vm402, %v1358
        %1375 = vst.msk [vmem:[#allocation2 + $0xd0] sm:$0xf] %vm402, %v1359
        %1376 = vst.msk [vmem:[#allocation2 + $0xec] sm:$0xf] %vm402, %v1360
        %1377 = vst.msk [vmem:[#allocation2 + $0xf0] sm:$0xf] %vm402, %v1361
        %v1378 = vld [vmem:[#allocation2 + $0x8] sm:$0xe]
        %v1379 = vld [vmem:[#allocation2 + $0xc] sm:$0xf]
        %v1380 = vld [vmem:[#allocation2 + $0x10] sm:$0x1]
        %v1381 = vld [vmem:[#allocation2 + $0x28] sm:$0xe]
        %v1382 = vld [vmem:[#allocation2 + $0x2c] sm:$0xf]
        %v1383 = vld [vmem:[#allocation2 + $0x30] sm:$0x1]
        %v1384 = vld [vmem:[#allocation2 + $0x48] sm:$0xe]
        %v1385 = vld [vmem:[#allocation2 + $0x4c] sm:$0xf]
        %v1386 = vld [vmem:[#allocation2 + $0x50] sm:$0x1]
        %v1387 = vld [vmem:[#allocation2 + $0x68] sm:$0xe]
        %v1388 = vld [vmem:[#allocation2 + $0x6c] sm:$0xf]
        %v1389 = vld [vmem:[#allocation2 + $0x70] sm:$0x1]
        %v1390 = vld [vmem:[#allocation2 + $0x88] sm:$0xe]
        %v1391 = vld [vmem:[#allocation2 + $0x8c] sm:$0xf]
        %v1392 = vld [vmem:[#allocation2 + $0x90] sm:$0x1]
        %v1393 = vld [vmem:[#allocation2 + $0xa8] sm:$0xe]
        %v1394 = vld [vmem:[#allocation2 + $0xac] sm:$0xf]
        %v1395 = vld [vmem:[#allocation2 + $0xb0] sm:$0x1]
        %v1396 = vld [vmem:[#allocation2 + $0xc8] sm:$0xe]
        %v1397 = vld [vmem:[#allocation2 + $0xcc] sm:$0xf]
        %v1398 = vld [vmem:[#allocation2 + $0xd0] sm:$0x1]
        %v1399 = vld [vmem:[#allocation2 + $0xe8] sm:$0xe]
        %v1400 = vld [vmem:[#allocation2 + $0xec] sm:$0xf]
        %v1401 = vld [vmem:[#allocation2 + $0xf0] sm:$0x1]
        %v1402 = vld [vmem:[#allocation3] sm:$0xff]
        %v1403 = vld [vmem:[#allocation3 + $0x8] sm:$0xff]
        %v1404 = vld [vmem:[#allocation3 + $0x10] sm:$0xff]
        %v1405 = vld [vmem:[#allocation3 + $0x18] sm:$0xff]
        %v1406 = vld [vmem:[#allocation3 + $0x20] sm:$0xff]
        %v1407 = vld [vmem:[#allocation3 + $0x28] sm:$0xff]
        %v1408 = vld [vmem:[#allocation3 + $0x30] sm:$0xff]
        %v1409 = vld [vmem:[#allocation3 + $0x38] sm:$0xff]
        %v1410 = vld [vmem:[#allocation3 + $0x40] sm:$0xff]
        %v1411 = vld [vmem:[#allocation3 + $0x48] sm:$0xff]
        %v1412 = vld [vmem:[#allocation3 + $0x50] sm:$0xff]
        %v1413 = vld [vmem:[#allocation3 + $0x58] sm:$0xff]
        %v1414 = vld [vmem:[#allocation3 + $0x60] sm:$0xff]
        %v1415 = vld [vmem:[#allocation3 + $0x68] sm:$0xff]
        %v1416 = vld [vmem:[#allocation3 + $0x70] sm:$0xff]
        %v1417 = vld [vmem:[#allocation3 + $0x78] sm:$0xff]
        %v1442 = vrot.slane %v1378, 5
        %v1443 = vrot.slane %v1442, 4
        %v1444 = vrot.slane %v1379, 5
        %v1445 = vsel %vm733, %v1443, %v1444
        %v1446 = vrot.slane %v1444, 4
        %v1447 = vrot.slane %v1380, 5
        %v1448 = vsel %vm733, %v1446, %v1447
        %v1449 = vrot.slane %v1381, 5
        %v1450 = vrot.slane %v1449, 4
        %v1451 = vrot.slane %v1382, 5
        %v1452 = vsel %vm733, %v1450, %v1451
        %v1453 = vrot.slane %v1451, 4
        %v1454 = vrot.slane %v1383, 5
        %v1455 = vsel %vm733, %v1453, %v1454
        %v1456 = vrot.slane %v1384, 5
        %v1457 = vrot.slane %v1456, 4
        %v1458 = vrot.slane %v1385, 5
        %v1459 = vsel %vm733, %v1457, %v1458
        %v1460 = vrot.slane %v1458, 4
        %v1461 = vrot.slane %v1386, 5
        %v1462 = vsel %vm733, %v1460, %v1461
        %v1463 = vrot.slane %v1387, 5
        %v1464 = vrot.slane %v1463, 4
        %v1465 = vrot.slane %v1388, 5
        %v1466 = vsel %vm733, %v1464, %v1465
        %v1467 = vrot.slane %v1465, 4
        %v1468 = vrot.slane %v1389, 5
        %v1469 = vsel %vm733, %v1467, %v1468
        %v1470 = vrot.slane %v1390, 5
        %v1471 = vrot.slane %v1470, 4
        %v1472 = vrot.slane %v1391, 5
        %v1473 = vsel %vm733, %v1471, %v1472
        %v1474 = vrot.slane %v1472, 4
        %v1475 = vrot.slane %v1392, 5
        %v1476 = vsel %vm733, %v1474, %v1475
        %v1477 = vrot.slane %v1393, 5
        %v1478 = vrot.slane %v1477, 4
        %v1479 = vrot.slane %v1394, 5
        %v1480 = vsel %vm733, %v1478, %v1479
        %v1481 = vrot.slane %v1479, 4
        %v1482 = vrot.slane %v1395, 5
        %v1483 = vsel %vm733, %v1481, %v1482
        %v1484 = vrot.slane %v1396, 5
        %v1485 = vrot.slane %v1484, 4
        %v1486 = vrot.slane %v1397, 5
        %v1487 = vsel %vm733, %v1485, %v1486
        %v1488 = vrot.slane %v1486, 4
        %v1489 = vrot.slane %v1398, 5
        %v1490 = vsel %vm733, %v1488, %v1489
        %v1491 = vrot.slane %v1399, 5
        %v1492 = vrot.slane %v1491, 4
        %v1493 = vrot.slane %v1400, 5
        %v1494 = vsel %vm733, %v1492, %v1493
        %v1495 = vrot.slane %v1493, 4
        %v1496 = vrot.slane %v1401, 5
        %v1497 = vsel %vm733, %v1495, %v1496
        %s1498 = scalar_lea.vmem %s3, 6
        %v1499 = vld [vmem:[%s1498] sm:$0x3]
        %v1500 = vunpack.c.l.b16 %v1445
        %v1501 = vunpack.c.l.b16 %v1448
        %v1502 = vunpack.c.l.b16 %v1452
        %v1503 = vunpack.c.l.b16 %v1455
        %v1504 = vunpack.c.l.b16 %v1459
        %v1505 = vunpack.c.l.b16 %v1462
        %v1506 = vunpack.c.l.b16 %v1466
        %v1507 = vunpack.c.l.b16 %v1469
        %v1508 = vunpack.c.l.b16 %v1473
        %v1509 = vunpack.c.l.b16 %v1476
        %v1510 = vunpack.c.l.b16 %v1480
        %v1511 = vunpack.c.l.b16 %v1483
        %v1512 = vunpack.c.l.b16 %v1487
        %v1513 = vunpack.c.l.b16 %v1490
        %v1514 = vunpack.c.l.b16 %v1494
        %v1515 = vunpack.c.l.b16 %v1497
        %v1516 = vpack.c.b16 %v1501, %v1500
        %v1517 = vpack.c.b16 %v1503, %v1502
        %v1518 = vpack.c.b16 %v1505, %v1504
        %v1519 = vpack.c.b16 %v1507, %v1506
        %v1520 = vpack.c.b16 %v1509, %v1508
        %v1521 = vpack.c.b16 %v1511, %v1510
        %v1522 = vpack.c.b16 %v1513, %v1512
        %v1523 = vpack.c.b16 %v1515, %v1514
        %v1525 = vsel %vm516, %v1516, 0
        %v1528 = vsel %vm516, %v1517, 0
        %v1531 = vsel %vm516, %v1518, 0
        %v1534 = vsel %vm516, %v1519, 0
        %v1537 = vsel %vm516, %v1520, 0
        %v1540 = vsel %vm516, %v1521, 0
        %v1543 = vsel %vm516, %v1522, 0
        %v1546 = vsel %vm516, %v1523, 0
        %v1549 = vsel %vm541, %v1499, 0
        %1551 = vmatpush.bf16.msra.mxu0 0
        %1552 = vmatpush.bf16.msra.mxu0 0
        %1553 = vmatpush.bf16.msra.mxu0 0
        %1554 = vmatpush.bf16.msra.mxu0 0
        %1555 = vmatpush.bf16.msra.mxu0 0
        %1556 = vmatpush.bf16.msra.mxu0 0
        %1557 = vmatpush.bf16.msra.mxu0 0
        %1558 = vmatpush.bf16.msra.mxu0 %v1549
        %1559 = vmatmul.bf16.gmra.mxu0 %v1525
        %v1560 = vpop.f32.mrf.mxu0
        %v1561 = vadd.f32 0.0, %v1560
        %v1562 = vpop.f32.mrf.mxu0
        %v1563 = vadd.f32 0.0, %v1562
        %1564 = vmatmul.bf16.gmra.mxu0 %v1528
        %v1565 = vpop.f32.mrf.mxu0
        %v1566 = vadd.f32 0.0, %v1565
        %v1567 = vpop.f32.mrf.mxu0
        %v1568 = vadd.f32 0.0, %v1567
        %1569 = vmatmul.bf16.gmra.mxu0 %v1531
        %v1570 = vpop.f32.mrf.mxu0
        %v1571 = vadd.f32 0.0, %v1570
        %v1572 = vpop.f32.mrf.mxu0
        %v1573 = vadd.f32 0.0, %v1572
        %1574 = vmatmul.bf16.gmra.mxu0 %v1534
        %v1575 = vpop.f32.mrf.mxu0
        %v1576 = vadd.f32 0.0, %v1575
        %v1577 = vpop.f32.mrf.mxu0
        %v1578 = vadd.f32 0.0, %v1577
        %1579 = vmatmul.bf16.gmra.mxu0 %v1537
        %v1580 = vpop.f32.mrf.mxu0
        %v1581 = vadd.f32 0.0, %v1580
        %v1582 = vpop.f32.mrf.mxu0
        %v1583 = vadd.f32 0.0, %v1582
        %1584 = vmatmul.bf16.gmra.mxu0 %v1540
        %v1585 = vpop.f32.mrf.mxu0
        %v1586 = vadd.f32 0.0, %v1585
        %v1587 = vpop.f32.mrf.mxu0
        %v1588 = vadd.f32 0.0, %v1587
        %1589 = vmatmul.bf16.gmra.mxu0 %v1543
        %v1590 = vpop.f32.mrf.mxu0
        %v1591 = vadd.f32 0.0, %v1590
        %v1592 = vpop.f32.mrf.mxu0
        %v1593 = vadd.f32 0.0, %v1592
        %1594 = vmatmul.bf16.gmra.mxu0 %v1546
        %v1595 = vpop.f32.mrf.mxu0
        %v1596 = vadd.f32 0.0, %v1595
        %v1597 = vpop.f32.mrf.mxu0
        %v1598 = vadd.f32 0.0, %v1597
        %1599 = vdwg.mxu0
        %v1600 = vadd.f32 %v1402, %v1561
        %v1601 = vadd.f32 %v1403, %v1563
        %v1602 = vadd.f32 %v1404, %v1566
        %v1603 = vadd.f32 %v1405, %v1568
        %v1604 = vadd.f32 %v1406, %v1571
        %v1605 = vadd.f32 %v1407, %v1573
        %v1606 = vadd.f32 %v1408, %v1576
        %v1607 = vadd.f32 %v1409, %v1578
        %v1608 = vadd.f32 %v1410, %v1581
        %v1609 = vadd.f32 %v1411, %v1583
        %v1610 = vadd.f32 %v1412, %v1586
        %v1611 = vadd.f32 %v1413, %v1588
        %v1612 = vadd.f32 %v1414, %v1591
        %v1613 = vadd.f32 %v1415, %v1593
        %v1614 = vadd.f32 %v1416, %v1596
        %v1615 = vadd.f32 %v1417, %v1598
        %1616 = vst.msk [vmem:[#allocation3] sm:$0xff] %vm594, %v1600
        %1617 = vst.msk [vmem:[#allocation3 + $0x8] sm:$0xff] %vm594, %v1601
        %1618 = vst.msk [vmem:[#allocation3 + $0x10] sm:$0xff] %vm594, %v1602
        %1619 = vst.msk [vmem:[#allocation3 + $0x18] sm:$0xff] %vm594, %v1603
        %1620 = vst.msk [vmem:[#allocation3 + $0x20] sm:$0xff] %vm594, %v1604
        %1621 = vst.msk [vmem:[#allocation3 + $0x28] sm:$0xff] %vm594, %v1605
        %1622 = vst.msk [vmem:[#allocation3 + $0x30] sm:$0xff] %vm594, %v1606
        %1623 = vst.msk [vmem:[#allocation3 + $0x38] sm:$0xff] %vm594, %v1607
        %1624 = vst.msk [vmem:[#allocation3 + $0x40] sm:$0xff] %vm594, %v1608
        %1625 = vst.msk [vmem:[#allocation3 + $0x48] sm:$0xff] %vm594, %v1609
        %1626 = vst.msk [vmem:[#allocation3 + $0x50] sm:$0xff] %vm594, %v1610
        %1627 = vst.msk [vmem:[#allocation3 + $0x58] sm:$0xff] %vm594, %v1611
        %1628 = vst.msk [vmem:[#allocation3 + $0x60] sm:$0xff] %vm594, %v1612
        %1629 = vst.msk [vmem:[#allocation3 + $0x68] sm:$0xff] %vm594, %v1613
        %1630 = vst.msk [vmem:[#allocation3 + $0x70] sm:$0xff] %vm594, %v1614
        %1631 = vst.msk [vmem:[#allocation3 + $0x78] sm:$0xff] %vm594, %v1615
        %v1632 = vld [vmem:[#allocation3] sm:$0xff]
        %v1633 = vld [vmem:[#allocation3 + $0x8] sm:$0xff]
        %v1634 = vld [vmem:[#allocation3 + $0x10] sm:$0xff]
        %v1635 = vld [vmem:[#allocation3 + $0x18] sm:$0xff]
        %v1636 = vld [vmem:[#allocation3 + $0x20] sm:$0xff]
        %v1637 = vld [vmem:[#allocation3 + $0x28] sm:$0xff]
        %v1638 = vld [vmem:[#allocation3 + $0x30] sm:$0xff]
        %v1639 = vld [vmem:[#allocation3 + $0x38] sm:$0xff]
        %v1640 = vld [vmem:[#allocation3 + $0x40] sm:$0xff]
        %v1641 = vld [vmem:[#allocation3 + $0x48] sm:$0xff]
        %v1642 = vld [vmem:[#allocation3 + $0x50] sm:$0xff]
        %v1643 = vld [vmem:[#allocation3 + $0x58] sm:$0xff]
        %v1644 = vld [vmem:[#allocation3 + $0x60] sm:$0xff]
        %v1645 = vld [vmem:[#allocation3 + $0x68] sm:$0xff]
        %v1646 = vld [vmem:[#allocation3 + $0x70] sm:$0xff]
        %v1647 = vld [vmem:[#allocation3 + $0x78] sm:$0xff]
        %s1648 = scalar_lea.vmem %s3, 8
        %v1649 = vld [vmem:[%s1648] sm:$0x3]
        %v1666 = vunpack.c.l.b16 %v1346
        %v1667 = vunpack.c.l.b16 %v1347
        %v1668 = vunpack.c.l.b16 %v1348
        %v1669 = vunpack.c.l.b16 %v1349
        %v1670 = vunpack.c.l.b16 %v1350
        %v1671 = vunpack.c.l.b16 %v1351
        %v1672 = vunpack.c.l.b16 %v1352
        %v1673 = vunpack.c.l.b16 %v1353
        %v1674 = vunpack.c.l.b16 %v1354
        %v1675 = vunpack.c.l.b16 %v1355
        %v1676 = vunpack.c.l.b16 %v1356
        %v1677 = vunpack.c.l.b16 %v1357
        %v1678 = vunpack.c.l.b16 %v1358
        %v1679 = vunpack.c.l.b16 %v1359
        %v1680 = vunpack.c.l.b16 %v1360
        %v1681 = vunpack.c.l.b16 %v1361
        %v1682 = vpack.c.b16 %v1667, %v1666
        %v1683 = vpack.c.b16 %v1669, %v1668
        %v1684 = vpack.c.b16 %v1671, %v1670
        %v1685 = vpack.c.b16 %v1673, %v1672
        %v1686 = vpack.c.b16 %v1675, %v1674
        %v1687 = vpack.c.b16 %v1677, %v1676
        %v1688 = vpack.c.b16 %v1679, %v1678
        %v1689 = vpack.c.b16 %v1681, %v1680
        %v1691 = vsel %vm516, %v1682, 0
        %v1694 = vsel %vm516, %v1683, 0
        %v1697 = vsel %vm516, %v1684, 0
        %v1700 = vsel %vm516, %v1685, 0
        %v1703 = vsel %vm516, %v1686, 0
        %v1706 = vsel %vm516, %v1687, 0
        %v1709 = vsel %vm516, %v1688, 0
        %v1712 = vsel %vm516, %v1689, 0
        %v1715 = vsel %vm541, %v1649, 0
        %1717 = vmatpush.bf16.msra.mxu0 0
        %1718 = vmatpush.bf16.msra.mxu0 0
        %1719 = vmatpush.bf16.msra.mxu0 0
        %1720 = vmatpush.bf16.msra.mxu0 0
        %1721 = vmatpush.bf16.msra.mxu0 0
        %1722 = vmatpush.bf16.msra.mxu0 0
        %1723 = vmatpush.bf16.msra.mxu0 0
        %1724 = vmatpush.bf16.msra.mxu0 %v1715
        %1725 = vmatmul.bf16.gmra.mxu0 %v1691
        %v1726 = vpop.f32.mrf.mxu0
        %v1727 = vadd.f32 0.0, %v1726
        %v1728 = vpop.f32.mrf.mxu0
        %v1729 = vadd.f32 0.0, %v1728
        %1730 = vmatmul.bf16.gmra.mxu0 %v1694
        %v1731 = vpop.f32.mrf.mxu0
        %v1732 = vadd.f32 0.0, %v1731
        %v1733 = vpop.f32.mrf.mxu0
        %v1734 = vadd.f32 0.0, %v1733
        %1735 = vmatmul.bf16.gmra.mxu0 %v1697
        %v1736 = vpop.f32.mrf.mxu0
        %v1737 = vadd.f32 0.0, %v1736
        %v1738 = vpop.f32.mrf.mxu0
        %v1739 = vadd.f32 0.0, %v1738
        %1740 = vmatmul.bf16.gmra.mxu0 %v1700
        %v1741 = vpop.f32.mrf.mxu0
        %v1742 = vadd.f32 0.0, %v1741
        %v1743 = vpop.f32.mrf.mxu0
        %v1744 = vadd.f32 0.0, %v1743
        %1745 = vmatmul.bf16.gmra.mxu0 %v1703
        %v1746 = vpop.f32.mrf.mxu0
        %v1747 = vadd.f32 0.0, %v1746
        %v1748 = vpop.f32.mrf.mxu0
        %v1749 = vadd.f32 0.0, %v1748
        %1750 = vmatmul.bf16.gmra.mxu0 %v1706
        %v1751 = vpop.f32.mrf.mxu0
        %v1752 = vadd.f32 0.0, %v1751
        %v1753 = vpop.f32.mrf.mxu0
        %v1754 = vadd.f32 0.0, %v1753
        %1755 = vmatmul.bf16.gmra.mxu0 %v1709
        %v1756 = vpop.f32.mrf.mxu0
        %v1757 = vadd.f32 0.0, %v1756
        %v1758 = vpop.f32.mrf.mxu0
        %v1759 = vadd.f32 0.0, %v1758
        %1760 = vmatmul.bf16.gmra.mxu0 %v1712
        %v1761 = vpop.f32.mrf.mxu0
        %v1762 = vadd.f32 0.0, %v1761
        %v1763 = vpop.f32.mrf.mxu0
        %v1764 = vadd.f32 0.0, %v1763
        %1765 = vdwg.mxu0
        %v1766 = vadd.f32 %v1632, %v1727
        %v1767 = vadd.f32 %v1633, %v1729
        %v1768 = vadd.f32 %v1634, %v1732
        %v1769 = vadd.f32 %v1635, %v1734
        %v1770 = vadd.f32 %v1636, %v1737
        %v1771 = vadd.f32 %v1637, %v1739
        %v1772 = vadd.f32 %v1638, %v1742
        %v1773 = vadd.f32 %v1639, %v1744
        %v1774 = vadd.f32 %v1640, %v1747
        %v1775 = vadd.f32 %v1641, %v1749
        %v1776 = vadd.f32 %v1642, %v1752
        %v1777 = vadd.f32 %v1643, %v1754
        %v1778 = vadd.f32 %v1644, %v1757
        %v1779 = vadd.f32 %v1645, %v1759
        %v1780 = vadd.f32 %v1646, %v1762
        %v1781 = vadd.f32 %v1647, %v1764
        %1782 = vst.msk [vmem:[#allocation3] sm:$0xff] %vm594, %v1766
        %1783 = vst.msk [vmem:[#allocation3 + $0x8] sm:$0xff] %vm594, %v1767
        %1784 = vst.msk [vmem:[#allocation3 + $0x10] sm:$0xff] %vm594, %v1768
        %1785 = vst.msk [vmem:[#allocation3 + $0x18] sm:$0xff] %vm594, %v1769
        %1786 = vst.msk [vmem:[#allocation3 + $0x20] sm:$0xff] %vm594, %v1770
        %1787 = vst.msk [vmem:[#allocation3 + $0x28] sm:$0xff] %vm594, %v1771
        %1788 = vst.msk [vmem:[#allocation3 + $0x30] sm:$0xff] %vm594, %v1772
        %1789 = vst.msk [vmem:[#allocation3 + $0x38] sm:$0xff] %vm594, %v1773
        %1790 = vst.msk [vmem:[#allocation3 + $0x40] sm:$0xff] %vm594, %v1774
        %1791 = vst.msk [vmem:[#allocation3 + $0x48] sm:$0xff] %vm594, %v1775
        %1792 = vst.msk [vmem:[#allocation3 + $0x50] sm:$0xff] %vm594, %v1776
        %1793 = vst.msk [vmem:[#allocation3 + $0x58] sm:$0xff] %vm594, %v1777
        %1794 = vst.msk [vmem:[#allocation3 + $0x60] sm:$0xff] %vm594, %v1778
        %1795 = vst.msk [vmem:[#allocation3 + $0x68] sm:$0xff] %vm594, %v1779
        %1796 = vst.msk [vmem:[#allocation3 + $0x70] sm:$0xff] %vm594, %v1780
        %1797 = vst.msk [vmem:[#allocation3 + $0x78] sm:$0xff] %vm594, %v1781
        %v1798 = vld [vmem:[#allocation2 + $0xc] sm:$0x8]
        %v1799 = vld [vmem:[#allocation2 + $0x10] sm:$0xf]
        %v1800 = vld [vmem:[#allocation2 + $0x14] sm:$0x7]
        %v1801 = vld [vmem:[#allocation2 + $0x2c] sm:$0x8]
        %v1802 = vld [vmem:[#allocation2 + $0x30] sm:$0xf]
        %v1803 = vld [vmem:[#allocation2 + $0x34] sm:$0x7]
        %v1804 = vld [vmem:[#allocation2 + $0x4c] sm:$0x8]
        %v1805 = vld [vmem:[#allocation2 + $0x50] sm:$0xf]
        %v1806 = vld [vmem:[#allocation2 + $0x54] sm:$0x7]
        %v1807 = vld [vmem:[#allocation2 + $0x6c] sm:$0x8]
        %v1808 = vld [vmem:[#allocation2 + $0x70] sm:$0xf]
        %v1809 = vld [vmem:[#allocation2 + $0x74] sm:$0x7]
        %v1810 = vld [vmem:[#allocation2 + $0x8c] sm:$0x8]
        %v1811 = vld [vmem:[#allocation2 + $0x90] sm:$0xf]
        %v1812 = vld [vmem:[#allocation2 + $0x94] sm:$0x7]
        %v1813 = vld [vmem:[#allocation2 + $0xac] sm:$0x8]
        %v1814 = vld [vmem:[#allocation2 + $0xb0] sm:$0xf]
        %v1815 = vld [vmem:[#allocation2 + $0xb4] sm:$0x7]
        %v1816 = vld [vmem:[#allocation2 + $0xcc] sm:$0x8]
        %v1817 = vld [vmem:[#allocation2 + $0xd0] sm:$0xf]
        %v1818 = vld [vmem:[#allocation2 + $0xd4] sm:$0x7]
        %v1819 = vld [vmem:[#allocation2 + $0xec] sm:$0x8]
        %v1820 = vld [vmem:[#allocation2 + $0xf0] sm:$0xf]
        %v1821 = vld [vmem:[#allocation2 + $0xf4] sm:$0x7]
        %v1822 = vld [vmem:[#allocation3] sm:$0xff]
        %v1823 = vld [vmem:[#allocation3 + $0x8] sm:$0xff]
        %v1824 = vld [vmem:[#allocation3 + $0x10] sm:$0xff]
        %v1825 = vld [vmem:[#allocation3 + $0x18] sm:$0xff]
        %v1826 = vld [vmem:[#allocation3 + $0x20] sm:$0xff]
        %v1827 = vld [vmem:[#allocation3 + $0x28] sm:$0xff]
        %v1828 = vld [vmem:[#allocation3 + $0x30] sm:$0xff]
        %v1829 = vld [vmem:[#allocation3 + $0x38] sm:$0xff]
        %v1830 = vld [vmem:[#allocation3 + $0x40] sm:$0xff]
        %v1831 = vld [vmem:[#allocation3 + $0x48] sm:$0xff]
        %v1832 = vld [vmem:[#allocation3 + $0x50] sm:$0xff]
        %v1833 = vld [vmem:[#allocation3 + $0x58] sm:$0xff]
        %v1834 = vld [vmem:[#allocation3 + $0x60] sm:$0xff]
        %v1835 = vld [vmem:[#allocation3 + $0x68] sm:$0xff]
        %v1836 = vld [vmem:[#allocation3 + $0x70] sm:$0xff]
        %v1837 = vld [vmem:[#allocation3 + $0x78] sm:$0xff]
        %v1862 = vrot.slane %v1798, 7
        %v1863 = vrot.slane %v1862, 4
        %v1864 = vrot.slane %v1799, 7
        %v1865 = vsel %vm1155, %v1863, %v1864
        %v1866 = vrot.slane %v1864, 4
        %v1867 = vrot.slane %v1800, 7
        %v1868 = vsel %vm1155, %v1866, %v1867
        %v1869 = vrot.slane %v1801, 7
        %v1870 = vrot.slane %v1869, 4
        %v1871 = vrot.slane %v1802, 7
        %v1872 = vsel %vm1155, %v1870, %v1871
        %v1873 = vrot.slane %v1871, 4
        %v1874 = vrot.slane %v1803, 7
        %v1875 = vsel %vm1155, %v1873, %v1874
        %v1876 = vrot.slane %v1804, 7
        %v1877 = vrot.slane %v1876, 4
        %v1878 = vrot.slane %v1805, 7
        %v1879 = vsel %vm1155, %v1877, %v1878
        %v1880 = vrot.slane %v1878, 4
        %v1881 = vrot.slane %v1806, 7
        %v1882 = vsel %vm1155, %v1880, %v1881
        %v1883 = vrot.slane %v1807, 7
        %v1884 = vrot.slane %v1883, 4
        %v1885 = vrot.slane %v1808, 7
        %v1886 = vsel %vm1155, %v1884, %v1885
        %v1887 = vrot.slane %v1885, 4
        %v1888 = vrot.slane %v1809, 7
        %v1889 = vsel %vm1155, %v1887, %v1888
        %v1890 = vrot.slane %v1810, 7
        %v1891 = vrot.slane %v1890, 4
        %v1892 = vrot.slane %v1811, 7
        %v1893 = vsel %vm1155, %v1891, %v1892
        %v1894 = vrot.slane %v1892, 4
        %v1895 = vrot.slane %v1812, 7
        %v1896 = vsel %vm1155, %v1894, %v1895
        %v1897 = vrot.slane %v1813, 7
        %v1898 = vrot.slane %v1897, 4
        %v1899 = vrot.slane %v1814, 7
        %v1900 = vsel %vm1155, %v1898, %v1899
        %v1901 = vrot.slane %v1899, 4
        %v1902 = vrot.slane %v1815, 7
        %v1903 = vsel %vm1155, %v1901, %v1902
        %v1904 = vrot.slane %v1816, 7
        %v1905 = vrot.slane %v1904, 4
        %v1906 = vrot.slane %v1817, 7
        %v1907 = vsel %vm1155, %v1905, %v1906
        %v1908 = vrot.slane %v1906, 4
        %v1909 = vrot.slane %v1818, 7
        %v1910 = vsel %vm1155, %v1908, %v1909
        %v1911 = vrot.slane %v1819, 7
        %v1912 = vrot.slane %v1911, 4
        %v1913 = vrot.slane %v1820, 7
        %v1914 = vsel %vm1155, %v1912, %v1913
        %v1915 = vrot.slane %v1913, 4
        %v1916 = vrot.slane %v1821, 7
        %v1917 = vsel %vm1155, %v1915, %v1916
        %s1918 = scalar_lea.vmem %s3, 10
        %v1919 = vld [vmem:[%s1918] sm:$0x3]
        %v1920 = vunpack.c.l.b16 %v1865
        %v1921 = vunpack.c.l.b16 %v1868
        %v1922 = vunpack.c.l.b16 %v1872
        %v1923 = vunpack.c.l.b16 %v1875
        %v1924 = vunpack.c.l.b16 %v1879
        %v1925 = vunpack.c.l.b16 %v1882
        %v1926 = vunpack.c.l.b16 %v1886
        %v1927 = vunpack.c.l.b16 %v1889
        %v1928 = vunpack.c.l.b16 %v1893
        %v1929 = vunpack.c.l.b16 %v1896
        %v1930 = vunpack.c.l.b16 %v1900
        %v1931 = vunpack.c.l.b16 %v1903
        %v1932 = vunpack.c.l.b16 %v1907
        %v1933 = vunpack.c.l.b16 %v1910
        %v1934 = vunpack.c.l.b16 %v1914
        %v1935 = vunpack.c.l.b16 %v1917
        %v1936 = vpack.c.b16 %v1921, %v1920
        %v1937 = vpack.c.b16 %v1923, %v1922
        %v1938 = vpack.c.b16 %v1925, %v1924
        %v1939 = vpack.c.b16 %v1927, %v1926
        %v1940 = vpack.c.b16 %v1929, %v1928
        %v1941 = vpack.c.b16 %v1931, %v1930
        %v1942 = vpack.c.b16 %v1933, %v1932
        %v1943 = vpack.c.b16 %v1935, %v1934
        %v1945 = vsel %vm516, %v1936, 0
        %v1948 = vsel %vm516, %v1937, 0
        %v1951 = vsel %vm516, %v1938, 0
        %v1954 = vsel %vm516, %v1939, 0
        %v1957 = vsel %vm516, %v1940, 0
        %v1960 = vsel %vm516, %v1941, 0
        %v1963 = vsel %vm516, %v1942, 0
        %v1966 = vsel %vm516, %v1943, 0
        %v1969 = vsel %vm541, %v1919, 0
        %1971 = vmatpush.bf16.msra.mxu0 0
        %1972 = vmatpush.bf16.msra.mxu0 0
        %1973 = vmatpush.bf16.msra.mxu0 0
        %1974 = vmatpush.bf16.msra.mxu0 0
        %1975 = vmatpush.bf16.msra.mxu0 0
        %1976 = vmatpush.bf16.msra.mxu0 0
        %1977 = vmatpush.bf16.msra.mxu0 0
        %1978 = vmatpush.bf16.msra.mxu0 %v1969
        %1979 = vmatmul.bf16.gmra.mxu0 %v1945
        %v1980 = vpop.f32.mrf.mxu0
        %v1981 = vadd.f32 0.0, %v1980
        %v1982 = vpop.f32.mrf.mxu0
        %v1983 = vadd.f32 0.0, %v1982
        %1984 = vmatmul.bf16.gmra.mxu0 %v1948
        %v1985 = vpop.f32.mrf.mxu0
        %v1986 = vadd.f32 0.0, %v1985
        %v1987 = vpop.f32.mrf.mxu0
        %v1988 = vadd.f32 0.0, %v1987
        %1989 = vmatmul.bf16.gmra.mxu0 %v1951
        %v1990 = vpop.f32.mrf.mxu0
        %v1991 = vadd.f32 0.0, %v1990
        %v1992 = vpop.f32.mrf.mxu0
        %v1993 = vadd.f32 0.0, %v1992
        %1994 = vmatmul.bf16.gmra.mxu0 %v1954
        %v1995 = vpop.f32.mrf.mxu0
        %v1996 = vadd.f32 0.0, %v1995
        %v1997 = vpop.f32.mrf.mxu0
        %v1998 = vadd.f32 0.0, %v1997
        %1999 = vmatmul.bf16.gmra.mxu0 %v1957
        %v2000 = vpop.f32.mrf.mxu0
        %v2001 = vadd.f32 0.0, %v2000
        %v2002 = vpop.f32.mrf.mxu0
        %v2003 = vadd.f32 0.0, %v2002
        %2004 = vmatmul.bf16.gmra.mxu0 %v1960
        %v2005 = vpop.f32.mrf.mxu0
        %v2006 = vadd.f32 0.0, %v2005
        %v2007 = vpop.f32.mrf.mxu0
        %v2008 = vadd.f32 0.0, %v2007
        %2009 = vmatmul.bf16.gmra.mxu0 %v1963
        %v2010 = vpop.f32.mrf.mxu0
        %v2011 = vadd.f32 0.0, %v2010
        %v2012 = vpop.f32.mrf.mxu0
        %v2013 = vadd.f32 0.0, %v2012
        %2014 = vmatmul.bf16.gmra.mxu0 %v1966
        %v2015 = vpop.f32.mrf.mxu0
        %v2016 = vadd.f32 0.0, %v2015
        %v2017 = vpop.f32.mrf.mxu0
        %v2018 = vadd.f32 0.0, %v2017
        %2019 = vdwg.mxu0
        %v2020 = vadd.f32 %v1822, %v1981
        %v2021 = vadd.f32 %v1823, %v1983
        %v2022 = vadd.f32 %v1824, %v1986
        %v2023 = vadd.f32 %v1825, %v1988
        %v2024 = vadd.f32 %v1826, %v1991
        %v2025 = vadd.f32 %v1827, %v1993
        %v2026 = vadd.f32 %v1828, %v1996
        %v2027 = vadd.f32 %v1829, %v1998
        %v2028 = vadd.f32 %v1830, %v2001
        %v2029 = vadd.f32 %v1831, %v2003
        %v2030 = vadd.f32 %v1832, %v2006
        %v2031 = vadd.f32 %v1833, %v2008
        %v2032 = vadd.f32 %v1834, %v2011
        %v2033 = vadd.f32 %v1835, %v2013
        %v2034 = vadd.f32 %v1836, %v2016
        %v2035 = vadd.f32 %v1837, %v2018
        %2036 = vst.msk [vmem:[#allocation3] sm:$0xff] %vm594, %v2020
        %2037 = vst.msk [vmem:[#allocation3 + $0x8] sm:$0xff] %vm594, %v2021
        %2038 = vst.msk [vmem:[#allocation3 + $0x10] sm:$0xff] %vm594, %v2022
        %2039 = vst.msk [vmem:[#allocation3 + $0x18] sm:$0xff] %vm594, %v2023
        %2040 = vst.msk [vmem:[#allocation3 + $0x20] sm:$0xff] %vm594, %v2024
        %2041 = vst.msk [vmem:[#allocation3 + $0x28] sm:$0xff] %vm594, %v2025
        %2042 = vst.msk [vmem:[#allocation3 + $0x30] sm:$0xff] %vm594, %v2026
        %2043 = vst.msk [vmem:[#allocation3 + $0x38] sm:$0xff] %vm594, %v2027
        %2044 = vst.msk [vmem:[#allocation3 + $0x40] sm:$0xff] %vm594, %v2028
        %2045 = vst.msk [vmem:[#allocation3 + $0x48] sm:$0xff] %vm594, %v2029
        %2046 = vst.msk [vmem:[#allocation3 + $0x50] sm:$0xff] %vm594, %v2030
        %2047 = vst.msk [vmem:[#allocation3 + $0x58] sm:$0xff] %vm594, %v2031
        %2048 = vst.msk [vmem:[#allocation3 + $0x60] sm:$0xff] %vm594, %v2032
        %2049 = vst.msk [vmem:[#allocation3 + $0x68] sm:$0xff] %vm594, %v2033
        %2050 = vst.msk [vmem:[#allocation3 + $0x70] sm:$0xff] %vm594, %v2034
        %2051 = vst.msk [vmem:[#allocation3 + $0x78] sm:$0xff] %vm594, %v2035
        %s2052 = sadd.s32 %s401, 24
        %s2053 = smul.u32 %s2052, 2
        %s2054 = smul.addr %s2053, 4
        %s2055 = scalar_lea.vmem %s398, %s2054
        %v2056 = vld [vmem:[%s2055] sm:$0xf]
        %v2057 = vld [vmem:[%s2055 + $0x4] sm:$0xf]
        %v2058 = vld [vmem:[%s2055 + $0x8] sm:$0xf]
        %v2059 = vld [vmem:[%s2055 + $0xc] sm:$0xf]
        %v2060 = vld [vmem:[%s2055 + $0x10] sm:$0xf]
        %v2061 = vld [vmem:[%s2055 + $0x14] sm:$0xf]
        %v2062 = vld [vmem:[%s2055 + $0x18] sm:$0xf]
        %v2063 = vld [vmem:[%s2055 + $0x1c] sm:$0xf]
        %v2064 = vld [vmem:[%s2055 + $0x20] sm:$0xf]
        %v2065 = vld [vmem:[%s2055 + $0x24] sm:$0xf]
        %v2066 = vld [vmem:[%s2055 + $0x28] sm:$0xf]
        %v2067 = vld [vmem:[%s2055 + $0x2c] sm:$0xf]
        %v2068 = vld [vmem:[%s2055 + $0x30] sm:$0xf]
        %v2069 = vld [vmem:[%s2055 + $0x34] sm:$0xf]
        %v2070 = vld [vmem:[%s2055 + $0x38] sm:$0xf]
        %v2071 = vld [vmem:[%s2055 + $0x3c] sm:$0xf]
        %2072 = vst.msk [vmem:[#allocation2 + $0xc] sm:$0xf] %vm402, %v2056
        %2073 = vst.msk [vmem:[#allocation2 + $0x10] sm:$0xf] %vm402, %v2057
        %2074 = vst.msk [vmem:[#allocation2 + $0x2c] sm:$0xf] %vm402, %v2058
        %2075 = vst.msk [vmem:[#allocation2 + $0x30] sm:$0xf] %vm402, %v2059
        %2076 = vst.msk [vmem:[#allocation2 + $0x4c] sm:$0xf] %vm402, %v2060
        %2077 = vst.msk [vmem:[#allocation2 + $0x50] sm:$0xf] %vm402, %v2061
        %2078 = vst.msk [vmem:[#allocation2 + $0x6c] sm:$0xf] %vm402, %v2062
        %2079 = vst.msk [vmem:[#allocation2 + $0x70] sm:$0xf] %vm402, %v2063
        %2080 = vst.msk [vmem:[#allocation2 + $0x8c] sm:$0xf] %vm402, %v2064
        %2081 = vst.msk [vmem:[#allocation2 + $0x90] sm:$0xf] %vm402, %v2065
        %2082 = vst.msk [vmem:[#allocation2 + $0xac] sm:$0xf] %vm402, %v2066
        %2083 = vst.msk [vmem:[#allocation2 + $0xb0] sm:$0xf] %vm402, %v2067
        %2084 = vst.msk [vmem:[#allocation2 + $0xcc] sm:$0xf] %vm402, %v2068
        %2085 = vst.msk [vmem:[#allocation2 + $0xd0] sm:$0xf] %vm402, %v2069
        %2086 = vst.msk [vmem:[#allocation2 + $0xec] sm:$0xf] %vm402, %v2070
        %2087 = vst.msk [vmem:[#allocation2 + $0xf0] sm:$0xf] %vm402, %v2071
        %v2088 = vld [vmem:[#allocation2 + $0x8] sm:$0xe]
        %v2089 = vld [vmem:[#allocation2 + $0xc] sm:$0xf]
        %v2090 = vld [vmem:[#allocation2 + $0x10] sm:$0x1]
        %v2091 = vld [vmem:[#allocation2 + $0x28] sm:$0xe]
        %v2092 = vld [vmem:[#allocation2 + $0x2c] sm:$0xf]
        %v2093 = vld [vmem:[#allocation2 + $0x30] sm:$0x1]
        %v2094 = vld [vmem:[#allocation2 + $0x48] sm:$0xe]
        %v2095 = vld [vmem:[#allocation2 + $0x4c] sm:$0xf]
        %v2096 = vld [vmem:[#allocation2 + $0x50] sm:$0x1]
        %v2097 = vld [vmem:[#allocation2 + $0x68] sm:$0xe]
        %v2098 = vld [vmem:[#allocation2 + $0x6c] sm:$0xf]
        %v2099 = vld [vmem:[#allocation2 + $0x70] sm:$0x1]
        %v2100 = vld [vmem:[#allocation2 + $0x88] sm:$0xe]
        %v2101 = vld [vmem:[#allocation2 + $0x8c] sm:$0xf]
        %v2102 = vld [vmem:[#allocation2 + $0x90] sm:$0x1]
        %v2103 = vld [vmem:[#allocation2 + $0xa8] sm:$0xe]
        %v2104 = vld [vmem:[#allocation2 + $0xac] sm:$0xf]
        %v2105 = vld [vmem:[#allocation2 + $0xb0] sm:$0x1]
        %v2106 = vld [vmem:[#allocation2 + $0xc8] sm:$0xe]
        %v2107 = vld [vmem:[#allocation2 + $0xcc] sm:$0xf]
        %v2108 = vld [vmem:[#allocation2 + $0xd0] sm:$0x1]
        %v2109 = vld [vmem:[#allocation2 + $0xe8] sm:$0xe]
        %v2110 = vld [vmem:[#allocation2 + $0xec] sm:$0xf]
        %v2111 = vld [vmem:[#allocation2 + $0xf0] sm:$0x1]
        %v2112 = vld [vmem:[#allocation3] sm:$0xff]
        %v2113 = vld [vmem:[#allocation3 + $0x8] sm:$0xff]
        %v2114 = vld [vmem:[#allocation3 + $0x10] sm:$0xff]
        %v2115 = vld [vmem:[#allocation3 + $0x18] sm:$0xff]
        %v2116 = vld [vmem:[#allocation3 + $0x20] sm:$0xff]
        %v2117 = vld [vmem:[#allocation3 + $0x28] sm:$0xff]
        %v2118 = vld [vmem:[#allocation3 + $0x30] sm:$0xff]
        %v2119 = vld [vmem:[#allocation3 + $0x38] sm:$0xff]
        %v2120 = vld [vmem:[#allocation3 + $0x40] sm:$0xff]
        %v2121 = vld [vmem:[#allocation3 + $0x48] sm:$0xff]
        %v2122 = vld [vmem:[#allocation3 + $0x50] sm:$0xff]
        %v2123 = vld [vmem:[#allocation3 + $0x58] sm:$0xff]
        %v2124 = vld [vmem:[#allocation3 + $0x60] sm:$0xff]
        %v2125 = vld [vmem:[#allocation3 + $0x68] sm:$0xff]
        %v2126 = vld [vmem:[#allocation3 + $0x70] sm:$0xff]
        %v2127 = vld [vmem:[#allocation3 + $0x78] sm:$0xff]
        %v2152 = vrot.slane %v2088, 5
        %v2153 = vrot.slane %v2152, 4
        %v2154 = vrot.slane %v2089, 5
        %v2155 = vsel %vm733, %v2153, %v2154
        %v2156 = vrot.slane %v2154, 4
        %v2157 = vrot.slane %v2090, 5
        %v2158 = vsel %vm733, %v2156, %v2157
        %v2159 = vrot.slane %v2091, 5
        %v2160 = vrot.slane %v2159, 4
        %v2161 = vrot.slane %v2092, 5
        %v2162 = vsel %vm733, %v2160, %v2161
        %v2163 = vrot.slane %v2161, 4
        %v2164 = vrot.slane %v2093, 5
        %v2165 = vsel %vm733, %v2163, %v2164
        %v2166 = vrot.slane %v2094, 5
        %v2167 = vrot.slane %v2166, 4
        %v2168 = vrot.slane %v2095, 5
        %v2169 = vsel %vm733, %v2167, %v2168
        %v2170 = vrot.slane %v2168, 4
        %v2171 = vrot.slane %v2096, 5
        %v2172 = vsel %vm733, %v2170, %v2171
        %v2173 = vrot.slane %v2097, 5
        %v2174 = vrot.slane %v2173, 4
        %v2175 = vrot.slane %v2098, 5
        %v2176 = vsel %vm733, %v2174, %v2175
        %v2177 = vrot.slane %v2175, 4
        %v2178 = vrot.slane %v2099, 5
        %v2179 = vsel %vm733, %v2177, %v2178
        %v2180 = vrot.slane %v2100, 5
        %v2181 = vrot.slane %v2180, 4
        %v2182 = vrot.slane %v2101, 5
        %v2183 = vsel %vm733, %v2181, %v2182
        %v2184 = vrot.slane %v2182, 4
        %v2185 = vrot.slane %v2102, 5
        %v2186 = vsel %vm733, %v2184, %v2185
        %v2187 = vrot.slane %v2103, 5
        %v2188 = vrot.slane %v2187, 4
        %v2189 = vrot.slane %v2104, 5
        %v2190 = vsel %vm733, %v2188, %v2189
        %v2191 = vrot.slane %v2189, 4
        %v2192 = vrot.slane %v2105, 5
        %v2193 = vsel %vm733, %v2191, %v2192
        %v2194 = vrot.slane %v2106, 5
        %v2195 = vrot.slane %v2194, 4
        %v2196 = vrot.slane %v2107, 5
        %v2197 = vsel %vm733, %v2195, %v2196
        %v2198 = vrot.slane %v2196, 4
        %v2199 = vrot.slane %v2108, 5
        %v2200 = vsel %vm733, %v2198, %v2199
        %v2201 = vrot.slane %v2109, 5
        %v2202 = vrot.slane %v2201, 4
        %v2203 = vrot.slane %v2110, 5
        %v2204 = vsel %vm733, %v2202, %v2203
        %v2205 = vrot.slane %v2203, 4
        %v2206 = vrot.slane %v2111, 5
        %v2207 = vsel %vm733, %v2205, %v2206
        %s2208 = scalar_lea.vmem %s3, 12
        %v2209 = vld [vmem:[%s2208] sm:$0x3]
        %v2210 = vunpack.c.l.b16 %v2155
        %v2211 = vunpack.c.l.b16 %v2158
        %v2212 = vunpack.c.l.b16 %v2162
        %v2213 = vunpack.c.l.b16 %v2165
        %v2214 = vunpack.c.l.b16 %v2169
        %v2215 = vunpack.c.l.b16 %v2172
        %v2216 = vunpack.c.l.b16 %v2176
        %v2217 = vunpack.c.l.b16 %v2179
        %v2218 = vunpack.c.l.b16 %v2183
        %v2219 = vunpack.c.l.b16 %v2186
        %v2220 = vunpack.c.l.b16 %v2190
        %v2221 = vunpack.c.l.b16 %v2193
        %v2222 = vunpack.c.l.b16 %v2197
        %v2223 = vunpack.c.l.b16 %v2200
        %v2224 = vunpack.c.l.b16 %v2204
        %v2225 = vunpack.c.l.b16 %v2207
        %v2226 = vpack.c.b16 %v2211, %v2210
        %v2227 = vpack.c.b16 %v2213, %v2212
        %v2228 = vpack.c.b16 %v2215, %v2214
        %v2229 = vpack.c.b16 %v2217, %v2216
        %v2230 = vpack.c.b16 %v2219, %v2218
        %v2231 = vpack.c.b16 %v2221, %v2220
        %v2232 = vpack.c.b16 %v2223, %v2222
        %v2233 = vpack.c.b16 %v2225, %v2224
        %v2235 = vsel %vm516, %v2226, 0
        %v2238 = vsel %vm516, %v2227, 0
        %v2241 = vsel %vm516, %v2228, 0
        %v2244 = vsel %vm516, %v2229, 0
        %v2247 = vsel %vm516, %v2230, 0
        %v2250 = vsel %vm516, %v2231, 0
        %v2253 = vsel %vm516, %v2232, 0
        %v2256 = vsel %vm516, %v2233, 0
        %v2259 = vsel %vm541, %v2209, 0
        %2261 = vmatpush.bf16.msra.mxu0 0
        %2262 = vmatpush.bf16.msra.mxu0 0
        %2263 = vmatpush.bf16.msra.mxu0 0
        %2264 = vmatpush.bf16.msra.mxu0 0
        %2265 = vmatpush.bf16.msra.mxu0 0
        %2266 = vmatpush.bf16.msra.mxu0 0
        %2267 = vmatpush.bf16.msra.mxu0 0
        %2268 = vmatpush.bf16.msra.mxu0 %v2259
        %2269 = vmatmul.bf16.gmra.mxu0 %v2235
        %v2270 = vpop.f32.mrf.mxu0
        %v2271 = vadd.f32 0.0, %v2270
        %v2272 = vpop.f32.mrf.mxu0
        %v2273 = vadd.f32 0.0, %v2272
        %2274 = vmatmul.bf16.gmra.mxu0 %v2238
        %v2275 = vpop.f32.mrf.mxu0
        %v2276 = vadd.f32 0.0, %v2275
        %v2277 = vpop.f32.mrf.mxu0
        %v2278 = vadd.f32 0.0, %v2277
        %2279 = vmatmul.bf16.gmra.mxu0 %v2241
        %v2280 = vpop.f32.mrf.mxu0
        %v2281 = vadd.f32 0.0, %v2280
        %v2282 = vpop.f32.mrf.mxu0
        %v2283 = vadd.f32 0.0, %v2282
        %2284 = vmatmul.bf16.gmra.mxu0 %v2244
        %v2285 = vpop.f32.mrf.mxu0
        %v2286 = vadd.f32 0.0, %v2285
        %v2287 = vpop.f32.mrf.mxu0
        %v2288 = vadd.f32 0.0, %v2287
        %2289 = vmatmul.bf16.gmra.mxu0 %v2247
        %v2290 = vpop.f32.mrf.mxu0
        %v2291 = vadd.f32 0.0, %v2290
        %v2292 = vpop.f32.mrf.mxu0
        %v2293 = vadd.f32 0.0, %v2292
        %2294 = vmatmul.bf16.gmra.mxu0 %v2250
        %v2295 = vpop.f32.mrf.mxu0
        %v2296 = vadd.f32 0.0, %v2295
        %v2297 = vpop.f32.mrf.mxu0
        %v2298 = vadd.f32 0.0, %v2297
        %2299 = vmatmul.bf16.gmra.mxu0 %v2253
        %v2300 = vpop.f32.mrf.mxu0
        %v2301 = vadd.f32 0.0, %v2300
        %v2302 = vpop.f32.mrf.mxu0
        %v2303 = vadd.f32 0.0, %v2302
        %2304 = vmatmul.bf16.gmra.mxu0 %v2256
        %v2305 = vpop.f32.mrf.mxu0
        %v2306 = vadd.f32 0.0, %v2305
        %v2307 = vpop.f32.mrf.mxu0
        %v2308 = vadd.f32 0.0, %v2307
        %2309 = vdwg.mxu0
        %v2310 = vadd.f32 %v2112, %v2271
        %v2311 = vadd.f32 %v2113, %v2273
        %v2312 = vadd.f32 %v2114, %v2276
        %v2313 = vadd.f32 %v2115, %v2278
        %v2314 = vadd.f32 %v2116, %v2281
        %v2315 = vadd.f32 %v2117, %v2283
        %v2316 = vadd.f32 %v2118, %v2286
        %v2317 = vadd.f32 %v2119, %v2288
        %v2318 = vadd.f32 %v2120, %v2291
        %v2319 = vadd.f32 %v2121, %v2293
        %v2320 = vadd.f32 %v2122, %v2296
        %v2321 = vadd.f32 %v2123, %v2298
        %v2322 = vadd.f32 %v2124, %v2301
        %v2323 = vadd.f32 %v2125, %v2303
        %v2324 = vadd.f32 %v2126, %v2306
        %v2325 = vadd.f32 %v2127, %v2308
        %2326 = vst.msk [vmem:[#allocation3] sm:$0xff] %vm594, %v2310
        %2327 = vst.msk [vmem:[#allocation3 + $0x8] sm:$0xff] %vm594, %v2311
        %2328 = vst.msk [vmem:[#allocation3 + $0x10] sm:$0xff] %vm594, %v2312
        %2329 = vst.msk [vmem:[#allocation3 + $0x18] sm:$0xff] %vm594, %v2313
        %2330 = vst.msk [vmem:[#allocation3 + $0x20] sm:$0xff] %vm594, %v2314
        %2331 = vst.msk [vmem:[#allocation3 + $0x28] sm:$0xff] %vm594, %v2315
        %2332 = vst.msk [vmem:[#allocation3 + $0x30] sm:$0xff] %vm594, %v2316
        %2333 = vst.msk [vmem:[#allocation3 + $0x38] sm:$0xff] %vm594, %v2317
        %2334 = vst.msk [vmem:[#allocation3 + $0x40] sm:$0xff] %vm594, %v2318
        %2335 = vst.msk [vmem:[#allocation3 + $0x48] sm:$0xff] %vm594, %v2319
        %2336 = vst.msk [vmem:[#allocation3 + $0x50] sm:$0xff] %vm594, %v2320
        %2337 = vst.msk [vmem:[#allocation3 + $0x58] sm:$0xff] %vm594, %v2321
        %2338 = vst.msk [vmem:[#allocation3 + $0x60] sm:$0xff] %vm594, %v2322
        %2339 = vst.msk [vmem:[#allocation3 + $0x68] sm:$0xff] %vm594, %v2323
        %2340 = vst.msk [vmem:[#allocation3 + $0x70] sm:$0xff] %vm594, %v2324
        %2341 = vst.msk [vmem:[#allocation3 + $0x78] sm:$0xff] %vm594, %v2325
        %v2342 = vld [vmem:[#allocation3] sm:$0xff]
        %v2343 = vld [vmem:[#allocation3 + $0x8] sm:$0xff]
        %v2344 = vld [vmem:[#allocation3 + $0x10] sm:$0xff]
        %v2345 = vld [vmem:[#allocation3 + $0x18] sm:$0xff]
        %v2346 = vld [vmem:[#allocation3 + $0x20] sm:$0xff]
        %v2347 = vld [vmem:[#allocation3 + $0x28] sm:$0xff]
        %v2348 = vld [vmem:[#allocation3 + $0x30] sm:$0xff]
        %v2349 = vld [vmem:[#allocation3 + $0x38] sm:$0xff]
        %v2350 = vld [vmem:[#allocation3 + $0x40] sm:$0xff]
        %v2351 = vld [vmem:[#allocation3 + $0x48] sm:$0xff]
        %v2352 = vld [vmem:[#allocation3 + $0x50] sm:$0xff]
        %v2353 = vld [vmem:[#allocation3 + $0x58] sm:$0xff]
        %v2354 = vld [vmem:[#allocation3 + $0x60] sm:$0xff]
        %v2355 = vld [vmem:[#allocation3 + $0x68] sm:$0xff]
        %v2356 = vld [vmem:[#allocation3 + $0x70] sm:$0xff]
        %v2357 = vld [vmem:[#allocation3 + $0x78] sm:$0xff]
        %s2358 = scalar_lea.vmem %s3, 14
        %v2359 = vld [vmem:[%s2358] sm:$0x3]
        %v2376 = vunpack.c.l.b16 %v2056
        %v2377 = vunpack.c.l.b16 %v2057
        %v2378 = vunpack.c.l.b16 %v2058
        %v2379 = vunpack.c.l.b16 %v2059
        %v2380 = vunpack.c.l.b16 %v2060
        %v2381 = vunpack.c.l.b16 %v2061
        %v2382 = vunpack.c.l.b16 %v2062
        %v2383 = vunpack.c.l.b16 %v2063
        %v2384 = vunpack.c.l.b16 %v2064
        %v2385 = vunpack.c.l.b16 %v2065
        %v2386 = vunpack.c.l.b16 %v2066
        %v2387 = vunpack.c.l.b16 %v2067
        %v2388 = vunpack.c.l.b16 %v2068
        %v2389 = vunpack.c.l.b16 %v2069
        %v2390 = vunpack.c.l.b16 %v2070
        %v2391 = vunpack.c.l.b16 %v2071
        %v2392 = vpack.c.b16 %v2377, %v2376
        %v2393 = vpack.c.b16 %v2379, %v2378
        %v2394 = vpack.c.b16 %v2381, %v2380
        %v2395 = vpack.c.b16 %v2383, %v2382
        %v2396 = vpack.c.b16 %v2385, %v2384
        %v2397 = vpack.c.b16 %v2387, %v2386
        %v2398 = vpack.c.b16 %v2389, %v2388
        %v2399 = vpack.c.b16 %v2391, %v2390
        %v2401 = vsel %vm516, %v2392, 0
        %v2404 = vsel %vm516, %v2393, 0
        %v2407 = vsel %vm516, %v2394, 0
        %v2410 = vsel %vm516, %v2395, 0
        %v2413 = vsel %vm516, %v2396, 0
        %v2416 = vsel %vm516, %v2397, 0
        %v2419 = vsel %vm516, %v2398, 0
        %v2422 = vsel %vm516, %v2399, 0
        %v2425 = vsel %vm541, %v2359, 0
        %2427 = vmatpush.bf16.msra.mxu0 0
        %2428 = vmatpush.bf16.msra.mxu0 0
        %2429 = vmatpush.bf16.msra.mxu0 0
        %2430 = vmatpush.bf16.msra.mxu0 0
        %2431 = vmatpush.bf16.msra.mxu0 0
        %2432 = vmatpush.bf16.msra.mxu0 0
        %2433 = vmatpush.bf16.msra.mxu0 0
        %2434 = vmatpush.bf16.msra.mxu0 %v2425
        %2435 = vmatmul.bf16.gmra.mxu0 %v2401
        %v2436 = vpop.f32.mrf.mxu0
        %v2437 = vadd.f32 0.0, %v2436
        %v2438 = vpop.f32.mrf.mxu0
        %v2439 = vadd.f32 0.0, %v2438
        %2440 = vmatmul.bf16.gmra.mxu0 %v2404
        %v2441 = vpop.f32.mrf.mxu0
        %v2442 = vadd.f32 0.0, %v2441
        %v2443 = vpop.f32.mrf.mxu0
        %v2444 = vadd.f32 0.0, %v2443
        %2445 = vmatmul.bf16.gmra.mxu0 %v2407
        %v2446 = vpop.f32.mrf.mxu0
        %v2447 = vadd.f32 0.0, %v2446
        %v2448 = vpop.f32.mrf.mxu0
        %v2449 = vadd.f32 0.0, %v2448
        %2450 = vmatmul.bf16.gmra.mxu0 %v2410
        %v2451 = vpop.f32.mrf.mxu0
        %v2452 = vadd.f32 0.0, %v2451
        %v2453 = vpop.f32.mrf.mxu0
        %v2454 = vadd.f32 0.0, %v2453
        %2455 = vmatmul.bf16.gmra.mxu0 %v2413
        %v2456 = vpop.f32.mrf.mxu0
        %v2457 = vadd.f32 0.0, %v2456
        %v2458 = vpop.f32.mrf.mxu0
        %v2459 = vadd.f32 0.0, %v2458
        %2460 = vmatmul.bf16.gmra.mxu0 %v2416
        %v2461 = vpop.f32.mrf.mxu0
        %v2462 = vadd.f32 0.0, %v2461
        %v2463 = vpop.f32.mrf.mxu0
        %v2464 = vadd.f32 0.0, %v2463
        %2465 = vmatmul.bf16.gmra.mxu0 %v2419
        %v2466 = vpop.f32.mrf.mxu0
        %v2467 = vadd.f32 0.0, %v2466
        %v2468 = vpop.f32.mrf.mxu0
        %v2469 = vadd.f32 0.0, %v2468
        %2470 = vmatmul.bf16.gmra.mxu0 %v2422
        %v2471 = vpop.f32.mrf.mxu0
        %v2472 = vadd.f32 0.0, %v2471
        %v2473 = vpop.f32.mrf.mxu0
        %v2474 = vadd.f32 0.0, %v2473
        %2475 = vdwg.mxu0
        %v2476 = vadd.f32 %v2342, %v2437
        %v2477 = vadd.f32 %v2343, %v2439
        %v2478 = vadd.f32 %v2344, %v2442
        %v2479 = vadd.f32 %v2345, %v2444
        %v2480 = vadd.f32 %v2346, %v2447
        %v2481 = vadd.f32 %v2347, %v2449
        %v2482 = vadd.f32 %v2348, %v2452
        %v2483 = vadd.f32 %v2349, %v2454
        %v2484 = vadd.f32 %v2350, %v2457
        %v2485 = vadd.f32 %v2351, %v2459
        %v2486 = vadd.f32 %v2352, %v2462
        %v2487 = vadd.f32 %v2353, %v2464
        %v2488 = vadd.f32 %v2354, %v2467
        %v2489 = vadd.f32 %v2355, %v2469
        %v2490 = vadd.f32 %v2356, %v2472
        %v2491 = vadd.f32 %v2357, %v2474
        %2492 = vst.msk [vmem:[#allocation3] sm:$0xff] %vm594, %v2476
        %2493 = vst.msk [vmem:[#allocation3 + $0x8] sm:$0xff] %vm594, %v2477
        %2494 = vst.msk [vmem:[#allocation3 + $0x10] sm:$0xff] %vm594, %v2478
        %2495 = vst.msk [vmem:[#allocation3 + $0x18] sm:$0xff] %vm594, %v2479
        %2496 = vst.msk [vmem:[#allocation3 + $0x20] sm:$0xff] %vm594, %v2480
        %2497 = vst.msk [vmem:[#allocation3 + $0x28] sm:$0xff] %vm594, %v2481
        %2498 = vst.msk [vmem:[#allocation3 + $0x30] sm:$0xff] %vm594, %v2482
        %2499 = vst.msk [vmem:[#allocation3 + $0x38] sm:$0xff] %vm594, %v2483
        %2500 = vst.msk [vmem:[#allocation3 + $0x40] sm:$0xff] %vm594, %v2484
        %2501 = vst.msk [vmem:[#allocation3 + $0x48] sm:$0xff] %vm594, %v2485
        %2502 = vst.msk [vmem:[#allocation3 + $0x50] sm:$0xff] %vm594, %v2486
        %2503 = vst.msk [vmem:[#allocation3 + $0x58] sm:$0xff] %vm594, %v2487
        %2504 = vst.msk [vmem:[#allocation3 + $0x60] sm:$0xff] %vm594, %v2488
        %2505 = vst.msk [vmem:[#allocation3 + $0x68] sm:$0xff] %vm594, %v2489
        %2506 = vst.msk [vmem:[#allocation3 + $0x70] sm:$0xff] %vm594, %v2490
        %2507 = vst.msk [vmem:[#allocation3 + $0x78] sm:$0xff] %vm594, %v2491
        %v2508 = vld [vmem:[#allocation2 + $0xc] sm:$0x8]
        %v2509 = vld [vmem:[#allocation2 + $0x10] sm:$0xf]
        %v2510 = vld [vmem:[#allocation2 + $0x14] sm:$0x7]
        %v2511 = vld [vmem:[#allocation2 + $0x2c] sm:$0x8]
        %v2512 = vld [vmem:[#allocation2 + $0x30] sm:$0xf]
        %v2513 = vld [vmem:[#allocation2 + $0x34] sm:$0x7]
        %v2514 = vld [vmem:[#allocation2 + $0x4c] sm:$0x8]
        %v2515 = vld [vmem:[#allocation2 + $0x50] sm:$0xf]
        %v2516 = vld [vmem:[#allocation2 + $0x54] sm:$0x7]
        %v2517 = vld [vmem:[#allocation2 + $0x6c] sm:$0x8]
        %v2518 = vld [vmem:[#allocation2 + $0x70] sm:$0xf]
        %v2519 = vld [vmem:[#allocation2 + $0x74] sm:$0x7]
        %v2520 = vld [vmem:[#allocation2 + $0x8c] sm:$0x8]
        %v2521 = vld [vmem:[#allocation2 + $0x90] sm:$0xf]
        %v2522 = vld [vmem:[#allocation2 + $0x94] sm:$0x7]
        %v2523 = vld [vmem:[#allocation2 + $0xac] sm:$0x8]
        %v2524 = vld [vmem:[#allocation2 + $0xb0] sm:$0xf]
        %v2525 = vld [vmem:[#allocation2 + $0xb4] sm:$0x7]
        %v2526 = vld [vmem:[#allocation2 + $0xcc] sm:$0x8]
        %v2527 = vld [vmem:[#allocation2 + $0xd0] sm:$0xf]
        %v2528 = vld [vmem:[#allocation2 + $0xd4] sm:$0x7]
        %v2529 = vld [vmem:[#allocation2 + $0xec] sm:$0x8]
        %v2530 = vld [vmem:[#allocation2 + $0xf0] sm:$0xf]
        %v2531 = vld [vmem:[#allocation2 + $0xf4] sm:$0x7]
        %v2532 = vld [vmem:[#allocation3] sm:$0xff]
        %v2533 = vld [vmem:[#allocation3 + $0x8] sm:$0xff]
        %v2534 = vld [vmem:[#allocation3 + $0x10] sm:$0xff]
        %v2535 = vld [vmem:[#allocation3 + $0x18] sm:$0xff]
        %v2536 = vld [vmem:[#allocation3 + $0x20] sm:$0xff]
        %v2537 = vld [vmem:[#allocation3 + $0x28] sm:$0xff]
        %v2538 = vld [vmem:[#allocation3 + $0x30] sm:$0xff]
        %v2539 = vld [vmem:[#allocation3 + $0x38] sm:$0xff]
        %v2540 = vld [vmem:[#allocation3 + $0x40] sm:$0xff]
        %v2541 = vld [vmem:[#allocation3 + $0x48] sm:$0xff]
        %v2542 = vld [vmem:[#allocation3 + $0x50] sm:$0xff]
        %v2543 = vld [vmem:[#allocation3 + $0x58] sm:$0xff]
        %v2544 = vld [vmem:[#allocation3 + $0x60] sm:$0xff]
        %v2545 = vld [vmem:[#allocation3 + $0x68] sm:$0xff]
        %v2546 = vld [vmem:[#allocation3 + $0x70] sm:$0xff]
        %v2547 = vld [vmem:[#allocation3 + $0x78] sm:$0xff]
        %v2572 = vrot.slane %v2508, 7
        %v2573 = vrot.slane %v2572, 4
        %v2574 = vrot.slane %v2509, 7
        %v2575 = vsel %vm1155, %v2573, %v2574
        %v2576 = vrot.slane %v2574, 4
        %v2577 = vrot.slane %v2510, 7
        %v2578 = vsel %vm1155, %v2576, %v2577
        %v2579 = vrot.slane %v2511, 7
        %v2580 = vrot.slane %v2579, 4
        %v2581 = vrot.slane %v2512, 7
        %v2582 = vsel %vm1155, %v2580, %v2581
        %v2583 = vrot.slane %v2581, 4
        %v2584 = vrot.slane %v2513, 7
        %v2585 = vsel %vm1155, %v2583, %v2584
        %v2586 = vrot.slane %v2514, 7
        %v2587 = vrot.slane %v2586, 4
        %v2588 = vrot.slane %v2515, 7
        %v2589 = vsel %vm1155, %v2587, %v2588
        %v2590 = vrot.slane %v2588, 4
        %v2591 = vrot.slane %v2516, 7
        %v2592 = vsel %vm1155, %v2590, %v2591
        %v2593 = vrot.slane %v2517, 7
        %v2594 = vrot.slane %v2593, 4
        %v2595 = vrot.slane %v2518, 7
        %v2596 = vsel %vm1155, %v2594, %v2595
        %v2597 = vrot.slane %v2595, 4
        %v2598 = vrot.slane %v2519, 7
        %v2599 = vsel %vm1155, %v2597, %v2598
        %v2600 = vrot.slane %v2520, 7
        %v2601 = vrot.slane %v2600, 4
        %v2602 = vrot.slane %v2521, 7
        %v2603 = vsel %vm1155, %v2601, %v2602
        %v2604 = vrot.slane %v2602, 4
        %v2605 = vrot.slane %v2522, 7
        %v2606 = vsel %vm1155, %v2604, %v2605
        %v2607 = vrot.slane %v2523, 7
        %v2608 = vrot.slane %v2607, 4
        %v2609 = vrot.slane %v2524, 7
        %v2610 = vsel %vm1155, %v2608, %v2609
        %v2611 = vrot.slane %v2609, 4
        %v2612 = vrot.slane %v2525, 7
        %v2613 = vsel %vm1155, %v2611, %v2612
        %v2614 = vrot.slane %v2526, 7
        %v2615 = vrot.slane %v2614, 4
        %v2616 = vrot.slane %v2527, 7
        %v2617 = vsel %vm1155, %v2615, %v2616
        %v2618 = vrot.slane %v2616, 4
        %v2619 = vrot.slane %v2528, 7
        %v2620 = vsel %vm1155, %v2618, %v2619
        %v2621 = vrot.slane %v2529, 7
        %v2622 = vrot.slane %v2621, 4
        %v2623 = vrot.slane %v2530, 7
        %v2624 = vsel %vm1155, %v2622, %v2623
        %v2625 = vrot.slane %v2623, 4
        %v2626 = vrot.slane %v2531, 7
        %v2627 = vsel %vm1155, %v2625, %v2626
        %s2628 = scalar_lea.vmem %s3, 16
        %v2629 = vld [vmem:[%s2628] sm:$0x3]
        %v2630 = vunpack.c.l.b16 %v2575
        %v2631 = vunpack.c.l.b16 %v2578
        %v2632 = vunpack.c.l.b16 %v2582
        %v2633 = vunpack.c.l.b16 %v2585
        %v2634 = vunpack.c.l.b16 %v2589
        %v2635 = vunpack.c.l.b16 %v2592
        %v2636 = vunpack.c.l.b16 %v2596
        %v2637 = vunpack.c.l.b16 %v2599
        %v2638 = vunpack.c.l.b16 %v2603
        %v2639 = vunpack.c.l.b16 %v2606
        %v2640 = vunpack.c.l.b16 %v2610
        %v2641 = vunpack.c.l.b16 %v2613
        %v2642 = vunpack.c.l.b16 %v2617
        %v2643 = vunpack.c.l.b16 %v2620
        %v2644 = vunpack.c.l.b16 %v2624
        %v2645 = vunpack.c.l.b16 %v2627
        %v2646 = vpack.c.b16 %v2631, %v2630
        %v2647 = vpack.c.b16 %v2633, %v2632
        %v2648 = vpack.c.b16 %v2635, %v2634
        %v2649 = vpack.c.b16 %v2637, %v2636
        %v2650 = vpack.c.b16 %v2639, %v2638
        %v2651 = vpack.c.b16 %v2641, %v2640
        %v2652 = vpack.c.b16 %v2643, %v2642
        %v2653 = vpack.c.b16 %v2645, %v2644
        %v2655 = vsel %vm516, %v2646, 0
        %v2658 = vsel %vm516, %v2647, 0
        %v2661 = vsel %vm516, %v2648, 0
        %v2664 = vsel %vm516, %v2649, 0
        %v2667 = vsel %vm516, %v2650, 0
        %v2670 = vsel %vm516, %v2651, 0
        %v2673 = vsel %vm516, %v2652, 0
        %v2676 = vsel %vm516, %v2653, 0
        %v2679 = vsel %vm541, %v2629, 0
        %2681 = vmatpush.bf16.msra.mxu0 0
        %2682 = vmatpush.bf16.msra.mxu0 0
        %2683 = vmatpush.bf16.msra.mxu0 0
        %2684 = vmatpush.bf16.msra.mxu0 0
        %2685 = vmatpush.bf16.msra.mxu0 0
        %2686 = vmatpush.bf16.msra.mxu0 0
        %2687 = vmatpush.bf16.msra.mxu0 0
        %2688 = vmatpush.bf16.msra.mxu0 %v2679
        %2689 = vmatmul.bf16.gmra.mxu0 %v2655
        %v2690 = vpop.f32.mrf.mxu0
        %v2691 = vadd.f32 0.0, %v2690
        %v2692 = vpop.f32.mrf.mxu0
        %v2693 = vadd.f32 0.0, %v2692
        %2694 = vmatmul.bf16.gmra.mxu0 %v2658
        %v2695 = vpop.f32.mrf.mxu0
        %v2696 = vadd.f32 0.0, %v2695
        %v2697 = vpop.f32.mrf.mxu0
        %v2698 = vadd.f32 0.0, %v2697
        %2699 = vmatmul.bf16.gmra.mxu0 %v2661
        %v2700 = vpop.f32.mrf.mxu0
        %v2701 = vadd.f32 0.0, %v2700
        %v2702 = vpop.f32.mrf.mxu0
        %v2703 = vadd.f32 0.0, %v2702
        %2704 = vmatmul.bf16.gmra.mxu0 %v2664
        %v2705 = vpop.f32.mrf.mxu0
        %v2706 = vadd.f32 0.0, %v2705
        %v2707 = vpop.f32.mrf.mxu0
        %v2708 = vadd.f32 0.0, %v2707
        %2709 = vmatmul.bf16.gmra.mxu0 %v2667
        %v2710 = vpop.f32.mrf.mxu0
        %v2711 = vadd.f32 0.0, %v2710
        %v2712 = vpop.f32.mrf.mxu0
        %v2713 = vadd.f32 0.0, %v2712
        %2714 = vmatmul.bf16.gmra.mxu0 %v2670
        %v2715 = vpop.f32.mrf.mxu0
        %v2716 = vadd.f32 0.0, %v2715
        %v2717 = vpop.f32.mrf.mxu0
        %v2718 = vadd.f32 0.0, %v2717
        %2719 = vmatmul.bf16.gmra.mxu0 %v2673
        %v2720 = vpop.f32.mrf.mxu0
        %v2721 = vadd.f32 0.0, %v2720
        %v2722 = vpop.f32.mrf.mxu0
        %v2723 = vadd.f32 0.0, %v2722
        %2724 = vmatmul.bf16.gmra.mxu0 %v2676
        %v2725 = vpop.f32.mrf.mxu0
        %v2726 = vadd.f32 0.0, %v2725
        %v2727 = vpop.f32.mrf.mxu0
        %v2728 = vadd.f32 0.0, %v2727
        %2729 = vdwg.mxu0
        %v2730 = vadd.f32 %v2532, %v2691
        %v2731 = vadd.f32 %v2533, %v2693
        %v2732 = vadd.f32 %v2534, %v2696
        %v2733 = vadd.f32 %v2535, %v2698
        %v2734 = vadd.f32 %v2536, %v2701
        %v2735 = vadd.f32 %v2537, %v2703
        %v2736 = vadd.f32 %v2538, %v2706
        %v2737 = vadd.f32 %v2539, %v2708
        %v2738 = vadd.f32 %v2540, %v2711
        %v2739 = vadd.f32 %v2541, %v2713
        %v2740 = vadd.f32 %v2542, %v2716
        %v2741 = vadd.f32 %v2543, %v2718
        %v2742 = vadd.f32 %v2544, %v2721
        %v2743 = vadd.f32 %v2545, %v2723
        %v2744 = vadd.f32 %v2546, %v2726
        %v2745 = vadd.f32 %v2547, %v2728
        %2746 = vst.msk [vmem:[#allocation3] sm:$0xff] %vm594, %v2730
        %2747 = vst.msk [vmem:[#allocation3 + $0x8] sm:$0xff] %vm594, %v2731
        %2748 = vst.msk [vmem:[#allocation3 + $0x10] sm:$0xff] %vm594, %v2732
        %2749 = vst.msk [vmem:[#allocation3 + $0x18] sm:$0xff] %vm594, %v2733
        %2750 = vst.msk [vmem:[#allocation3 + $0x20] sm:$0xff] %vm594, %v2734
        %2751 = vst.msk [vmem:[#allocation3 + $0x28] sm:$0xff] %vm594, %v2735
        %2752 = vst.msk [vmem:[#allocation3 + $0x30] sm:$0xff] %vm594, %v2736
        %2753 = vst.msk [vmem:[#allocation3 + $0x38] sm:$0xff] %vm594, %v2737
        %2754 = vst.msk [vmem:[#allocation3 + $0x40] sm:$0xff] %vm594, %v2738
        %2755 = vst.msk [vmem:[#allocation3 + $0x48] sm:$0xff] %vm594, %v2739
        %2756 = vst.msk [vmem:[#allocation3 + $0x50] sm:$0xff] %vm594, %v2740
        %2757 = vst.msk [vmem:[#allocation3 + $0x58] sm:$0xff] %vm594, %v2741
        %2758 = vst.msk [vmem:[#allocation3 + $0x60] sm:$0xff] %vm594, %v2742
        %2759 = vst.msk [vmem:[#allocation3 + $0x68] sm:$0xff] %vm594, %v2743
        %2760 = vst.msk [vmem:[#allocation3 + $0x70] sm:$0xff] %vm594, %v2744
        %2761 = vst.msk [vmem:[#allocation3 + $0x78] sm:$0xff] %vm594, %v2745
        %v2762 = vld [vmem:[#allocation3] sm:$0xff]
        %v2763 = vld [vmem:[#allocation3 + $0x8] sm:$0xff]
        %v2764 = vld [vmem:[#allocation3 + $0x10] sm:$0xff]
        %v2765 = vld [vmem:[#allocation3 + $0x18] sm:$0xff]
        %v2766 = vld [vmem:[#allocation3 + $0x20] sm:$0xff]
        %v2767 = vld [vmem:[#allocation3 + $0x28] sm:$0xff]
        %v2768 = vld [vmem:[#allocation3 + $0x30] sm:$0xff]
        %v2769 = vld [vmem:[#allocation3 + $0x38] sm:$0xff]
        %v2770 = vld [vmem:[#allocation3 + $0x40] sm:$0xff]
        %v2771 = vld [vmem:[#allocation3 + $0x48] sm:$0xff]
        %v2772 = vld [vmem:[#allocation3 + $0x50] sm:$0xff]
        %v2773 = vld [vmem:[#allocation3 + $0x58] sm:$0xff]
        %v2774 = vld [vmem:[#allocation3 + $0x60] sm:$0xff]
        %v2775 = vld [vmem:[#allocation3 + $0x68] sm:$0xff]
        %v2776 = vld [vmem:[#allocation3 + $0x70] sm:$0xff]
        %v2777 = vld [vmem:[#allocation3 + $0x78] sm:$0xff]
        %2794 = vrot.lane.b32.xlu0 %v2762, 32
        %v2795 = vpop.permute.xlu0 %2794
        %2796 = vrot.lane.b32.xlu0 %v2763, 32
        %v2797 = vpop.permute.xlu0 %2796
        %2798 = vrot.lane.b32.xlu0 %v2764, 32
        %v2799 = vpop.permute.xlu0 %2798
        %2800 = vrot.lane.b32.xlu0 %v2765, 32
        %v2801 = vpop.permute.xlu0 %2800
        %2802 = vrot.lane.b32.xlu0 %v2766, 32
        %v2803 = vpop.permute.xlu0 %2802
        %2804 = vrot.lane.b32.xlu0 %v2767, 32
        %v2805 = vpop.permute.xlu0 %2804
        %2806 = vrot.lane.b32.xlu0 %v2768, 32
        %v2807 = vpop.permute.xlu0 %2806
        %2808 = vrot.lane.b32.xlu0 %v2769, 32
        %v2809 = vpop.permute.xlu0 %2808
        %2810 = vrot.lane.b32.xlu0 %v2770, 32
        %v2811 = vpop.permute.xlu0 %2810
        %2812 = vrot.lane.b32.xlu0 %v2771, 32
        %v2813 = vpop.permute.xlu0 %2812
        %2814 = vrot.lane.b32.xlu0 %v2772, 32
        %v2815 = vpop.permute.xlu0 %2814
        %2816 = vrot.lane.b32.xlu0 %v2773, 32
        %v2817 = vpop.permute.xlu0 %2816
        %2818 = vrot.lane.b32.xlu0 %v2774, 32
        %v2819 = vpop.permute.xlu0 %2818
        %2820 = vrot.lane.b32.xlu0 %v2775, 32
        %v2821 = vpop.permute.xlu0 %2820
        %2822 = vrot.lane.b32.xlu0 %v2776, 32
        %v2823 = vpop.permute.xlu0 %2822
        %2824 = vrot.lane.b32.xlu0 %v2777, 32
        %v2825 = vpop.permute.xlu0 %2824
        %vm2842 = vcmask 523520
        %2843 = vst.msk [vmem:[%s393] sm:$0xff] %vm2842, %v2795
        %2844 = vst.msk [vmem:[%s393 + $0x10] sm:$0xff] %vm2842, %v2797
        %2845 = vst.msk [vmem:[%s393 + $0x20] sm:$0xff] %vm2842, %v2799
        %2846 = vst.msk [vmem:[%s393 + $0x30] sm:$0xff] %vm2842, %v2801
        %2847 = vst.msk [vmem:[%s393 + $0x40] sm:$0xff] %vm2842, %v2803
        %2848 = vst.msk [vmem:[%s393 + $0x50] sm:$0xff] %vm2842, %v2805
        %2849 = vst.msk [vmem:[%s393 + $0x60] sm:$0xff] %vm2842, %v2807
        %2850 = vst.msk [vmem:[%s393 + $0x70] sm:$0xff] %vm2842, %v2809
        %2851 = vst.msk [vmem:[%s393 + $0x80] sm:$0xff] %vm2842, %v2811
        %2852 = vst.msk [vmem:[%s393 + $0x90] sm:$0xff] %vm2842, %v2813
        %2853 = vst.msk [vmem:[%s393 + $0xa0] sm:$0xff] %vm2842, %v2815
        %2854 = vst.msk [vmem:[%s393 + $0xb0] sm:$0xff] %vm2842, %v2817
        %2855 = vst.msk [vmem:[%s393 + $0xc0] sm:$0xff] %vm2842, %v2819
        %2856 = vst.msk [vmem:[%s393 + $0xd0] sm:$0xff] %vm2842, %v2821
        %2857 = vst.msk [vmem:[%s393 + $0xe0] sm:$0xff] %vm2842, %v2823
        %2858 = vst.msk [vmem:[%s393 + $0xf0] sm:$0xff] %vm2842, %v2825
        %v2859 = vld [vmem:[%s6] sm:$0x1]
        %v2861 = vperm.slane %v2859, 0
        %2863 = vst.msk [vmem:[#allocation3] sm:$0xff] %vm594, %v2861
        %2864 = vst.msk [vmem:[#allocation3 + $0x8] sm:$0xff] %vm594, %v2861
        %2865 = vst.msk [vmem:[#allocation3 + $0x10] sm:$0xff] %vm594, %v2861
        %2866 = vst.msk [vmem:[#allocation3 + $0x18] sm:$0xff] %vm594, %v2861
        %2867 = vst.msk [vmem:[#allocation3 + $0x20] sm:$0xff] %vm594, %v2861
        %2868 = vst.msk [vmem:[#allocation3 + $0x28] sm:$0xff] %vm594, %v2861
        %2869 = vst.msk [vmem:[#allocation3 + $0x30] sm:$0xff] %vm594, %v2861
        %2870 = vst.msk [vmem:[#allocation3 + $0x38] sm:$0xff] %vm594, %v2861
        %2871 = vst.msk [vmem:[#allocation3 + $0x40] sm:$0xff] %vm594, %v2861
        %2872 = vst.msk [vmem:[#allocation3 + $0x48] sm:$0xff] %vm594, %v2861
        %2873 = vst.msk [vmem:[#allocation3 + $0x50] sm:$0xff] %vm594, %v2861
        %2874 = vst.msk [vmem:[#allocation3 + $0x58] sm:$0xff] %vm594, %v2861
        %2875 = vst.msk [vmem:[#allocation3 + $0x60] sm:$0xff] %vm594, %v2861
        %2876 = vst.msk [vmem:[#allocation3 + $0x68] sm:$0xff] %vm594, %v2861
        %2877 = vst.msk [vmem:[#allocation3 + $0x70] sm:$0xff] %vm594, %v2861
        %2878 = vst.msk [vmem:[#allocation3 + $0x78] sm:$0xff] %vm594, %v2861
        %s2879 = sadd.s32 %s401, 6
        %s2880 = smul.u32 %s2879, 2
        %s2881 = smul.addr %s2880, 4
        %s2882 = scalar_lea.vmem %s398, %s2881
        %v2883 = vld [vmem:[%s2882] sm:$0xf]
        %v2884 = vld [vmem:[%s2882 + $0x4] sm:$0xf]
        %v2885 = vld [vmem:[%s2882 + $0x8] sm:$0xf]
        %v2886 = vld [vmem:[%s2882 + $0xc] sm:$0xf]
        %v2887 = vld [vmem:[%s2882 + $0x10] sm:$0xf]
        %v2888 = vld [vmem:[%s2882 + $0x14] sm:$0xf]
        %v2889 = vld [vmem:[%s2882 + $0x18] sm:$0xf]
        %v2890 = vld [vmem:[%s2882 + $0x1c] sm:$0xf]
        %v2891 = vld [vmem:[%s2882 + $0x20] sm:$0xf]
        %v2892 = vld [vmem:[%s2882 + $0x24] sm:$0xf]
        %v2893 = vld [vmem:[%s2882 + $0x28] sm:$0xf]
        %v2894 = vld [vmem:[%s2882 + $0x2c] sm:$0xf]
        %v2895 = vld [vmem:[%s2882 + $0x30] sm:$0xf]
        %v2896 = vld [vmem:[%s2882 + $0x34] sm:$0xf]
        %v2897 = vld [vmem:[%s2882 + $0x38] sm:$0xf]
        %v2898 = vld [vmem:[%s2882 + $0x3c] sm:$0xf]
        %2899 = vst.msk [vmem:[#allocation2 + $0xc] sm:$0xf] %vm402, %v2883
        %2900 = vst.msk [vmem:[#allocation2 + $0x10] sm:$0xf] %vm402, %v2884
        %2901 = vst.msk [vmem:[#allocation2 + $0x2c] sm:$0xf] %vm402, %v2885
        %2902 = vst.msk [vmem:[#allocation2 + $0x30] sm:$0xf] %vm402, %v2886
        %2903 = vst.msk [vmem:[#allocation2 + $0x4c] sm:$0xf] %vm402, %v2887
        %2904 = vst.msk [vmem:[#allocation2 + $0x50] sm:$0xf] %vm402, %v2888
        %2905 = vst.msk [vmem:[#allocation2 + $0x6c] sm:$0xf] %vm402, %v2889
        %2906 = vst.msk [vmem:[#allocation2 + $0x70] sm:$0xf] %vm402, %v2890
        %2907 = vst.msk [vmem:[#allocation2 + $0x8c] sm:$0xf] %vm402, %v2891
        %2908 = vst.msk [vmem:[#allocation2 + $0x90] sm:$0xf] %vm402, %v2892
        %2909 = vst.msk [vmem:[#allocation2 + $0xac] sm:$0xf] %vm402, %v2893
        %2910 = vst.msk [vmem:[#allocation2 + $0xb0] sm:$0xf] %vm402, %v2894
        %2911 = vst.msk [vmem:[#allocation2 + $0xcc] sm:$0xf] %vm402, %v2895
        %2912 = vst.msk [vmem:[#allocation2 + $0xd0] sm:$0xf] %vm402, %v2896
        %2913 = vst.msk [vmem:[#allocation2 + $0xec] sm:$0xf] %vm402, %v2897
        %2914 = vst.msk [vmem:[#allocation2 + $0xf0] sm:$0xf] %vm402, %v2898
        %v2915 = vld [vmem:[#allocation2 + $0x4] sm:$0xc]
        %v2916 = vld [vmem:[#allocation2 + $0x8] sm:$0xf]
        %v2917 = vld [vmem:[#allocation2 + $0xc] sm:$0x3]
        %v2918 = vld [vmem:[#allocation2 + $0x24] sm:$0xc]
        %v2919 = vld [vmem:[#allocation2 + $0x28] sm:$0xf]
        %v2920 = vld [vmem:[#allocation2 + $0x2c] sm:$0x3]
        %v2921 = vld [vmem:[#allocation2 + $0x44] sm:$0xc]
        %v2922 = vld [vmem:[#allocation2 + $0x48] sm:$0xf]
        %v2923 = vld [vmem:[#allocation2 + $0x4c] sm:$0x3]
        %v2924 = vld [vmem:[#allocation2 + $0x64] sm:$0xc]
        %v2925 = vld [vmem:[#allocation2 + $0x68] sm:$0xf]
        %v2926 = vld [vmem:[#allocation2 + $0x6c] sm:$0x3]
        %v2927 = vld [vmem:[#allocation2 + $0x84] sm:$0xc]
        %v2928 = vld [vmem:[#allocation2 + $0x88] sm:$0xf]
        %v2929 = vld [vmem:[#allocation2 + $0x8c] sm:$0x3]
        %v2930 = vld [vmem:[#allocation2 + $0xa4] sm:$0xc]
        %v2931 = vld [vmem:[#allocation2 + $0xa8] sm:$0xf]
        %v2932 = vld [vmem:[#allocation2 + $0xac] sm:$0x3]
        %v2933 = vld [vmem:[#allocation2 + $0xc4] sm:$0xc]
        %v2934 = vld [vmem:[#allocation2 + $0xc8] sm:$0xf]
        %v2935 = vld [vmem:[#allocation2 + $0xcc] sm:$0x3]
        %v2936 = vld [vmem:[#allocation2 + $0xe4] sm:$0xc]
        %v2937 = vld [vmem:[#allocation2 + $0xe8] sm:$0xf]
        %v2938 = vld [vmem:[#allocation2 + $0xec] sm:$0x3]
        %v2939 = vld [vmem:[#allocation3] sm:$0xff]
        %v2940 = vld [vmem:[#allocation3 + $0x8] sm:$0xff]
        %v2941 = vld [vmem:[#allocation3 + $0x10] sm:$0xff]
        %v2942 = vld [vmem:[#allocation3 + $0x18] sm:$0xff]
        %v2943 = vld [vmem:[#allocation3 + $0x20] sm:$0xff]
        %v2944 = vld [vmem:[#allocation3 + $0x28] sm:$0xff]
        %v2945 = vld [vmem:[#allocation3 + $0x30] sm:$0xff]
        %v2946 = vld [vmem:[#allocation3 + $0x38] sm:$0xff]
        %v2947 = vld [vmem:[#allocation3 + $0x40] sm:$0xff]
        %v2948 = vld [vmem:[#allocation3 + $0x48] sm:$0xff]
        %v2949 = vld [vmem:[#allocation3 + $0x50] sm:$0xff]
        %v2950 = vld [vmem:[#allocation3 + $0x58] sm:$0xff]
        %v2951 = vld [vmem:[#allocation3 + $0x60] sm:$0xff]
        %v2952 = vld [vmem:[#allocation3 + $0x68] sm:$0xff]
        %v2953 = vld [vmem:[#allocation3 + $0x70] sm:$0xff]
        %v2954 = vld [vmem:[#allocation3 + $0x78] sm:$0xff]
        %vm2979 = vcmask 1041408
        %vm2980 = vcmask 1045508
        %vm2981 = vmor %vm2979, %vm2980
        %v2982 = vrot.slane %v2915, 6
        %v2983 = vrot.slane %v2982, 4
        %v2984 = vrot.slane %v2916, 6
        %v2985 = vsel %vm2981, %v2983, %v2984
        %v2986 = vrot.slane %v2984, 4
        %v2987 = vrot.slane %v2917, 6
        %v2988 = vsel %vm2981, %v2986, %v2987
        %v2989 = vrot.slane %v2918, 6
        %v2990 = vrot.slane %v2989, 4
        %v2991 = vrot.slane %v2919, 6
        %v2992 = vsel %vm2981, %v2990, %v2991
        %v2993 = vrot.slane %v2991, 4
        %v2994 = vrot.slane %v2920, 6
        %v2995 = vsel %vm2981, %v2993, %v2994
        %v2996 = vrot.slane %v2921, 6
        %v2997 = vrot.slane %v2996, 4
        %v2998 = vrot.slane %v2922, 6
        %v2999 = vsel %vm2981, %v2997, %v2998
        %v3000 = vrot.slane %v2998, 4
        %v3001 = vrot.slane %v2923, 6
        %v3002 = vsel %vm2981, %v3000, %v3001
        %v3003 = vrot.slane %v2924, 6
        %v3004 = vrot.slane %v3003, 4
        %v3005 = vrot.slane %v2925, 6
        %v3006 = vsel %vm2981, %v3004, %v3005
        %v3007 = vrot.slane %v3005, 4
        %v3008 = vrot.slane %v2926, 6
        %v3009 = vsel %vm2981, %v3007, %v3008
        %v3010 = vrot.slane %v2927, 6
        %v3011 = vrot.slane %v3010, 4
        %v3012 = vrot.slane %v2928, 6
        %v3013 = vsel %vm2981, %v3011, %v3012
        %v3014 = vrot.slane %v3012, 4
        %v3015 = vrot.slane %v2929, 6
        %v3016 = vsel %vm2981, %v3014, %v3015
        %v3017 = vrot.slane %v2930, 6
        %v3018 = vrot.slane %v3017, 4
        %v3019 = vrot.slane %v2931, 6
        %v3020 = vsel %vm2981, %v3018, %v3019
        %v3021 = vrot.slane %v3019, 4
        %v3022 = vrot.slane %v2932, 6
        %v3023 = vsel %vm2981, %v3021, %v3022
        %v3024 = vrot.slane %v2933, 6
        %v3025 = vrot.slane %v3024, 4
        %v3026 = vrot.slane %v2934, 6
        %v3027 = vsel %vm2981, %v3025, %v3026
        %v3028 = vrot.slane %v3026, 4
        %v3029 = vrot.slane %v2935, 6
        %v3030 = vsel %vm2981, %v3028, %v3029
        %v3031 = vrot.slane %v2936, 6
        %v3032 = vrot.slane %v3031, 4
        %v3033 = vrot.slane %v2937, 6
        %v3034 = vsel %vm2981, %v3032, %v3033
        %v3035 = vrot.slane %v3033, 4
        %v3036 = vrot.slane %v2938, 6
        %v3037 = vsel %vm2981, %v3035, %v3036
        %v3038 = vld [vmem:[%s5] sm:$0x3]
        %v3039 = vunpack.c.l.b16 %v2985
        %v3040 = vunpack.c.l.b16 %v2988
        %v3041 = vunpack.c.l.b16 %v2992
        %v3042 = vunpack.c.l.b16 %v2995
        %v3043 = vunpack.c.l.b16 %v2999
        %v3044 = vunpack.c.l.b16 %v3002
        %v3045 = vunpack.c.l.b16 %v3006
        %v3046 = vunpack.c.l.b16 %v3009
        %v3047 = vunpack.c.l.b16 %v3013
        %v3048 = vunpack.c.l.b16 %v3016
        %v3049 = vunpack.c.l.b16 %v3020
        %v3050 = vunpack.c.l.b16 %v3023
        %v3051 = vunpack.c.l.b16 %v3027
        %v3052 = vunpack.c.l.b16 %v3030
        %v3053 = vunpack.c.l.b16 %v3034
        %v3054 = vunpack.c.l.b16 %v3037
        %v3055 = vpack.c.b16 %v3040, %v3039
        %v3056 = vpack.c.b16 %v3042, %v3041
        %v3057 = vpack.c.b16 %v3044, %v3043
        %v3058 = vpack.c.b16 %v3046, %v3045
        %v3059 = vpack.c.b16 %v3048, %v3047
        %v3060 = vpack.c.b16 %v3050, %v3049
        %v3061 = vpack.c.b16 %v3052, %v3051
        %v3062 = vpack.c.b16 %v3054, %v3053
        %v3064 = vsel %vm516, %v3055, 0
        %v3067 = vsel %vm516, %v3056, 0
        %v3070 = vsel %vm516, %v3057, 0
        %v3073 = vsel %vm516, %v3058, 0
        %v3076 = vsel %vm516, %v3059, 0
        %v3079 = vsel %vm516, %v3060, 0
        %v3082 = vsel %vm516, %v3061, 0
        %v3085 = vsel %vm516, %v3062, 0
        %v3088 = vsel %vm541, %v3038, 0
        %3090 = vmatpush.bf16.msra.mxu0 0
        %3091 = vmatpush.bf16.msra.mxu0 0
        %3092 = vmatpush.bf16.msra.mxu0 0
        %3093 = vmatpush.bf16.msra.mxu0 0
        %3094 = vmatpush.bf16.msra.mxu0 0
        %3095 = vmatpush.bf16.msra.mxu0 0
        %3096 = vmatpush.bf16.msra.mxu0 0
        %3097 = vmatpush.bf16.msra.mxu0 %v3088
        %3098 = vmatmul.bf16.gmra.mxu0 %v3064
        %v3099 = vpop.f32.mrf.mxu0
        %v3100 = vadd.f32 0.0, %v3099
        %v3101 = vpop.f32.mrf.mxu0
        %v3102 = vadd.f32 0.0, %v3101
        %3103 = vmatmul.bf16.gmra.mxu0 %v3067
        %v3104 = vpop.f32.mrf.mxu0
        %v3105 = vadd.f32 0.0, %v3104
        %v3106 = vpop.f32.mrf.mxu0
        %v3107 = vadd.f32 0.0, %v3106
        %3108 = vmatmul.bf16.gmra.mxu0 %v3070
        %v3109 = vpop.f32.mrf.mxu0
        %v3110 = vadd.f32 0.0, %v3109
        %v3111 = vpop.f32.mrf.mxu0
        %v3112 = vadd.f32 0.0, %v3111
        %3113 = vmatmul.bf16.gmra.mxu0 %v3073
        %v3114 = vpop.f32.mrf.mxu0
        %v3115 = vadd.f32 0.0, %v3114
        %v3116 = vpop.f32.mrf.mxu0
        %v3117 = vadd.f32 0.0, %v3116
        %3118 = vmatmul.bf16.gmra.mxu0 %v3076
        %v3119 = vpop.f32.mrf.mxu0
        %v3120 = vadd.f32 0.0, %v3119
        %v3121 = vpop.f32.mrf.mxu0
        %v3122 = vadd.f32 0.0, %v3121
        %3123 = vmatmul.bf16.gmra.mxu0 %v3079
        %v3124 = vpop.f32.mrf.mxu0
        %v3125 = vadd.f32 0.0, %v3124
        %v3126 = vpop.f32.mrf.mxu0
        %v3127 = vadd.f32 0.0, %v3126
        %3128 = vmatmul.bf16.gmra.mxu0 %v3082
        %v3129 = vpop.f32.mrf.mxu0
        %v3130 = vadd.f32 0.0, %v3129
        %v3131 = vpop.f32.mrf.mxu0
        %v3132 = vadd.f32 0.0, %v3131
        %3133 = vmatmul.bf16.gmra.mxu0 %v3085
        %v3134 = vpop.f32.mrf.mxu0
        %v3135 = vadd.f32 0.0, %v3134
        %v3136 = vpop.f32.mrf.mxu0
        %v3137 = vadd.f32 0.0, %v3136
        %3138 = vdwg.mxu0
        %v3139 = vadd.f32 %v2939, %v3100
        %v3140 = vadd.f32 %v2940, %v3102
        %v3141 = vadd.f32 %v2941, %v3105
        %v3142 = vadd.f32 %v2942, %v3107
        %v3143 = vadd.f32 %v2943, %v3110
        %v3144 = vadd.f32 %v2944, %v3112
        %v3145 = vadd.f32 %v2945, %v3115
        %v3146 = vadd.f32 %v2946, %v3117
        %v3147 = vadd.f32 %v2947, %v3120
        %v3148 = vadd.f32 %v2948, %v3122
        %v3149 = vadd.f32 %v2949, %v3125
        %v3150 = vadd.f32 %v2950, %v3127
        %v3151 = vadd.f32 %v2951, %v3130
        %v3152 = vadd.f32 %v2952, %v3132
        %v3153 = vadd.f32 %v2953, %v3135
        %v3154 = vadd.f32 %v2954, %v3137
        %3155 = vst.msk [vmem:[#allocation3] sm:$0xff] %vm594, %v3139
        %3156 = vst.msk [vmem:[#allocation3 + $0x8] sm:$0xff] %vm594, %v3140
        %3157 = vst.msk [vmem:[#allocation3 + $0x10] sm:$0xff] %vm594, %v3141
        %3158 = vst.msk [vmem:[#allocation3 + $0x18] sm:$0xff] %vm594, %v3142
        %3159 = vst.msk [vmem:[#allocation3 + $0x20] sm:$0xff] %vm594, %v3143
        %3160 = vst.msk [vmem:[#allocation3 + $0x28] sm:$0xff] %vm594, %v3144
        %3161 = vst.msk [vmem:[#allocation3 + $0x30] sm:$0xff] %vm594, %v3145
        %3162 = vst.msk [vmem:[#allocation3 + $0x38] sm:$0xff] %vm594, %v3146
        %3163 = vst.msk [vmem:[#allocation3 + $0x40] sm:$0xff] %vm594, %v3147
        %3164 = vst.msk [vmem:[#allocation3 + $0x48] sm:$0xff] %vm594, %v3148
        %3165 = vst.msk [vmem:[#allocation3 + $0x50] sm:$0xff] %vm594, %v3149
        %3166 = vst.msk [vmem:[#allocation3 + $0x58] sm:$0xff] %vm594, %v3150
        %3167 = vst.msk [vmem:[#allocation3 + $0x60] sm:$0xff] %vm594, %v3151
        %3168 = vst.msk [vmem:[#allocation3 + $0x68] sm:$0xff] %vm594, %v3152
        %3169 = vst.msk [vmem:[#allocation3 + $0x70] sm:$0xff] %vm594, %v3153
        %3170 = vst.msk [vmem:[#allocation3 + $0x78] sm:$0xff] %vm594, %v3154
        %v3171 = vld [vmem:[#allocation3] sm:$0xff]
        %v3172 = vld [vmem:[#allocation3 + $0x8] sm:$0xff]
        %v3173 = vld [vmem:[#allocation3 + $0x10] sm:$0xff]
        %v3174 = vld [vmem:[#allocation3 + $0x18] sm:$0xff]
        %v3175 = vld [vmem:[#allocation3 + $0x20] sm:$0xff]
        %v3176 = vld [vmem:[#allocation3 + $0x28] sm:$0xff]
        %v3177 = vld [vmem:[#allocation3 + $0x30] sm:$0xff]
        %v3178 = vld [vmem:[#allocation3 + $0x38] sm:$0xff]
        %v3179 = vld [vmem:[#allocation3 + $0x40] sm:$0xff]
        %v3180 = vld [vmem:[#allocation3 + $0x48] sm:$0xff]
        %v3181 = vld [vmem:[#allocation3 + $0x50] sm:$0xff]
        %v3182 = vld [vmem:[#allocation3 + $0x58] sm:$0xff]
        %v3183 = vld [vmem:[#allocation3 + $0x60] sm:$0xff]
        %v3184 = vld [vmem:[#allocation3 + $0x68] sm:$0xff]
        %v3185 = vld [vmem:[#allocation3 + $0x70] sm:$0xff]
        %v3186 = vld [vmem:[#allocation3 + $0x78] sm:$0xff]
        %s3187 = scalar_lea.vmem %s5, 2
        %v3188 = vld [vmem:[%s3187] sm:$0x3]
        %v3205 = vunpack.c.l.b16 %v2883
        %v3206 = vunpack.c.l.b16 %v2884
        %v3207 = vunpack.c.l.b16 %v2885
        %v3208 = vunpack.c.l.b16 %v2886
        %v3209 = vunpack.c.l.b16 %v2887
        %v3210 = vunpack.c.l.b16 %v2888
        %v3211 = vunpack.c.l.b16 %v2889
        %v3212 = vunpack.c.l.b16 %v2890
        %v3213 = vunpack.c.l.b16 %v2891
        %v3214 = vunpack.c.l.b16 %v2892
        %v3215 = vunpack.c.l.b16 %v2893
        %v3216 = vunpack.c.l.b16 %v2894
        %v3217 = vunpack.c.l.b16 %v2895
        %v3218 = vunpack.c.l.b16 %v2896
        %v3219 = vunpack.c.l.b16 %v2897
        %v3220 = vunpack.c.l.b16 %v2898
        %v3221 = vpack.c.b16 %v3206, %v3205
        %v3222 = vpack.c.b16 %v3208, %v3207
        %v3223 = vpack.c.b16 %v3210, %v3209
        %v3224 = vpack.c.b16 %v3212, %v3211
        %v3225 = vpack.c.b16 %v3214, %v3213
        %v3226 = vpack.c.b16 %v3216, %v3215
        %v3227 = vpack.c.b16 %v3218, %v3217
        %v3228 = vpack.c.b16 %v3220, %v3219
        %v3230 = vsel %vm516, %v3221, 0
        %v3233 = vsel %vm516, %v3222, 0
        %v3236 = vsel %vm516, %v3223, 0
        %v3239 = vsel %vm516, %v3224, 0
        %v3242 = vsel %vm516, %v3225, 0
        %v3245 = vsel %vm516, %v3226, 0
        %v3248 = vsel %vm516, %v3227, 0
        %v3251 = vsel %vm516, %v3228, 0
        %v3254 = vsel %vm541, %v3188, 0
        %3256 = vmatpush.bf16.msra.mxu0 0
        %3257 = vmatpush.bf16.msra.mxu0 0
        %3258 = vmatpush.bf16.msra.mxu0 0
        %3259 = vmatpush.bf16.msra.mxu0 0
        %3260 = vmatpush.bf16.msra.mxu0 0
        %3261 = vmatpush.bf16.msra.mxu0 0
        %3262 = vmatpush.bf16.msra.mxu0 0
        %3263 = vmatpush.bf16.msra.mxu0 %v3254
        %3264 = vmatmul.bf16.gmra.mxu0 %v3230
        %v3265 = vpop.f32.mrf.mxu0
        %v3266 = vadd.f32 0.0, %v3265
        %v3267 = vpop.f32.mrf.mxu0
        %v3268 = vadd.f32 0.0, %v3267
        %3269 = vmatmul.bf16.gmra.mxu0 %v3233
        %v3270 = vpop.f32.mrf.mxu0
        %v3271 = vadd.f32 0.0, %v3270
        %v3272 = vpop.f32.mrf.mxu0
        %v3273 = vadd.f32 0.0, %v3272
        %3274 = vmatmul.bf16.gmra.mxu0 %v3236
        %v3275 = vpop.f32.mrf.mxu0
        %v3276 = vadd.f32 0.0, %v3275
        %v3277 = vpop.f32.mrf.mxu0
        %v3278 = vadd.f32 0.0, %v3277
        %3279 = vmatmul.bf16.gmra.mxu0 %v3239
        %v3280 = vpop.f32.mrf.mxu0
        %v3281 = vadd.f32 0.0, %v3280
        %v3282 = vpop.f32.mrf.mxu0
        %v3283 = vadd.f32 0.0, %v3282
        %3284 = vmatmul.bf16.gmra.mxu0 %v3242
        %v3285 = vpop.f32.mrf.mxu0
        %v3286 = vadd.f32 0.0, %v3285
        %v3287 = vpop.f32.mrf.mxu0
        %v3288 = vadd.f32 0.0, %v3287
        %3289 = vmatmul.bf16.gmra.mxu0 %v3245
        %v3290 = vpop.f32.mrf.mxu0
        %v3291 = vadd.f32 0.0, %v3290
        %v3292 = vpop.f32.mrf.mxu0
        %v3293 = vadd.f32 0.0, %v3292
        %3294 = vmatmul.bf16.gmra.mxu0 %v3248
        %v3295 = vpop.f32.mrf.mxu0
        %v3296 = vadd.f32 0.0, %v3295
        %v3297 = vpop.f32.mrf.mxu0
        %v3298 = vadd.f32 0.0, %v3297
        %3299 = vmatmul.bf16.gmra.mxu0 %v3251
        %v3300 = vpop.f32.mrf.mxu0
        %v3301 = vadd.f32 0.0, %v3300
        %v3302 = vpop.f32.mrf.mxu0
        %v3303 = vadd.f32 0.0, %v3302
        %3304 = vdwg.mxu0
        %v3305 = vadd.f32 %v3171, %v3266
        %v3306 = vadd.f32 %v3172, %v3268
        %v3307 = vadd.f32 %v3173, %v3271
        %v3308 = vadd.f32 %v3174, %v3273
        %v3309 = vadd.f32 %v3175, %v3276
        %v3310 = vadd.f32 %v3176, %v3278
        %v3311 = vadd.f32 %v3177, %v3281
        %v3312 = vadd.f32 %v3178, %v3283
        %v3313 = vadd.f32 %v3179, %v3286
        %v3314 = vadd.f32 %v3180, %v3288
        %v3315 = vadd.f32 %v3181, %v3291
        %v3316 = vadd.f32 %v3182, %v3293
        %v3317 = vadd.f32 %v3183, %v3296
        %v3318 = vadd.f32 %v3184, %v3298
        %v3319 = vadd.f32 %v3185, %v3301
        %v3320 = vadd.f32 %v3186, %v3303
        %3321 = vst.msk [vmem:[#allocation3] sm:$0xff] %vm594, %v3305
        %3322 = vst.msk [vmem:[#allocation3 + $0x8] sm:$0xff] %vm594, %v3306
        %3323 = vst.msk [vmem:[#allocation3 + $0x10] sm:$0xff] %vm594, %v3307
        %3324 = vst.msk [vmem:[#allocation3 + $0x18] sm:$0xff] %vm594, %v3308
        %3325 = vst.msk [vmem:[#allocation3 + $0x20] sm:$0xff] %vm594, %v3309
        %3326 = vst.msk [vmem:[#allocation3 + $0x28] sm:$0xff] %vm594, %v3310
        %3327 = vst.msk [vmem:[#allocation3 + $0x30] sm:$0xff] %vm594, %v3311
        %3328 = vst.msk [vmem:[#allocation3 + $0x38] sm:$0xff] %vm594, %v3312
        %3329 = vst.msk [vmem:[#allocation3 + $0x40] sm:$0xff] %vm594, %v3313
        %3330 = vst.msk [vmem:[#allocation3 + $0x48] sm:$0xff] %vm594, %v3314
        %3331 = vst.msk [vmem:[#allocation3 + $0x50] sm:$0xff] %vm594, %v3315
        %3332 = vst.msk [vmem:[#allocation3 + $0x58] sm:$0xff] %vm594, %v3316
        %3333 = vst.msk [vmem:[#allocation3 + $0x60] sm:$0xff] %vm594, %v3317
        %3334 = vst.msk [vmem:[#allocation3 + $0x68] sm:$0xff] %vm594, %v3318
        %3335 = vst.msk [vmem:[#allocation3 + $0x70] sm:$0xff] %vm594, %v3319
        %3336 = vst.msk [vmem:[#allocation3 + $0x78] sm:$0xff] %vm594, %v3320
        %v3337 = vld [vmem:[#allocation2 + $0x10] sm:$0xc]
        %v3338 = vld [vmem:[#allocation2 + $0x14] sm:$0xf]
        %v3339 = vld [vmem:[#allocation2 + $0x18] sm:$0x3]
        %v3340 = vld [vmem:[#allocation2 + $0x30] sm:$0xc]
        %v3341 = vld [vmem:[#allocation2 + $0x34] sm:$0xf]
        %v3342 = vld [vmem:[#allocation2 + $0x38] sm:$0x3]
        %v3343 = vld [vmem:[#allocation2 + $0x50] sm:$0xc]
        %v3344 = vld [vmem:[#allocation2 + $0x54] sm:$0xf]
        %v3345 = vld [vmem:[#allocation2 + $0x58] sm:$0x3]
        %v3346 = vld [vmem:[#allocation2 + $0x70] sm:$0xc]
        %v3347 = vld [vmem:[#allocation2 + $0x74] sm:$0xf]
        %v3348 = vld [vmem:[#allocation2 + $0x78] sm:$0x3]
        %v3349 = vld [vmem:[#allocation2 + $0x90] sm:$0xc]
        %v3350 = vld [vmem:[#allocation2 + $0x94] sm:$0xf]
        %v3351 = vld [vmem:[#allocation2 + $0x98] sm:$0x3]
        %v3352 = vld [vmem:[#allocation2 + $0xb0] sm:$0xc]
        %v3353 = vld [vmem:[#allocation2 + $0xb4] sm:$0xf]
        %v3354 = vld [vmem:[#allocation2 + $0xb8] sm:$0x3]
        %v3355 = vld [vmem:[#allocation2 + $0xd0] sm:$0xc]
        %v3356 = vld [vmem:[#allocation2 + $0xd4] sm:$0xf]
        %v3357 = vld [vmem:[#allocation2 + $0xd8] sm:$0x3]
        %v3358 = vld [vmem:[#allocation2 + $0xf0] sm:$0xc]
        %v3359 = vld [vmem:[#allocation2 + $0xf4] sm:$0xf]
        %v3360 = vld [vmem:[#allocation2 + $0xf8] sm:$0x3]
        %v3361 = vld [vmem:[#allocation3] sm:$0xff]
        %v3362 = vld [vmem:[#allocation3 + $0x8] sm:$0xff]
        %v3363 = vld [vmem:[#allocation3 + $0x10] sm:$0xff]
        %v3364 = vld [vmem:[#allocation3 + $0x18] sm:$0xff]
        %v3365 = vld [vmem:[#allocation3 + $0x20] sm:$0xff]
        %v3366 = vld [vmem:[#allocation3 + $0x28] sm:$0xff]
        %v3367 = vld [vmem:[#allocation3 + $0x30] sm:$0xff]
        %v3368 = vld [vmem:[#allocation3 + $0x38] sm:$0xff]
        %v3369 = vld [vmem:[#allocation3 + $0x40] sm:$0xff]
        %v3370 = vld [vmem:[#allocation3 + $0x48] sm:$0xff]
        %v3371 = vld [vmem:[#allocation3 + $0x50] sm:$0xff]
        %v3372 = vld [vmem:[#allocation3 + $0x58] sm:$0xff]
        %v3373 = vld [vmem:[#allocation3 + $0x60] sm:$0xff]
        %v3374 = vld [vmem:[#allocation3 + $0x68] sm:$0xff]
        %v3375 = vld [vmem:[#allocation3 + $0x70] sm:$0xff]
        %v3376 = vld [vmem:[#allocation3 + $0x78] sm:$0xff]
        %v3401 = vrot.slane %v3337, 6
        %v3402 = vrot.slane %v3401, 4
        %v3403 = vrot.slane %v3338, 6
        %v3404 = vsel %vm2981, %v3402, %v3403
        %v3405 = vrot.slane %v3403, 4
        %v3406 = vrot.slane %v3339, 6
        %v3407 = vsel %vm2981, %v3405, %v3406
        %v3408 = vrot.slane %v3340, 6
        %v3409 = vrot.slane %v3408, 4
        %v3410 = vrot.slane %v3341, 6
        %v3411 = vsel %vm2981, %v3409, %v3410
        %v3412 = vrot.slane %v3410, 4
        %v3413 = vrot.slane %v3342, 6
        %v3414 = vsel %vm2981, %v3412, %v3413
        %v3415 = vrot.slane %v3343, 6
        %v3416 = vrot.slane %v3415, 4
        %v3417 = vrot.slane %v3344, 6
        %v3418 = vsel %vm2981, %v3416, %v3417
        %v3419 = vrot.slane %v3417, 4
        %v3420 = vrot.slane %v3345, 6
        %v3421 = vsel %vm2981, %v3419, %v3420
        %v3422 = vrot.slane %v3346, 6
        %v3423 = vrot.slane %v3422, 4
        %v3424 = vrot.slane %v3347, 6
        %v3425 = vsel %vm2981, %v3423, %v3424
        %v3426 = vrot.slane %v3424, 4
        %v3427 = vrot.slane %v3348, 6
        %v3428 = vsel %vm2981, %v3426, %v3427
        %v3429 = vrot.slane %v3349, 6
        %v3430 = vrot.slane %v3429, 4
        %v3431 = vrot.slane %v3350, 6
        %v3432 = vsel %vm2981, %v3430, %v3431
        %v3433 = vrot.slane %v3431, 4
        %v3434 = vrot.slane %v3351, 6
        %v3435 = vsel %vm2981, %v3433, %v3434
        %v3436 = vrot.slane %v3352, 6
        %v3437 = vrot.slane %v3436, 4
        %v3438 = vrot.slane %v3353, 6
        %v3439 = vsel %vm2981, %v3437, %v3438
        %v3440 = vrot.slane %v3438, 4
        %v3441 = vrot.slane %v3354, 6
        %v3442 = vsel %vm2981, %v3440, %v3441
        %v3443 = vrot.slane %v3355, 6
        %v3444 = vrot.slane %v3443, 4
        %v3445 = vrot.slane %v3356, 6
        %v3446 = vsel %vm2981, %v3444, %v3445
        %v3447 = vrot.slane %v3445, 4
        %v3448 = vrot.slane %v3357, 6
        %v3449 = vsel %vm2981, %v3447, %v3448
        %v3450 = vrot.slane %v3358, 6
        %v3451 = vrot.slane %v3450, 4
        %v3452 = vrot.slane %v3359, 6
        %v3453 = vsel %vm2981, %v3451, %v3452
        %v3454 = vrot.slane %v3452, 4
        %v3455 = vrot.slane %v3360, 6
        %v3456 = vsel %vm2981, %v3454, %v3455
        %s3457 = scalar_lea.vmem %s5, 4
        %v3458 = vld [vmem:[%s3457] sm:$0x3]
        %v3459 = vunpack.c.l.b16 %v3404
        %v3460 = vunpack.c.l.b16 %v3407
        %v3461 = vunpack.c.l.b16 %v3411
        %v3462 = vunpack.c.l.b16 %v3414
        %v3463 = vunpack.c.l.b16 %v3418
        %v3464 = vunpack.c.l.b16 %v3421
        %v3465 = vunpack.c.l.b16 %v3425
        %v3466 = vunpack.c.l.b16 %v3428
        %v3467 = vunpack.c.l.b16 %v3432
        %v3468 = vunpack.c.l.b16 %v3435
        %v3469 = vunpack.c.l.b16 %v3439
        %v3470 = vunpack.c.l.b16 %v3442
        %v3471 = vunpack.c.l.b16 %v3446
        %v3472 = vunpack.c.l.b16 %v3449
        %v3473 = vunpack.c.l.b16 %v3453
        %v3474 = vunpack.c.l.b16 %v3456
        %v3475 = vpack.c.b16 %v3460, %v3459
        %v3476 = vpack.c.b16 %v3462, %v3461
        %v3477 = vpack.c.b16 %v3464, %v3463
        %v3478 = vpack.c.b16 %v3466, %v3465
        %v3479 = vpack.c.b16 %v3468, %v3467
        %v3480 = vpack.c.b16 %v3470, %v3469
        %v3481 = vpack.c.b16 %v3472, %v3471
        %v3482 = vpack.c.b16 %v3474, %v3473
        %v3484 = vsel %vm516, %v3475, 0
        %v3487 = vsel %vm516, %v3476, 0
        %v3490 = vsel %vm516, %v3477, 0
        %v3493 = vsel %vm516, %v3478, 0
        %v3496 = vsel %vm516, %v3479, 0
        %v3499 = vsel %vm516, %v3480, 0
        %v3502 = vsel %vm516, %v3481, 0
        %v3505 = vsel %vm516, %v3482, 0
        %v3508 = vsel %vm541, %v3458, 0
        %3510 = vmatpush.bf16.msra.mxu0 0
        %3511 = vmatpush.bf16.msra.mxu0 0
        %3512 = vmatpush.bf16.msra.mxu0 0
        %3513 = vmatpush.bf16.msra.mxu0 0
        %3514 = vmatpush.bf16.msra.mxu0 0
        %3515 = vmatpush.bf16.msra.mxu0 0
        %3516 = vmatpush.bf16.msra.mxu0 0
        %3517 = vmatpush.bf16.msra.mxu0 %v3508
        %3518 = vmatmul.bf16.gmra.mxu0 %v3484
        %v3519 = vpop.f32.mrf.mxu0
        %v3520 = vadd.f32 0.0, %v3519
        %v3521 = vpop.f32.mrf.mxu0
        %v3522 = vadd.f32 0.0, %v3521
        %3523 = vmatmul.bf16.gmra.mxu0 %v3487
        %v3524 = vpop.f32.mrf.mxu0
        %v3525 = vadd.f32 0.0, %v3524
        %v3526 = vpop.f32.mrf.mxu0
        %v3527 = vadd.f32 0.0, %v3526
        %3528 = vmatmul.bf16.gmra.mxu0 %v3490
        %v3529 = vpop.f32.mrf.mxu0
        %v3530 = vadd.f32 0.0, %v3529
        %v3531 = vpop.f32.mrf.mxu0
        %v3532 = vadd.f32 0.0, %v3531
        %3533 = vmatmul.bf16.gmra.mxu0 %v3493
        %v3534 = vpop.f32.mrf.mxu0
        %v3535 = vadd.f32 0.0, %v3534
        %v3536 = vpop.f32.mrf.mxu0
        %v3537 = vadd.f32 0.0, %v3536
        %3538 = vmatmul.bf16.gmra.mxu0 %v3496
        %v3539 = vpop.f32.mrf.mxu0
        %v3540 = vadd.f32 0.0, %v3539
        %v3541 = vpop.f32.mrf.mxu0
        %v3542 = vadd.f32 0.0, %v3541
        %3543 = vmatmul.bf16.gmra.mxu0 %v3499
        %v3544 = vpop.f32.mrf.mxu0
        %v3545 = vadd.f32 0.0, %v3544
        %v3546 = vpop.f32.mrf.mxu0
        %v3547 = vadd.f32 0.0, %v3546
        %3548 = vmatmul.bf16.gmra.mxu0 %v3502
        %v3549 = vpop.f32.mrf.mxu0
        %v3550 = vadd.f32 0.0, %v3549
        %v3551 = vpop.f32.mrf.mxu0
        %v3552 = vadd.f32 0.0, %v3551
        %3553 = vmatmul.bf16.gmra.mxu0 %v3505
        %v3554 = vpop.f32.mrf.mxu0
        %v3555 = vadd.f32 0.0, %v3554
        %v3556 = vpop.f32.mrf.mxu0
        %v3557 = vadd.f32 0.0, %v3556
        %3558 = vdwg.mxu0
        %v3559 = vadd.f32 %v3361, %v3520
        %v3560 = vadd.f32 %v3362, %v3522
        %v3561 = vadd.f32 %v3363, %v3525
        %v3562 = vadd.f32 %v3364, %v3527
        %v3563 = vadd.f32 %v3365, %v3530
        %v3564 = vadd.f32 %v3366, %v3532
        %v3565 = vadd.f32 %v3367, %v3535
        %v3566 = vadd.f32 %v3368, %v3537
        %v3567 = vadd.f32 %v3369, %v3540
        %v3568 = vadd.f32 %v3370, %v3542
        %v3569 = vadd.f32 %v3371, %v3545
        %v3570 = vadd.f32 %v3372, %v3547
        %v3571 = vadd.f32 %v3373, %v3550
        %v3572 = vadd.f32 %v3374, %v3552
        %v3573 = vadd.f32 %v3375, %v3555
        %v3574 = vadd.f32 %v3376, %v3557
        %3575 = vst.msk [vmem:[#allocation3] sm:$0xff] %vm594, %v3559
        %3576 = vst.msk [vmem:[#allocation3 + $0x8] sm:$0xff] %vm594, %v3560
        %3577 = vst.msk [vmem:[#allocation3 + $0x10] sm:$0xff] %vm594, %v3561
        %3578 = vst.msk [vmem:[#allocation3 + $0x18] sm:$0xff] %vm594, %v3562
        %3579 = vst.msk [vmem:[#allocation3 + $0x20] sm:$0xff] %vm594, %v3563
        %3580 = vst.msk [vmem:[#allocation3 + $0x28] sm:$0xff] %vm594, %v3564
        %3581 = vst.msk [vmem:[#allocation3 + $0x30] sm:$0xff] %vm594, %v3565
        %3582 = vst.msk [vmem:[#allocation3 + $0x38] sm:$0xff] %vm594, %v3566
        %3583 = vst.msk [vmem:[#allocation3 + $0x40] sm:$0xff] %vm594, %v3567
        %3584 = vst.msk [vmem:[#allocation3 + $0x48] sm:$0xff] %vm594, %v3568
        %3585 = vst.msk [vmem:[#allocation3 + $0x50] sm:$0xff] %vm594, %v3569
        %3586 = vst.msk [vmem:[#allocation3 + $0x58] sm:$0xff] %vm594, %v3570
        %3587 = vst.msk [vmem:[#allocation3 + $0x60] sm:$0xff] %vm594, %v3571
        %3588 = vst.msk [vmem:[#allocation3 + $0x68] sm:$0xff] %vm594, %v3572
        %3589 = vst.msk [vmem:[#allocation3 + $0x70] sm:$0xff] %vm594, %v3573
        %3590 = vst.msk [vmem:[#allocation3 + $0x78] sm:$0xff] %vm594, %v3574
        %v3591 = vld [vmem:[%s454] sm:$0xf]
        %v3592 = vld [vmem:[%s454 + $0x4] sm:$0xf]
        %v3593 = vld [vmem:[%s454 + $0x8] sm:$0xf]
        %v3594 = vld [vmem:[%s454 + $0xc] sm:$0xf]
        %v3595 = vld [vmem:[%s454 + $0x10] sm:$0xf]
        %v3596 = vld [vmem:[%s454 + $0x14] sm:$0xf]
        %v3597 = vld [vmem:[%s454 + $0x18] sm:$0xf]
        %v3598 = vld [vmem:[%s454 + $0x1c] sm:$0xf]
        %v3599 = vld [vmem:[%s454 + $0x20] sm:$0xf]
        %v3600 = vld [vmem:[%s454 + $0x24] sm:$0xf]
        %v3601 = vld [vmem:[%s454 + $0x28] sm:$0xf]
        %v3602 = vld [vmem:[%s454 + $0x2c] sm:$0xf]
        %v3603 = vld [vmem:[%s454 + $0x30] sm:$0xf]
        %v3604 = vld [vmem:[%s454 + $0x34] sm:$0xf]
        %v3605 = vld [vmem:[%s454 + $0x38] sm:$0xf]
        %v3606 = vld [vmem:[%s454 + $0x3c] sm:$0xf]
        %3607 = vst.msk [vmem:[#allocation2 + $0xc] sm:$0xf] %vm402, %v3591
        %3608 = vst.msk [vmem:[#allocation2 + $0x10] sm:$0xf] %vm402, %v3592
        %3609 = vst.msk [vmem:[#allocation2 + $0x2c] sm:$0xf] %vm402, %v3593
        %3610 = vst.msk [vmem:[#allocation2 + $0x30] sm:$0xf] %vm402, %v3594
        %3611 = vst.msk [vmem:[#allocation2 + $0x4c] sm:$0xf] %vm402, %v3595
        %3612 = vst.msk [vmem:[#allocation2 + $0x50] sm:$0xf] %vm402, %v3596
        %3613 = vst.msk [vmem:[#allocation2 + $0x6c] sm:$0xf] %vm402, %v3597
        %3614 = vst.msk [vmem:[#allocation2 + $0x70] sm:$0xf] %vm402, %v3598
        %3615 = vst.msk [vmem:[#allocation2 + $0x8c] sm:$0xf] %vm402, %v3599
        %3616 = vst.msk [vmem:[#allocation2 + $0x90] sm:$0xf] %vm402, %v3600
        %3617 = vst.msk [vmem:[#allocation2 + $0xac] sm:$0xf] %vm402, %v3601
        %3618 = vst.msk [vmem:[#allocation2 + $0xb0] sm:$0xf] %vm402, %v3602
        %3619 = vst.msk [vmem:[#allocation2 + $0xcc] sm:$0xf] %vm402, %v3603
        %3620 = vst.msk [vmem:[#allocation2 + $0xd0] sm:$0xf] %vm402, %v3604
        %3621 = vst.msk [vmem:[#allocation2 + $0xec] sm:$0xf] %vm402, %v3605
        %3622 = vst.msk [vmem:[#allocation2 + $0xf0] sm:$0xf] %vm402, %v3606
        %v3623 = vld [vmem:[#allocation2 + $0x4] sm:$0xc]
        %v3624 = vld [vmem:[#allocation2 + $0x8] sm:$0xf]
        %v3625 = vld [vmem:[#allocation2 + $0xc] sm:$0x3]
        %v3626 = vld [vmem:[#allocation2 + $0x24] sm:$0xc]
        %v3627 = vld [vmem:[#allocation2 + $0x28] sm:$0xf]
        %v3628 = vld [vmem:[#allocation2 + $0x2c] sm:$0x3]
        %v3629 = vld [vmem:[#allocation2 + $0x44] sm:$0xc]
        %v3630 = vld [vmem:[#allocation2 + $0x48] sm:$0xf]
        %v3631 = vld [vmem:[#allocation2 + $0x4c] sm:$0x3]
        %v3632 = vld [vmem:[#allocation2 + $0x64] sm:$0xc]
        %v3633 = vld [vmem:[#allocation2 + $0x68] sm:$0xf]
        %v3634 = vld [vmem:[#allocation2 + $0x6c] sm:$0x3]
        %v3635 = vld [vmem:[#allocation2 + $0x84] sm:$0xc]
        %v3636 = vld [vmem:[#allocation2 + $0x88] sm:$0xf]
        %v3637 = vld [vmem:[#allocation2 + $0x8c] sm:$0x3]
        %v3638 = vld [vmem:[#allocation2 + $0xa4] sm:$0xc]
        %v3639 = vld [vmem:[#allocation2 + $0xa8] sm:$0xf]
        %v3640 = vld [vmem:[#allocation2 + $0xac] sm:$0x3]
        %v3641 = vld [vmem:[#allocation2 + $0xc4] sm:$0xc]
        %v3642 = vld [vmem:[#allocation2 + $0xc8] sm:$0xf]
        %v3643 = vld [vmem:[#allocation2 + $0xcc] sm:$0x3]
        %v3644 = vld [vmem:[#allocation2 + $0xe4] sm:$0xc]
        %v3645 = vld [vmem:[#allocation2 + $0xe8] sm:$0xf]
        %v3646 = vld [vmem:[#allocation2 + $0xec] sm:$0x3]
        %v3647 = vld [vmem:[#allocation3] sm:$0xff]
        %v3648 = vld [vmem:[#allocation3 + $0x8] sm:$0xff]
        %v3649 = vld [vmem:[#allocation3 + $0x10] sm:$0xff]
        %v3650 = vld [vmem:[#allocation3 + $0x18] sm:$0xff]
        %v3651 = vld [vmem:[#allocation3 + $0x20] sm:$0xff]
        %v3652 = vld [vmem:[#allocation3 + $0x28] sm:$0xff]
        %v3653 = vld [vmem:[#allocation3 + $0x30] sm:$0xff]
        %v3654 = vld [vmem:[#allocation3 + $0x38] sm:$0xff]
        %v3655 = vld [vmem:[#allocation3 + $0x40] sm:$0xff]
        %v3656 = vld [vmem:[#allocation3 + $0x48] sm:$0xff]
        %v3657 = vld [vmem:[#allocation3 + $0x50] sm:$0xff]
        %v3658 = vld [vmem:[#allocation3 + $0x58] sm:$0xff]
        %v3659 = vld [vmem:[#allocation3 + $0x60] sm:$0xff]
        %v3660 = vld [vmem:[#allocation3 + $0x68] sm:$0xff]
        %v3661 = vld [vmem:[#allocation3 + $0x70] sm:$0xff]
        %v3662 = vld [vmem:[#allocation3 + $0x78] sm:$0xff]
        %v3687 = vrot.slane %v3623, 6
        %v3688 = vrot.slane %v3687, 4
        %v3689 = vrot.slane %v3624, 6
        %v3690 = vsel %vm2981, %v3688, %v3689
        %v3691 = vrot.slane %v3689, 4
        %v3692 = vrot.slane %v3625, 6
        %v3693 = vsel %vm2981, %v3691, %v3692
        %v3694 = vrot.slane %v3626, 6
        %v3695 = vrot.slane %v3694, 4
        %v3696 = vrot.slane %v3627, 6
        %v3697 = vsel %vm2981, %v3695, %v3696
        %v3698 = vrot.slane %v3696, 4
        %v3699 = vrot.slane %v3628, 6
        %v3700 = vsel %vm2981, %v3698, %v3699
        %v3701 = vrot.slane %v3629, 6
        %v3702 = vrot.slane %v3701, 4
        %v3703 = vrot.slane %v3630, 6
        %v3704 = vsel %vm2981, %v3702, %v3703
        %v3705 = vrot.slane %v3703, 4
        %v3706 = vrot.slane %v3631, 6
        %v3707 = vsel %vm2981, %v3705, %v3706
        %v3708 = vrot.slane %v3632, 6
        %v3709 = vrot.slane %v3708, 4
        %v3710 = vrot.slane %v3633, 6
        %v3711 = vsel %vm2981, %v3709, %v3710
        %v3712 = vrot.slane %v3710, 4
        %v3713 = vrot.slane %v3634, 6
        %v3714 = vsel %vm2981, %v3712, %v3713
        %v3715 = vrot.slane %v3635, 6
        %v3716 = vrot.slane %v3715, 4
        %v3717 = vrot.slane %v3636, 6
        %v3718 = vsel %vm2981, %v3716, %v3717
        %v3719 = vrot.slane %v3717, 4
        %v3720 = vrot.slane %v3637, 6
        %v3721 = vsel %vm2981, %v3719, %v3720
        %v3722 = vrot.slane %v3638, 6
        %v3723 = vrot.slane %v3722, 4
        %v3724 = vrot.slane %v3639, 6
        %v3725 = vsel %vm2981, %v3723, %v3724
        %v3726 = vrot.slane %v3724, 4
        %v3727 = vrot.slane %v3640, 6
        %v3728 = vsel %vm2981, %v3726, %v3727
        %v3729 = vrot.slane %v3641, 6
        %v3730 = vrot.slane %v3729, 4
        %v3731 = vrot.slane %v3642, 6
        %v3732 = vsel %vm2981, %v3730, %v3731
        %v3733 = vrot.slane %v3731, 4
        %v3734 = vrot.slane %v3643, 6
        %v3735 = vsel %vm2981, %v3733, %v3734
        %v3736 = vrot.slane %v3644, 6
        %v3737 = vrot.slane %v3736, 4
        %v3738 = vrot.slane %v3645, 6
        %v3739 = vsel %vm2981, %v3737, %v3738
        %v3740 = vrot.slane %v3738, 4
        %v3741 = vrot.slane %v3646, 6
        %v3742 = vsel %vm2981, %v3740, %v3741
        %s3743 = scalar_lea.vmem %s5, 6
        %v3744 = vld [vmem:[%s3743] sm:$0x3]
        %v3745 = vunpack.c.l.b16 %v3690
        %v3746 = vunpack.c.l.b16 %v3693
        %v3747 = vunpack.c.l.b16 %v3697
        %v3748 = vunpack.c.l.b16 %v3700
        %v3749 = vunpack.c.l.b16 %v3704
        %v3750 = vunpack.c.l.b16 %v3707
        %v3751 = vunpack.c.l.b16 %v3711
        %v3752 = vunpack.c.l.b16 %v3714
        %v3753 = vunpack.c.l.b16 %v3718
        %v3754 = vunpack.c.l.b16 %v3721
        %v3755 = vunpack.c.l.b16 %v3725
        %v3756 = vunpack.c.l.b16 %v3728
        %v3757 = vunpack.c.l.b16 %v3732
        %v3758 = vunpack.c.l.b16 %v3735
        %v3759 = vunpack.c.l.b16 %v3739
        %v3760 = vunpack.c.l.b16 %v3742
        %v3761 = vpack.c.b16 %v3746, %v3745
        %v3762 = vpack.c.b16 %v3748, %v3747
        %v3763 = vpack.c.b16 %v3750, %v3749
        %v3764 = vpack.c.b16 %v3752, %v3751
        %v3765 = vpack.c.b16 %v3754, %v3753
        %v3766 = vpack.c.b16 %v3756, %v3755
        %v3767 = vpack.c.b16 %v3758, %v3757
        %v3768 = vpack.c.b16 %v3760, %v3759
        %v3770 = vsel %vm516, %v3761, 0
        %v3773 = vsel %vm516, %v3762, 0
        %v3776 = vsel %vm516, %v3763, 0
        %v3779 = vsel %vm516, %v3764, 0
        %v3782 = vsel %vm516, %v3765, 0
        %v3785 = vsel %vm516, %v3766, 0
        %v3788 = vsel %vm516, %v3767, 0
        %v3791 = vsel %vm516, %v3768, 0
        %v3794 = vsel %vm541, %v3744, 0
        %3796 = vmatpush.bf16.msra.mxu0 0
        %3797 = vmatpush.bf16.msra.mxu0 0
        %3798 = vmatpush.bf16.msra.mxu0 0
        %3799 = vmatpush.bf16.msra.mxu0 0
        %3800 = vmatpush.bf16.msra.mxu0 0
        %3801 = vmatpush.bf16.msra.mxu0 0
        %3802 = vmatpush.bf16.msra.mxu0 0
        %3803 = vmatpush.bf16.msra.mxu0 %v3794
        %3804 = vmatmul.bf16.gmra.mxu0 %v3770
        %v3805 = vpop.f32.mrf.mxu0
        %v3806 = vadd.f32 0.0, %v3805
        %v3807 = vpop.f32.mrf.mxu0
        %v3808 = vadd.f32 0.0, %v3807
        %3809 = vmatmul.bf16.gmra.mxu0 %v3773
        %v3810 = vpop.f32.mrf.mxu0
        %v3811 = vadd.f32 0.0, %v3810
        %v3812 = vpop.f32.mrf.mxu0
        %v3813 = vadd.f32 0.0, %v3812
        %3814 = vmatmul.bf16.gmra.mxu0 %v3776
        %v3815 = vpop.f32.mrf.mxu0
        %v3816 = vadd.f32 0.0, %v3815
        %v3817 = vpop.f32.mrf.mxu0
        %v3818 = vadd.f32 0.0, %v3817
        %3819 = vmatmul.bf16.gmra.mxu0 %v3779
        %v3820 = vpop.f32.mrf.mxu0
        %v3821 = vadd.f32 0.0, %v3820
        %v3822 = vpop.f32.mrf.mxu0
        %v3823 = vadd.f32 0.0, %v3822
        %3824 = vmatmul.bf16.gmra.mxu0 %v3782
        %v3825 = vpop.f32.mrf.mxu0
        %v3826 = vadd.f32 0.0, %v3825
        %v3827 = vpop.f32.mrf.mxu0
        %v3828 = vadd.f32 0.0, %v3827
        %3829 = vmatmul.bf16.gmra.mxu0 %v3785
        %v3830 = vpop.f32.mrf.mxu0
        %v3831 = vadd.f32 0.0, %v3830
        %v3832 = vpop.f32.mrf.mxu0
        %v3833 = vadd.f32 0.0, %v3832
        %3834 = vmatmul.bf16.gmra.mxu0 %v3788
        %v3835 = vpop.f32.mrf.mxu0
        %v3836 = vadd.f32 0.0, %v3835
        %v3837 = vpop.f32.mrf.mxu0
        %v3838 = vadd.f32 0.0, %v3837
        %3839 = vmatmul.bf16.gmra.mxu0 %v3791
        %v3840 = vpop.f32.mrf.mxu0
        %v3841 = vadd.f32 0.0, %v3840
        %v3842 = vpop.f32.mrf.mxu0
        %v3843 = vadd.f32 0.0, %v3842
        %3844 = vdwg.mxu0
        %v3845 = vadd.f32 %v3647, %v3806
        %v3846 = vadd.f32 %v3648, %v3808
        %v3847 = vadd.f32 %v3649, %v3811
        %v3848 = vadd.f32 %v3650, %v3813
        %v3849 = vadd.f32 %v3651, %v3816
        %v3850 = vadd.f32 %v3652, %v3818
        %v3851 = vadd.f32 %v3653, %v3821
        %v3852 = vadd.f32 %v3654, %v3823
        %v3853 = vadd.f32 %v3655, %v3826
        %v3854 = vadd.f32 %v3656, %v3828
        %v3855 = vadd.f32 %v3657, %v3831
        %v3856 = vadd.f32 %v3658, %v3833
        %v3857 = vadd.f32 %v3659, %v3836
        %v3858 = vadd.f32 %v3660, %v3838
        %v3859 = vadd.f32 %v3661, %v3841
        %v3860 = vadd.f32 %v3662, %v3843
        %3861 = vst.msk [vmem:[#allocation3] sm:$0xff] %vm594, %v3845
        %3862 = vst.msk [vmem:[#allocation3 + $0x8] sm:$0xff] %vm594, %v3846
        %3863 = vst.msk [vmem:[#allocation3 + $0x10] sm:$0xff] %vm594, %v3847
        %3864 = vst.msk [vmem:[#allocation3 + $0x18] sm:$0xff] %vm594, %v3848
        %3865 = vst.msk [vmem:[#allocation3 + $0x20] sm:$0xff] %vm594, %v3849
        %3866 = vst.msk [vmem:[#allocation3 + $0x28] sm:$0xff] %vm594, %v3850
        %3867 = vst.msk [vmem:[#allocation3 + $0x30] sm:$0xff] %vm594, %v3851
        %3868 = vst.msk [vmem:[#allocation3 + $0x38] sm:$0xff] %vm594, %v3852
        %3869 = vst.msk [vmem:[#allocation3 + $0x40] sm:$0xff] %vm594, %v3853
        %3870 = vst.msk [vmem:[#allocation3 + $0x48] sm:$0xff] %vm594, %v3854
        %3871 = vst.msk [vmem:[#allocation3 + $0x50] sm:$0xff] %vm594, %v3855
        %3872 = vst.msk [vmem:[#allocation3 + $0x58] sm:$0xff] %vm594, %v3856
        %3873 = vst.msk [vmem:[#allocation3 + $0x60] sm:$0xff] %vm594, %v3857
        %3874 = vst.msk [vmem:[#allocation3 + $0x68] sm:$0xff] %vm594, %v3858
        %3875 = vst.msk [vmem:[#allocation3 + $0x70] sm:$0xff] %vm594, %v3859
        %3876 = vst.msk [vmem:[#allocation3 + $0x78] sm:$0xff] %vm594, %v3860
        %v3877 = vld [vmem:[#allocation3] sm:$0xff]
        %v3878 = vld [vmem:[#allocation3 + $0x8] sm:$0xff]
        %v3879 = vld [vmem:[#allocation3 + $0x10] sm:$0xff]
        %v3880 = vld [vmem:[#allocation3 + $0x18] sm:$0xff]
        %v3881 = vld [vmem:[#allocation3 + $0x20] sm:$0xff]
        %v3882 = vld [vmem:[#allocation3 + $0x28] sm:$0xff]
        %v3883 = vld [vmem:[#allocation3 + $0x30] sm:$0xff]
        %v3884 = vld [vmem:[#allocation3 + $0x38] sm:$0xff]
        %v3885 = vld [vmem:[#allocation3 + $0x40] sm:$0xff]
        %v3886 = vld [vmem:[#allocation3 + $0x48] sm:$0xff]
        %v3887 = vld [vmem:[#allocation3 + $0x50] sm:$0xff]
        %v3888 = vld [vmem:[#allocation3 + $0x58] sm:$0xff]
        %v3889 = vld [vmem:[#allocation3 + $0x60] sm:$0xff]
        %v3890 = vld [vmem:[#allocation3 + $0x68] sm:$0xff]
        %v3891 = vld [vmem:[#allocation3 + $0x70] sm:$0xff]
        %v3892 = vld [vmem:[#allocation3 + $0x78] sm:$0xff]
        %s3893 = scalar_lea.vmem %s5, 8
        %v3894 = vld [vmem:[%s3893] sm:$0x3]
        %v3911 = vunpack.c.l.b16 %v3591
        %v3912 = vunpack.c.l.b16 %v3592
        %v3913 = vunpack.c.l.b16 %v3593
        %v3914 = vunpack.c.l.b16 %v3594
        %v3915 = vunpack.c.l.b16 %v3595
        %v3916 = vunpack.c.l.b16 %v3596
        %v3917 = vunpack.c.l.b16 %v3597
        %v3918 = vunpack.c.l.b16 %v3598
        %v3919 = vunpack.c.l.b16 %v3599
        %v3920 = vunpack.c.l.b16 %v3600
        %v3921 = vunpack.c.l.b16 %v3601
        %v3922 = vunpack.c.l.b16 %v3602
        %v3923 = vunpack.c.l.b16 %v3603
        %v3924 = vunpack.c.l.b16 %v3604
        %v3925 = vunpack.c.l.b16 %v3605
        %v3926 = vunpack.c.l.b16 %v3606
        %v3927 = vpack.c.b16 %v3912, %v3911
        %v3928 = vpack.c.b16 %v3914, %v3913
        %v3929 = vpack.c.b16 %v3916, %v3915
        %v3930 = vpack.c.b16 %v3918, %v3917
        %v3931 = vpack.c.b16 %v3920, %v3919
        %v3932 = vpack.c.b16 %v3922, %v3921
        %v3933 = vpack.c.b16 %v3924, %v3923
        %v3934 = vpack.c.b16 %v3926, %v3925
        %v3936 = vsel %vm516, %v3927, 0
        %v3939 = vsel %vm516, %v3928, 0
        %v3942 = vsel %vm516, %v3929, 0
        %v3945 = vsel %vm516, %v3930, 0
        %v3948 = vsel %vm516, %v3931, 0
        %v3951 = vsel %vm516, %v3932, 0
        %v3954 = vsel %vm516, %v3933, 0
        %v3957 = vsel %vm516, %v3934, 0
        %v3960 = vsel %vm541, %v3894, 0
        %3962 = vmatpush.bf16.msra.mxu0 0
        %3963 = vmatpush.bf16.msra.mxu0 0
        %3964 = vmatpush.bf16.msra.mxu0 0
        %3965 = vmatpush.bf16.msra.mxu0 0
        %3966 = vmatpush.bf16.msra.mxu0 0
        %3967 = vmatpush.bf16.msra.mxu0 0
        %3968 = vmatpush.bf16.msra.mxu0 0
        %3969 = vmatpush.bf16.msra.mxu0 %v3960
        %3970 = vmatmul.bf16.gmra.mxu0 %v3936
        %v3971 = vpop.f32.mrf.mxu0
        %v3972 = vadd.f32 0.0, %v3971
        %v3973 = vpop.f32.mrf.mxu0
        %v3974 = vadd.f32 0.0, %v3973
        %3975 = vmatmul.bf16.gmra.mxu0 %v3939
        %v3976 = vpop.f32.mrf.mxu0
        %v3977 = vadd.f32 0.0, %v3976
        %v3978 = vpop.f32.mrf.mxu0
        %v3979 = vadd.f32 0.0, %v3978
        %3980 = vmatmul.bf16.gmra.mxu0 %v3942
        %v3981 = vpop.f32.mrf.mxu0
        %v3982 = vadd.f32 0.0, %v3981
        %v3983 = vpop.f32.mrf.mxu0
        %v3984 = vadd.f32 0.0, %v3983
        %3985 = vmatmul.bf16.gmra.mxu0 %v3945
        %v3986 = vpop.f32.mrf.mxu0
        %v3987 = vadd.f32 0.0, %v3986
        %v3988 = vpop.f32.mrf.mxu0
        %v3989 = vadd.f32 0.0, %v3988
        %3990 = vmatmul.bf16.gmra.mxu0 %v3948
        %v3991 = vpop.f32.mrf.mxu0
        %v3992 = vadd.f32 0.0, %v3991
        %v3993 = vpop.f32.mrf.mxu0
        %v3994 = vadd.f32 0.0, %v3993
        %3995 = vmatmul.bf16.gmra.mxu0 %v3951
        %v3996 = vpop.f32.mrf.mxu0
        %v3997 = vadd.f32 0.0, %v3996
        %v3998 = vpop.f32.mrf.mxu0
        %v3999 = vadd.f32 0.0, %v3998
        %4000 = vmatmul.bf16.gmra.mxu0 %v3954
        %v4001 = vpop.f32.mrf.mxu0
        %v4002 = vadd.f32 0.0, %v4001
        %v4003 = vpop.f32.mrf.mxu0
        %v4004 = vadd.f32 0.0, %v4003
        %4005 = vmatmul.bf16.gmra.mxu0 %v3957
        %v4006 = vpop.f32.mrf.mxu0
        %v4007 = vadd.f32 0.0, %v4006
        %v4008 = vpop.f32.mrf.mxu0
        %v4009 = vadd.f32 0.0, %v4008
        %4010 = vdwg.mxu0
        %v4011 = vadd.f32 %v3877, %v3972
        %v4012 = vadd.f32 %v3878, %v3974
        %v4013 = vadd.f32 %v3879, %v3977
        %v4014 = vadd.f32 %v3880, %v3979
        %v4015 = vadd.f32 %v3881, %v3982
        %v4016 = vadd.f32 %v3882, %v3984
        %v4017 = vadd.f32 %v3883, %v3987
        %v4018 = vadd.f32 %v3884, %v3989
        %v4019 = vadd.f32 %v3885, %v3992
        %v4020 = vadd.f32 %v3886, %v3994
        %v4021 = vadd.f32 %v3887, %v3997
        %v4022 = vadd.f32 %v3888, %v3999
        %v4023 = vadd.f32 %v3889, %v4002
        %v4024 = vadd.f32 %v3890, %v4004
        %v4025 = vadd.f32 %v3891, %v4007
        %v4026 = vadd.f32 %v3892, %v4009
        %4027 = vst.msk [vmem:[#allocation3] sm:$0xff] %vm594, %v4011
        %4028 = vst.msk [vmem:[#allocation3 + $0x8] sm:$0xff] %vm594, %v4012
        %4029 = vst.msk [vmem:[#allocation3 + $0x10] sm:$0xff] %vm594, %v4013
        %4030 = vst.msk [vmem:[#allocation3 + $0x18] sm:$0xff] %vm594, %v4014
        %4031 = vst.msk [vmem:[#allocation3 + $0x20] sm:$0xff] %vm594, %v4015
        %4032 = vst.msk [vmem:[#allocation3 + $0x28] sm:$0xff] %vm594, %v4016
        %4033 = vst.msk [vmem:[#allocation3 + $0x30] sm:$0xff] %vm594, %v4017
        %4034 = vst.msk [vmem:[#allocation3 + $0x38] sm:$0xff] %vm594, %v4018
        %4035 = vst.msk [vmem:[#allocation3 + $0x40] sm:$0xff] %vm594, %v4019
        %4036 = vst.msk [vmem:[#allocation3 + $0x48] sm:$0xff] %vm594, %v4020
        %4037 = vst.msk [vmem:[#allocation3 + $0x50] sm:$0xff] %vm594, %v4021
        %4038 = vst.msk [vmem:[#allocation3 + $0x58] sm:$0xff] %vm594, %v4022
        %4039 = vst.msk [vmem:[#allocation3 + $0x60] sm:$0xff] %vm594, %v4023
        %4040 = vst.msk [vmem:[#allocation3 + $0x68] sm:$0xff] %vm594, %v4024
        %4041 = vst.msk [vmem:[#allocation3 + $0x70] sm:$0xff] %vm594, %v4025
        %4042 = vst.msk [vmem:[#allocation3 + $0x78] sm:$0xff] %vm594, %v4026
        %v4043 = vld [vmem:[#allocation2 + $0x10] sm:$0xc]
        %v4044 = vld [vmem:[#allocation2 + $0x14] sm:$0xf]
        %v4045 = vld [vmem:[#allocation2 + $0x18] sm:$0x3]
        %v4046 = vld [vmem:[#allocation2 + $0x30] sm:$0xc]
        %v4047 = vld [vmem:[#allocation2 + $0x34] sm:$0xf]
        %v4048 = vld [vmem:[#allocation2 + $0x38] sm:$0x3]
        %v4049 = vld [vmem:[#allocation2 + $0x50] sm:$0xc]
        %v4050 = vld [vmem:[#allocation2 + $0x54] sm:$0xf]
        %v4051 = vld [vmem:[#allocation2 + $0x58] sm:$0x3]
        %v4052 = vld [vmem:[#allocation2 + $0x70] sm:$0xc]
        %v4053 = vld [vmem:[#allocation2 + $0x74] sm:$0xf]
        %v4054 = vld [vmem:[#allocation2 + $0x78] sm:$0x3]
        %v4055 = vld [vmem:[#allocation2 + $0x90] sm:$0xc]
        %v4056 = vld [vmem:[#allocation2 + $0x94] sm:$0xf]
        %v4057 = vld [vmem:[#allocation2 + $0x98] sm:$0x3]
        %v4058 = vld [vmem:[#allocation2 + $0xb0] sm:$0xc]
        %v4059 = vld [vmem:[#allocation2 + $0xb4] sm:$0xf]
        %v4060 = vld [vmem:[#allocation2 + $0xb8] sm:$0x3]
        %v4061 = vld [vmem:[#allocation2 + $0xd0] sm:$0xc]
        %v4062 = vld [vmem:[#allocation2 + $0xd4] sm:$0xf]
        %v4063 = vld [vmem:[#allocation2 + $0xd8] sm:$0x3]
        %v4064 = vld [vmem:[#allocation2 + $0xf0] sm:$0xc]
        %v4065 = vld [vmem:[#allocation2 + $0xf4] sm:$0xf]
        %v4066 = vld [vmem:[#allocation2 + $0xf8] sm:$0x3]
        %v4067 = vld [vmem:[#allocation3] sm:$0xff]
        %v4068 = vld [vmem:[#allocation3 + $0x8] sm:$0xff]
        %v4069 = vld [vmem:[#allocation3 + $0x10] sm:$0xff]
        %v4070 = vld [vmem:[#allocation3 + $0x18] sm:$0xff]
        %v4071 = vld [vmem:[#allocation3 + $0x20] sm:$0xff]
        %v4072 = vld [vmem:[#allocation3 + $0x28] sm:$0xff]
        %v4073 = vld [vmem:[#allocation3 + $0x30] sm:$0xff]
        %v4074 = vld [vmem:[#allocation3 + $0x38] sm:$0xff]
        %v4075 = vld [vmem:[#allocation3 + $0x40] sm:$0xff]
        %v4076 = vld [vmem:[#allocation3 + $0x48] sm:$0xff]
        %v4077 = vld [vmem:[#allocation3 + $0x50] sm:$0xff]
        %v4078 = vld [vmem:[#allocation3 + $0x58] sm:$0xff]
        %v4079 = vld [vmem:[#allocation3 + $0x60] sm:$0xff]
        %v4080 = vld [vmem:[#allocation3 + $0x68] sm:$0xff]
        %v4081 = vld [vmem:[#allocation3 + $0x70] sm:$0xff]
        %v4082 = vld [vmem:[#allocation3 + $0x78] sm:$0xff]
        %v4107 = vrot.slane %v4043, 6
        %v4108 = vrot.slane %v4107, 4
        %v4109 = vrot.slane %v4044, 6
        %v4110 = vsel %vm2981, %v4108, %v4109
        %v4111 = vrot.slane %v4109, 4
        %v4112 = vrot.slane %v4045, 6
        %v4113 = vsel %vm2981, %v4111, %v4112
        %v4114 = vrot.slane %v4046, 6
        %v4115 = vrot.slane %v4114, 4
        %v4116 = vrot.slane %v4047, 6
        %v4117 = vsel %vm2981, %v4115, %v4116
        %v4118 = vrot.slane %v4116, 4
        %v4119 = vrot.slane %v4048, 6
        %v4120 = vsel %vm2981, %v4118, %v4119
        %v4121 = vrot.slane %v4049, 6
        %v4122 = vrot.slane %v4121, 4
        %v4123 = vrot.slane %v4050, 6
        %v4124 = vsel %vm2981, %v4122, %v4123
        %v4125 = vrot.slane %v4123, 4
        %v4126 = vrot.slane %v4051, 6
        %v4127 = vsel %vm2981, %v4125, %v4126
        %v4128 = vrot.slane %v4052, 6
        %v4129 = vrot.slane %v4128, 4
        %v4130 = vrot.slane %v4053, 6
        %v4131 = vsel %vm2981, %v4129, %v4130
        %v4132 = vrot.slane %v4130, 4
        %v4133 = vrot.slane %v4054, 6
        %v4134 = vsel %vm2981, %v4132, %v4133
        %v4135 = vrot.slane %v4055, 6
        %v4136 = vrot.slane %v4135, 4
        %v4137 = vrot.slane %v4056, 6
        %v4138 = vsel %vm2981, %v4136, %v4137
        %v4139 = vrot.slane %v4137, 4
        %v4140 = vrot.slane %v4057, 6
        %v4141 = vsel %vm2981, %v4139, %v4140
        %v4142 = vrot.slane %v4058, 6
        %v4143 = vrot.slane %v4142, 4
        %v4144 = vrot.slane %v4059, 6
        %v4145 = vsel %vm2981, %v4143, %v4144
        %v4146 = vrot.slane %v4144, 4
        %v4147 = vrot.slane %v4060, 6
        %v4148 = vsel %vm2981, %v4146, %v4147
        %v4149 = vrot.slane %v4061, 6
        %v4150 = vrot.slane %v4149, 4
        %v4151 = vrot.slane %v4062, 6
        %v4152 = vsel %vm2981, %v4150, %v4151
        %v4153 = vrot.slane %v4151, 4
        %v4154 = vrot.slane %v4063, 6
        %v4155 = vsel %vm2981, %v4153, %v4154
        %v4156 = vrot.slane %v4064, 6
        %v4157 = vrot.slane %v4156, 4
        %v4158 = vrot.slane %v4065, 6
        %v4159 = vsel %vm2981, %v4157, %v4158
        %v4160 = vrot.slane %v4158, 4
        %v4161 = vrot.slane %v4066, 6
        %v4162 = vsel %vm2981, %v4160, %v4161
        %s4163 = scalar_lea.vmem %s5, 10
        %v4164 = vld [vmem:[%s4163] sm:$0x3]
        %v4165 = vunpack.c.l.b16 %v4110
        %v4166 = vunpack.c.l.b16 %v4113
        %v4167 = vunpack.c.l.b16 %v4117
        %v4168 = vunpack.c.l.b16 %v4120
        %v4169 = vunpack.c.l.b16 %v4124
        %v4170 = vunpack.c.l.b16 %v4127
        %v4171 = vunpack.c.l.b16 %v4131
        %v4172 = vunpack.c.l.b16 %v4134
        %v4173 = vunpack.c.l.b16 %v4138
        %v4174 = vunpack.c.l.b16 %v4141
        %v4175 = vunpack.c.l.b16 %v4145
        %v4176 = vunpack.c.l.b16 %v4148
        %v4177 = vunpack.c.l.b16 %v4152
        %v4178 = vunpack.c.l.b16 %v4155
        %v4179 = vunpack.c.l.b16 %v4159
        %v4180 = vunpack.c.l.b16 %v4162
        %v4181 = vpack.c.b16 %v4166, %v4165
        %v4182 = vpack.c.b16 %v4168, %v4167
        %v4183 = vpack.c.b16 %v4170, %v4169
        %v4184 = vpack.c.b16 %v4172, %v4171
        %v4185 = vpack.c.b16 %v4174, %v4173
        %v4186 = vpack.c.b16 %v4176, %v4175
        %v4187 = vpack.c.b16 %v4178, %v4177
        %v4188 = vpack.c.b16 %v4180, %v4179
        %v4190 = vsel %vm516, %v4181, 0
        %v4193 = vsel %vm516, %v4182, 0
        %v4196 = vsel %vm516, %v4183, 0
        %v4199 = vsel %vm516, %v4184, 0
        %v4202 = vsel %vm516, %v4185, 0
        %v4205 = vsel %vm516, %v4186, 0
        %v4208 = vsel %vm516, %v4187, 0
        %v4211 = vsel %vm516, %v4188, 0
        %v4214 = vsel %vm541, %v4164, 0
        %4216 = vmatpush.bf16.msra.mxu0 0
        %4217 = vmatpush.bf16.msra.mxu0 0
        %4218 = vmatpush.bf16.msra.mxu0 0
        %4219 = vmatpush.bf16.msra.mxu0 0
        %4220 = vmatpush.bf16.msra.mxu0 0
        %4221 = vmatpush.bf16.msra.mxu0 0
        %4222 = vmatpush.bf16.msra.mxu0 0
        %4223 = vmatpush.bf16.msra.mxu0 %v4214
        %4224 = vmatmul.bf16.gmra.mxu0 %v4190
        %v4225 = vpop.f32.mrf.mxu0
        %v4226 = vadd.f32 0.0, %v4225
        %v4227 = vpop.f32.mrf.mxu0
        %v4228 = vadd.f32 0.0, %v4227
        %4229 = vmatmul.bf16.gmra.mxu0 %v4193
        %v4230 = vpop.f32.mrf.mxu0
        %v4231 = vadd.f32 0.0, %v4230
        %v4232 = vpop.f32.mrf.mxu0
        %v4233 = vadd.f32 0.0, %v4232
        %4234 = vmatmul.bf16.gmra.mxu0 %v4196
        %v4235 = vpop.f32.mrf.mxu0
        %v4236 = vadd.f32 0.0, %v4235
        %v4237 = vpop.f32.mrf.mxu0
        %v4238 = vadd.f32 0.0, %v4237
        %4239 = vmatmul.bf16.gmra.mxu0 %v4199
        %v4240 = vpop.f32.mrf.mxu0
        %v4241 = vadd.f32 0.0, %v4240
        %v4242 = vpop.f32.mrf.mxu0
        %v4243 = vadd.f32 0.0, %v4242
        %4244 = vmatmul.bf16.gmra.mxu0 %v4202
        %v4245 = vpop.f32.mrf.mxu0
        %v4246 = vadd.f32 0.0, %v4245
        %v4247 = vpop.f32.mrf.mxu0
        %v4248 = vadd.f32 0.0, %v4247
        %4249 = vmatmul.bf16.gmra.mxu0 %v4205
        %v4250 = vpop.f32.mrf.mxu0
        %v4251 = vadd.f32 0.0, %v4250
        %v4252 = vpop.f32.mrf.mxu0
        %v4253 = vadd.f32 0.0, %v4252
        %4254 = vmatmul.bf16.gmra.mxu0 %v4208
        %v4255 = vpop.f32.mrf.mxu0
        %v4256 = vadd.f32 0.0, %v4255
        %v4257 = vpop.f32.mrf.mxu0
        %v4258 = vadd.f32 0.0, %v4257
        %4259 = vmatmul.bf16.gmra.mxu0 %v4211
        %v4260 = vpop.f32.mrf.mxu0
        %v4261 = vadd.f32 0.0, %v4260
        %v4262 = vpop.f32.mrf.mxu0
        %v4263 = vadd.f32 0.0, %v4262
        %4264 = vdwg.mxu0
        %v4265 = vadd.f32 %v4067, %v4226
        %v4266 = vadd.f32 %v4068, %v4228
        %v4267 = vadd.f32 %v4069, %v4231
        %v4268 = vadd.f32 %v4070, %v4233
        %v4269 = vadd.f32 %v4071, %v4236
        %v4270 = vadd.f32 %v4072, %v4238
        %v4271 = vadd.f32 %v4073, %v4241
        %v4272 = vadd.f32 %v4074, %v4243
        %v4273 = vadd.f32 %v4075, %v4246
        %v4274 = vadd.f32 %v4076, %v4248
        %v4275 = vadd.f32 %v4077, %v4251
        %v4276 = vadd.f32 %v4078, %v4253
        %v4277 = vadd.f32 %v4079, %v4256
        %v4278 = vadd.f32 %v4080, %v4258
        %v4279 = vadd.f32 %v4081, %v4261
        %v4280 = vadd.f32 %v4082, %v4263
        %4281 = vst.msk [vmem:[#allocation3] sm:$0xff] %vm594, %v4265
        %4282 = vst.msk [vmem:[#allocation3 + $0x8] sm:$0xff] %vm594, %v4266
        %4283 = vst.msk [vmem:[#allocation3 + $0x10] sm:$0xff] %vm594, %v4267
        %4284 = vst.msk [vmem:[#allocation3 + $0x18] sm:$0xff] %vm594, %v4268
        %4285 = vst.msk [vmem:[#allocation3 + $0x20] sm:$0xff] %vm594, %v4269
        %4286 = vst.msk [vmem:[#allocation3 + $0x28] sm:$0xff] %vm594, %v4270
        %4287 = vst.msk [vmem:[#allocation3 + $0x30] sm:$0xff] %vm594, %v4271
        %4288 = vst.msk [vmem:[#allocation3 + $0x38] sm:$0xff] %vm594, %v4272
        %4289 = vst.msk [vmem:[#allocation3 + $0x40] sm:$0xff] %vm594, %v4273
        %4290 = vst.msk [vmem:[#allocation3 + $0x48] sm:$0xff] %vm594, %v4274
        %4291 = vst.msk [vmem:[#allocation3 + $0x50] sm:$0xff] %vm594, %v4275
        %4292 = vst.msk [vmem:[#allocation3 + $0x58] sm:$0xff] %vm594, %v4276
        %4293 = vst.msk [vmem:[#allocation3 + $0x60] sm:$0xff] %vm594, %v4277
        %4294 = vst.msk [vmem:[#allocation3 + $0x68] sm:$0xff] %vm594, %v4278
        %4295 = vst.msk [vmem:[#allocation3 + $0x70] sm:$0xff] %vm594, %v4279
        %4296 = vst.msk [vmem:[#allocation3 + $0x78] sm:$0xff] %vm594, %v4280
        %s4297 = sadd.s32 %s401, 30
        %s4298 = smul.u32 %s4297, 2
        %s4299 = smul.addr %s4298, 4
        %s4300 = scalar_lea.vmem %s398, %s4299
        %v4301 = vld [vmem:[%s4300] sm:$0xf]
        %v4302 = vld [vmem:[%s4300 + $0x4] sm:$0xf]
        %v4303 = vld [vmem:[%s4300 + $0x8] sm:$0xf]
        %v4304 = vld [vmem:[%s4300 + $0xc] sm:$0xf]
        %v4305 = vld [vmem:[%s4300 + $0x10] sm:$0xf]
        %v4306 = vld [vmem:[%s4300 + $0x14] sm:$0xf]
        %v4307 = vld [vmem:[%s4300 + $0x18] sm:$0xf]
        %v4308 = vld [vmem:[%s4300 + $0x1c] sm:$0xf]
        %v4309 = vld [vmem:[%s4300 + $0x20] sm:$0xf]
        %v4310 = vld [vmem:[%s4300 + $0x24] sm:$0xf]
        %v4311 = vld [vmem:[%s4300 + $0x28] sm:$0xf]
        %v4312 = vld [vmem:[%s4300 + $0x2c] sm:$0xf]
        %v4313 = vld [vmem:[%s4300 + $0x30] sm:$0xf]
        %v4314 = vld [vmem:[%s4300 + $0x34] sm:$0xf]
        %v4315 = vld [vmem:[%s4300 + $0x38] sm:$0xf]
        %v4316 = vld [vmem:[%s4300 + $0x3c] sm:$0xf]
        %4317 = vst.msk [vmem:[#allocation2 + $0xc] sm:$0xf] %vm402, %v4301
        %4318 = vst.msk [vmem:[#allocation2 + $0x10] sm:$0xf] %vm402, %v4302
        %4319 = vst.msk [vmem:[#allocation2 + $0x2c] sm:$0xf] %vm402, %v4303
        %4320 = vst.msk [vmem:[#allocation2 + $0x30] sm:$0xf] %vm402, %v4304
        %4321 = vst.msk [vmem:[#allocation2 + $0x4c] sm:$0xf] %vm402, %v4305
        %4322 = vst.msk [vmem:[#allocation2 + $0x50] sm:$0xf] %vm402, %v4306
        %4323 = vst.msk [vmem:[#allocation2 + $0x6c] sm:$0xf] %vm402, %v4307
        %4324 = vst.msk [vmem:[#allocation2 + $0x70] sm:$0xf] %vm402, %v4308
        %4325 = vst.msk [vmem:[#allocation2 + $0x8c] sm:$0xf] %vm402, %v4309
        %4326 = vst.msk [vmem:[#allocation2 + $0x90] sm:$0xf] %vm402, %v4310
        %4327 = vst.msk [vmem:[#allocation2 + $0xac] sm:$0xf] %vm402, %v4311
        %4328 = vst.msk [vmem:[#allocation2 + $0xb0] sm:$0xf] %vm402, %v4312
        %4329 = vst.msk [vmem:[#allocation2 + $0xcc] sm:$0xf] %vm402, %v4313
        %4330 = vst.msk [vmem:[#allocation2 + $0xd0] sm:$0xf] %vm402, %v4314
        %4331 = vst.msk [vmem:[#allocation2 + $0xec] sm:$0xf] %vm402, %v4315
        %4332 = vst.msk [vmem:[#allocation2 + $0xf0] sm:$0xf] %vm402, %v4316
        %v4333 = vld [vmem:[#allocation2 + $0x4] sm:$0xc]
        %v4334 = vld [vmem:[#allocation2 + $0x8] sm:$0xf]
        %v4335 = vld [vmem:[#allocation2 + $0xc] sm:$0x3]
        %v4336 = vld [vmem:[#allocation2 + $0x24] sm:$0xc]
        %v4337 = vld [vmem:[#allocation2 + $0x28] sm:$0xf]
        %v4338 = vld [vmem:[#allocation2 + $0x2c] sm:$0x3]
        %v4339 = vld [vmem:[#allocation2 + $0x44] sm:$0xc]
        %v4340 = vld [vmem:[#allocation2 + $0x48] sm:$0xf]
        %v4341 = vld [vmem:[#allocation2 + $0x4c] sm:$0x3]
        %v4342 = vld [vmem:[#allocation2 + $0x64] sm:$0xc]
        %v4343 = vld [vmem:[#allocation2 + $0x68] sm:$0xf]
        %v4344 = vld [vmem:[#allocation2 + $0x6c] sm:$0x3]
        %v4345 = vld [vmem:[#allocation2 + $0x84] sm:$0xc]
        %v4346 = vld [vmem:[#allocation2 + $0x88] sm:$0xf]
        %v4347 = vld [vmem:[#allocation2 + $0x8c] sm:$0x3]
        %v4348 = vld [vmem:[#allocation2 + $0xa4] sm:$0xc]
        %v4349 = vld [vmem:[#allocation2 + $0xa8] sm:$0xf]
        %v4350 = vld [vmem:[#allocation2 + $0xac] sm:$0x3]
        %v4351 = vld [vmem:[#allocation2 + $0xc4] sm:$0xc]
        %v4352 = vld [vmem:[#allocation2 + $0xc8] sm:$0xf]
        %v4353 = vld [vmem:[#allocation2 + $0xcc] sm:$0x3]
        %v4354 = vld [vmem:[#allocation2 + $0xe4] sm:$0xc]
        %v4355 = vld [vmem:[#allocation2 + $0xe8] sm:$0xf]
        %v4356 = vld [vmem:[#allocation2 + $0xec] sm:$0x3]
        %v4357 = vld [vmem:[#allocation3] sm:$0xff]
        %v4358 = vld [vmem:[#allocation3 + $0x8] sm:$0xff]
        %v4359 = vld [vmem:[#allocation3 + $0x10] sm:$0xff]
        %v4360 = vld [vmem:[#allocation3 + $0x18] sm:$0xff]
        %v4361 = vld [vmem:[#allocation3 + $0x20] sm:$0xff]
        %v4362 = vld [vmem:[#allocation3 + $0x28] sm:$0xff]
        %v4363 = vld [vmem:[#allocation3 + $0x30] sm:$0xff]
        %v4364 = vld [vmem:[#allocation3 + $0x38] sm:$0xff]
        %v4365 = vld [vmem:[#allocation3 + $0x40] sm:$0xff]
        %v4366 = vld [vmem:[#allocation3 + $0x48] sm:$0xff]
        %v4367 = vld [vmem:[#allocation3 + $0x50] sm:$0xff]
        %v4368 = vld [vmem:[#allocation3 + $0x58] sm:$0xff]
        %v4369 = vld [vmem:[#allocation3 + $0x60] sm:$0xff]
        %v4370 = vld [vmem:[#allocation3 + $0x68] sm:$0xff]
        %v4371 = vld [vmem:[#allocation3 + $0x70] sm:$0xff]
        %v4372 = vld [vmem:[#allocation3 + $0x78] sm:$0xff]
        %v4397 = vrot.slane %v4333, 6
        %v4398 = vrot.slane %v4397, 4
        %v4399 = vrot.slane %v4334, 6
        %v4400 = vsel %vm2981, %v4398, %v4399
        %v4401 = vrot.slane %v4399, 4
        %v4402 = vrot.slane %v4335, 6
        %v4403 = vsel %vm2981, %v4401, %v4402
        %v4404 = vrot.slane %v4336, 6
        %v4405 = vrot.slane %v4404, 4
        %v4406 = vrot.slane %v4337, 6
        %v4407 = vsel %vm2981, %v4405, %v4406
        %v4408 = vrot.slane %v4406, 4
        %v4409 = vrot.slane %v4338, 6
        %v4410 = vsel %vm2981, %v4408, %v4409
        %v4411 = vrot.slane %v4339, 6
        %v4412 = vrot.slane %v4411, 4
        %v4413 = vrot.slane %v4340, 6
        %v4414 = vsel %vm2981, %v4412, %v4413
        %v4415 = vrot.slane %v4413, 4
        %v4416 = vrot.slane %v4341, 6
        %v4417 = vsel %vm2981, %v4415, %v4416
        %v4418 = vrot.slane %v4342, 6
        %v4419 = vrot.slane %v4418, 4
        %v4420 = vrot.slane %v4343, 6
        %v4421 = vsel %vm2981, %v4419, %v4420
        %v4422 = vrot.slane %v4420, 4
        %v4423 = vrot.slane %v4344, 6
        %v4424 = vsel %vm2981, %v4422, %v4423
        %v4425 = vrot.slane %v4345, 6
        %v4426 = vrot.slane %v4425, 4
        %v4427 = vrot.slane %v4346, 6
        %v4428 = vsel %vm2981, %v4426, %v4427
        %v4429 = vrot.slane %v4427, 4
        %v4430 = vrot.slane %v4347, 6
        %v4431 = vsel %vm2981, %v4429, %v4430
        %v4432 = vrot.slane %v4348, 6
        %v4433 = vrot.slane %v4432, 4
        %v4434 = vrot.slane %v4349, 6
        %v4435 = vsel %vm2981, %v4433, %v4434
        %v4436 = vrot.slane %v4434, 4
        %v4437 = vrot.slane %v4350, 6
        %v4438 = vsel %vm2981, %v4436, %v4437
        %v4439 = vrot.slane %v4351, 6
        %v4440 = vrot.slane %v4439, 4
        %v4441 = vrot.slane %v4352, 6
        %v4442 = vsel %vm2981, %v4440, %v4441
        %v4443 = vrot.slane %v4441, 4
        %v4444 = vrot.slane %v4353, 6
        %v4445 = vsel %vm2981, %v4443, %v4444
        %v4446 = vrot.slane %v4354, 6
        %v4447 = vrot.slane %v4446, 4
        %v4448 = vrot.slane %v4355, 6
        %v4449 = vsel %vm2981, %v4447, %v4448
        %v4450 = vrot.slane %v4448, 4
        %v4451 = vrot.slane %v4356, 6
        %v4452 = vsel %vm2981, %v4450, %v4451
        %s4453 = scalar_lea.vmem %s5, 12
        %v4454 = vld [vmem:[%s4453] sm:$0x3]
        %v4455 = vunpack.c.l.b16 %v4400
        %v4456 = vunpack.c.l.b16 %v4403
        %v4457 = vunpack.c.l.b16 %v4407
        %v4458 = vunpack.c.l.b16 %v4410
        %v4459 = vunpack.c.l.b16 %v4414
        %v4460 = vunpack.c.l.b16 %v4417
        %v4461 = vunpack.c.l.b16 %v4421
        %v4462 = vunpack.c.l.b16 %v4424
        %v4463 = vunpack.c.l.b16 %v4428
        %v4464 = vunpack.c.l.b16 %v4431
        %v4465 = vunpack.c.l.b16 %v4435
        %v4466 = vunpack.c.l.b16 %v4438
        %v4467 = vunpack.c.l.b16 %v4442
        %v4468 = vunpack.c.l.b16 %v4445
        %v4469 = vunpack.c.l.b16 %v4449
        %v4470 = vunpack.c.l.b16 %v4452
        %v4471 = vpack.c.b16 %v4456, %v4455
        %v4472 = vpack.c.b16 %v4458, %v4457
        %v4473 = vpack.c.b16 %v4460, %v4459
        %v4474 = vpack.c.b16 %v4462, %v4461
        %v4475 = vpack.c.b16 %v4464, %v4463
        %v4476 = vpack.c.b16 %v4466, %v4465
        %v4477 = vpack.c.b16 %v4468, %v4467
        %v4478 = vpack.c.b16 %v4470, %v4469
        %v4480 = vsel %vm516, %v4471, 0
        %v4483 = vsel %vm516, %v4472, 0
        %v4486 = vsel %vm516, %v4473, 0
        %v4489 = vsel %vm516, %v4474, 0
        %v4492 = vsel %vm516, %v4475, 0
        %v4495 = vsel %vm516, %v4476, 0
        %v4498 = vsel %vm516, %v4477, 0
        %v4501 = vsel %vm516, %v4478, 0
        %v4504 = vsel %vm541, %v4454, 0
        %4506 = vmatpush.bf16.msra.mxu0 0
        %4507 = vmatpush.bf16.msra.mxu0 0
        %4508 = vmatpush.bf16.msra.mxu0 0
        %4509 = vmatpush.bf16.msra.mxu0 0
        %4510 = vmatpush.bf16.msra.mxu0 0
        %4511 = vmatpush.bf16.msra.mxu0 0
        %4512 = vmatpush.bf16.msra.mxu0 0
        %4513 = vmatpush.bf16.msra.mxu0 %v4504
        %4514 = vmatmul.bf16.gmra.mxu0 %v4480
        %v4515 = vpop.f32.mrf.mxu0
        %v4516 = vadd.f32 0.0, %v4515
        %v4517 = vpop.f32.mrf.mxu0
        %v4518 = vadd.f32 0.0, %v4517
        %4519 = vmatmul.bf16.gmra.mxu0 %v4483
        %v4520 = vpop.f32.mrf.mxu0
        %v4521 = vadd.f32 0.0, %v4520
        %v4522 = vpop.f32.mrf.mxu0
        %v4523 = vadd.f32 0.0, %v4522
        %4524 = vmatmul.bf16.gmra.mxu0 %v4486
        %v4525 = vpop.f32.mrf.mxu0
        %v4526 = vadd.f32 0.0, %v4525
        %v4527 = vpop.f32.mrf.mxu0
        %v4528 = vadd.f32 0.0, %v4527
        %4529 = vmatmul.bf16.gmra.mxu0 %v4489
        %v4530 = vpop.f32.mrf.mxu0
        %v4531 = vadd.f32 0.0, %v4530
        %v4532 = vpop.f32.mrf.mxu0
        %v4533 = vadd.f32 0.0, %v4532
        %4534 = vmatmul.bf16.gmra.mxu0 %v4492
        %v4535 = vpop.f32.mrf.mxu0
        %v4536 = vadd.f32 0.0, %v4535
        %v4537 = vpop.f32.mrf.mxu0
        %v4538 = vadd.f32 0.0, %v4537
        %4539 = vmatmul.bf16.gmra.mxu0 %v4495
        %v4540 = vpop.f32.mrf.mxu0
        %v4541 = vadd.f32 0.0, %v4540
        %v4542 = vpop.f32.mrf.mxu0
        %v4543 = vadd.f32 0.0, %v4542
        %4544 = vmatmul.bf16.gmra.mxu0 %v4498
        %v4545 = vpop.f32.mrf.mxu0
        %v4546 = vadd.f32 0.0, %v4545
        %v4547 = vpop.f32.mrf.mxu0
        %v4548 = vadd.f32 0.0, %v4547
        %4549 = vmatmul.bf16.gmra.mxu0 %v4501
        %v4550 = vpop.f32.mrf.mxu0
        %v4551 = vadd.f32 0.0, %v4550
        %v4552 = vpop.f32.mrf.mxu0
        %v4553 = vadd.f32 0.0, %v4552
        %4554 = vdwg.mxu0
        %v4555 = vadd.f32 %v4357, %v4516
        %v4556 = vadd.f32 %v4358, %v4518
        %v4557 = vadd.f32 %v4359, %v4521
        %v4558 = vadd.f32 %v4360, %v4523
        %v4559 = vadd.f32 %v4361, %v4526
        %v4560 = vadd.f32 %v4362, %v4528
        %v4561 = vadd.f32 %v4363, %v4531
        %v4562 = vadd.f32 %v4364, %v4533
        %v4563 = vadd.f32 %v4365, %v4536
        %v4564 = vadd.f32 %v4366, %v4538
        %v4565 = vadd.f32 %v4367, %v4541
        %v4566 = vadd.f32 %v4368, %v4543
        %v4567 = vadd.f32 %v4369, %v4546
        %v4568 = vadd.f32 %v4370, %v4548
        %v4569 = vadd.f32 %v4371, %v4551
        %v4570 = vadd.f32 %v4372, %v4553
        %4571 = vst.msk [vmem:[#allocation3] sm:$0xff] %vm594, %v4555
        %4572 = vst.msk [vmem:[#allocation3 + $0x8] sm:$0xff] %vm594, %v4556
        %4573 = vst.msk [vmem:[#allocation3 + $0x10] sm:$0xff] %vm594, %v4557
        %4574 = vst.msk [vmem:[#allocation3 + $0x18] sm:$0xff] %vm594, %v4558
        %4575 = vst.msk [vmem:[#allocation3 + $0x20] sm:$0xff] %vm594, %v4559
        %4576 = vst.msk [vmem:[#allocation3 + $0x28] sm:$0xff] %vm594, %v4560
        %4577 = vst.msk [vmem:[#allocation3 + $0x30] sm:$0xff] %vm594, %v4561
        %4578 = vst.msk [vmem:[#allocation3 + $0x38] sm:$0xff] %vm594, %v4562
        %4579 = vst.msk [vmem:[#allocation3 + $0x40] sm:$0xff] %vm594, %v4563
        %4580 = vst.msk [vmem:[#allocation3 + $0x48] sm:$0xff] %vm594, %v4564
        %4581 = vst.msk [vmem:[#allocation3 + $0x50] sm:$0xff] %vm594, %v4565
        %4582 = vst.msk [vmem:[#allocation3 + $0x58] sm:$0xff] %vm594, %v4566
        %4583 = vst.msk [vmem:[#allocation3 + $0x60] sm:$0xff] %vm594, %v4567
        %4584 = vst.msk [vmem:[#allocation3 + $0x68] sm:$0xff] %vm594, %v4568
        %4585 = vst.msk [vmem:[#allocation3 + $0x70] sm:$0xff] %vm594, %v4569
        %4586 = vst.msk [vmem:[#allocation3 + $0x78] sm:$0xff] %vm594, %v4570
        %v4587 = vld [vmem:[#allocation3] sm:$0xff]
        %v4588 = vld [vmem:[#allocation3 + $0x8] sm:$0xff]
        %v4589 = vld [vmem:[#allocation3 + $0x10] sm:$0xff]
        %v4590 = vld [vmem:[#allocation3 + $0x18] sm:$0xff]
        %v4591 = vld [vmem:[#allocation3 + $0x20] sm:$0xff]
        %v4592 = vld [vmem:[#allocation3 + $0x28] sm:$0xff]
        %v4593 = vld [vmem:[#allocation3 + $0x30] sm:$0xff]
        %v4594 = vld [vmem:[#allocation3 + $0x38] sm:$0xff]
        %v4595 = vld [vmem:[#allocation3 + $0x40] sm:$0xff]
        %v4596 = vld [vmem:[#allocation3 + $0x48] sm:$0xff]
        %v4597 = vld [vmem:[#allocation3 + $0x50] sm:$0xff]
        %v4598 = vld [vmem:[#allocation3 + $0x58] sm:$0xff]
        %v4599 = vld [vmem:[#allocation3 + $0x60] sm:$0xff]
        %v4600 = vld [vmem:[#allocation3 + $0x68] sm:$0xff]
        %v4601 = vld [vmem:[#allocation3 + $0x70] sm:$0xff]
        %v4602 = vld [vmem:[#allocation3 + $0x78] sm:$0xff]
        %s4603 = scalar_lea.vmem %s5, 14
        %v4604 = vld [vmem:[%s4603] sm:$0x3]
        %v4621 = vunpack.c.l.b16 %v4301
        %v4622 = vunpack.c.l.b16 %v4302
        %v4623 = vunpack.c.l.b16 %v4303
        %v4624 = vunpack.c.l.b16 %v4304
        %v4625 = vunpack.c.l.b16 %v4305
        %v4626 = vunpack.c.l.b16 %v4306
        %v4627 = vunpack.c.l.b16 %v4307
        %v4628 = vunpack.c.l.b16 %v4308
        %v4629 = vunpack.c.l.b16 %v4309
        %v4630 = vunpack.c.l.b16 %v4310
        %v4631 = vunpack.c.l.b16 %v4311
        %v4632 = vunpack.c.l.b16 %v4312
        %v4633 = vunpack.c.l.b16 %v4313
        %v4634 = vunpack.c.l.b16 %v4314
        %v4635 = vunpack.c.l.b16 %v4315
        %v4636 = vunpack.c.l.b16 %v4316
        %v4637 = vpack.c.b16 %v4622, %v4621
        %v4638 = vpack.c.b16 %v4624, %v4623
        %v4639 = vpack.c.b16 %v4626, %v4625
        %v4640 = vpack.c.b16 %v4628, %v4627
        %v4641 = vpack.c.b16 %v4630, %v4629
        %v4642 = vpack.c.b16 %v4632, %v4631
        %v4643 = vpack.c.b16 %v4634, %v4633
        %v4644 = vpack.c.b16 %v4636, %v4635
        %v4646 = vsel %vm516, %v4637, 0
        %v4649 = vsel %vm516, %v4638, 0
        %v4652 = vsel %vm516, %v4639, 0
        %v4655 = vsel %vm516, %v4640, 0
        %v4658 = vsel %vm516, %v4641, 0
        %v4661 = vsel %vm516, %v4642, 0
        %v4664 = vsel %vm516, %v4643, 0
        %v4667 = vsel %vm516, %v4644, 0
        %v4670 = vsel %vm541, %v4604, 0
        %4672 = vmatpush.bf16.msra.mxu0 0
        %4673 = vmatpush.bf16.msra.mxu0 0
        %4674 = vmatpush.bf16.msra.mxu0 0
        %4675 = vmatpush.bf16.msra.mxu0 0
        %4676 = vmatpush.bf16.msra.mxu0 0
        %4677 = vmatpush.bf16.msra.mxu0 0
        %4678 = vmatpush.bf16.msra.mxu0 0
        %4679 = vmatpush.bf16.msra.mxu0 %v4670
        %4680 = vmatmul.bf16.gmra.mxu0 %v4646
        %v4681 = vpop.f32.mrf.mxu0
        %v4682 = vadd.f32 0.0, %v4681
        %v4683 = vpop.f32.mrf.mxu0
        %v4684 = vadd.f32 0.0, %v4683
        %4685 = vmatmul.bf16.gmra.mxu0 %v4649
        %v4686 = vpop.f32.mrf.mxu0
        %v4687 = vadd.f32 0.0, %v4686
        %v4688 = vpop.f32.mrf.mxu0
        %v4689 = vadd.f32 0.0, %v4688
        %4690 = vmatmul.bf16.gmra.mxu0 %v4652
        %v4691 = vpop.f32.mrf.mxu0
        %v4692 = vadd.f32 0.0, %v4691
        %v4693 = vpop.f32.mrf.mxu0
        %v4694 = vadd.f32 0.0, %v4693
        %4695 = vmatmul.bf16.gmra.mxu0 %v4655
        %v4696 = vpop.f32.mrf.mxu0
        %v4697 = vadd.f32 0.0, %v4696
        %v4698 = vpop.f32.mrf.mxu0
        %v4699 = vadd.f32 0.0, %v4698
        %4700 = vmatmul.bf16.gmra.mxu0 %v4658
        %v4701 = vpop.f32.mrf.mxu0
        %v4702 = vadd.f32 0.0, %v4701
        %v4703 = vpop.f32.mrf.mxu0
        %v4704 = vadd.f32 0.0, %v4703
        %4705 = vmatmul.bf16.gmra.mxu0 %v4661
        %v4706 = vpop.f32.mrf.mxu0
        %v4707 = vadd.f32 0.0, %v4706
        %v4708 = vpop.f32.mrf.mxu0
        %v4709 = vadd.f32 0.0, %v4708
        %4710 = vmatmul.bf16.gmra.mxu0 %v4664
        %v4711 = vpop.f32.mrf.mxu0
        %v4712 = vadd.f32 0.0, %v4711
        %v4713 = vpop.f32.mrf.mxu0
        %v4714 = vadd.f32 0.0, %v4713
        %4715 = vmatmul.bf16.gmra.mxu0 %v4667
        %v4716 = vpop.f32.mrf.mxu0
        %v4717 = vadd.f32 0.0, %v4716
        %v4718 = vpop.f32.mrf.mxu0
        %v4719 = vadd.f32 0.0, %v4718
        %4720 = vdwg.mxu0
        %v4721 = vadd.f32 %v4587, %v4682
        %v4722 = vadd.f32 %v4588, %v4684
        %v4723 = vadd.f32 %v4589, %v4687
        %v4724 = vadd.f32 %v4590, %v4689
        %v4725 = vadd.f32 %v4591, %v4692
        %v4726 = vadd.f32 %v4592, %v4694
        %v4727 = vadd.f32 %v4593, %v4697
        %v4728 = vadd.f32 %v4594, %v4699
        %v4729 = vadd.f32 %v4595, %v4702
        %v4730 = vadd.f32 %v4596, %v4704
        %v4731 = vadd.f32 %v4597, %v4707
        %v4732 = vadd.f32 %v4598, %v4709
        %v4733 = vadd.f32 %v4599, %v4712
        %v4734 = vadd.f32 %v4600, %v4714
        %v4735 = vadd.f32 %v4601, %v4717
        %v4736 = vadd.f32 %v4602, %v4719
        %4737 = vst.msk [vmem:[#allocation3] sm:$0xff] %vm594, %v4721
        %4738 = vst.msk [vmem:[#allocation3 + $0x8] sm:$0xff] %vm594, %v4722
        %4739 = vst.msk [vmem:[#allocation3 + $0x10] sm:$0xff] %vm594, %v4723
        %4740 = vst.msk [vmem:[#allocation3 + $0x18] sm:$0xff] %vm594, %v4724
        %4741 = vst.msk [vmem:[#allocation3 + $0x20] sm:$0xff] %vm594, %v4725
        %4742 = vst.msk [vmem:[#allocation3 + $0x28] sm:$0xff] %vm594, %v4726
        %4743 = vst.msk [vmem:[#allocation3 + $0x30] sm:$0xff] %vm594, %v4727
        %4744 = vst.msk [vmem:[#allocation3 + $0x38] sm:$0xff] %vm594, %v4728
        %4745 = vst.msk [vmem:[#allocation3 + $0x40] sm:$0xff] %vm594, %v4729
        %4746 = vst.msk [vmem:[#allocation3 + $0x48] sm:$0xff] %vm594, %v4730
        %4747 = vst.msk [vmem:[#allocation3 + $0x50] sm:$0xff] %vm594, %v4731
        %4748 = vst.msk [vmem:[#allocation3 + $0x58] sm:$0xff] %vm594, %v4732
        %4749 = vst.msk [vmem:[#allocation3 + $0x60] sm:$0xff] %vm594, %v4733
        %4750 = vst.msk [vmem:[#allocation3 + $0x68] sm:$0xff] %vm594, %v4734
        %4751 = vst.msk [vmem:[#allocation3 + $0x70] sm:$0xff] %vm594, %v4735
        %4752 = vst.msk [vmem:[#allocation3 + $0x78] sm:$0xff] %vm594, %v4736
        %v4753 = vld [vmem:[#allocation2 + $0x10] sm:$0xc]
        %v4754 = vld [vmem:[#allocation2 + $0x14] sm:$0xf]
        %v4755 = vld [vmem:[#allocation2 + $0x18] sm:$0x3]
        %v4756 = vld [vmem:[#allocation2 + $0x30] sm:$0xc]
        %v4757 = vld [vmem:[#allocation2 + $0x34] sm:$0xf]
        %v4758 = vld [vmem:[#allocation2 + $0x38] sm:$0x3]
        %v4759 = vld [vmem:[#allocation2 + $0x50] sm:$0xc]
        %v4760 = vld [vmem:[#allocation2 + $0x54] sm:$0xf]
        %v4761 = vld [vmem:[#allocation2 + $0x58] sm:$0x3]
        %v4762 = vld [vmem:[#allocation2 + $0x70] sm:$0xc]
        %v4763 = vld [vmem:[#allocation2 + $0x74] sm:$0xf]
        %v4764 = vld [vmem:[#allocation2 + $0x78] sm:$0x3]
        %v4765 = vld [vmem:[#allocation2 + $0x90] sm:$0xc]
        %v4766 = vld [vmem:[#allocation2 + $0x94] sm:$0xf]
        %v4767 = vld [vmem:[#allocation2 + $0x98] sm:$0x3]
        %v4768 = vld [vmem:[#allocation2 + $0xb0] sm:$0xc]
        %v4769 = vld [vmem:[#allocation2 + $0xb4] sm:$0xf]
        %v4770 = vld [vmem:[#allocation2 + $0xb8] sm:$0x3]
        %v4771 = vld [vmem:[#allocation2 + $0xd0] sm:$0xc]
        %v4772 = vld [vmem:[#allocation2 + $0xd4] sm:$0xf]
        %v4773 = vld [vmem:[#allocation2 + $0xd8] sm:$0x3]
        %v4774 = vld [vmem:[#allocation2 + $0xf0] sm:$0xc]
        %v4775 = vld [vmem:[#allocation2 + $0xf4] sm:$0xf]
        %v4776 = vld [vmem:[#allocation2 + $0xf8] sm:$0x3]
        %v4777 = vld [vmem:[#allocation3] sm:$0xff]
        %v4778 = vld [vmem:[#allocation3 + $0x8] sm:$0xff]
        %v4779 = vld [vmem:[#allocation3 + $0x10] sm:$0xff]
        %v4780 = vld [vmem:[#allocation3 + $0x18] sm:$0xff]
        %v4781 = vld [vmem:[#allocation3 + $0x20] sm:$0xff]
        %v4782 = vld [vmem:[#allocation3 + $0x28] sm:$0xff]
        %v4783 = vld [vmem:[#allocation3 + $0x30] sm:$0xff]
        %v4784 = vld [vmem:[#allocation3 + $0x38] sm:$0xff]
        %v4785 = vld [vmem:[#allocation3 + $0x40] sm:$0xff]
        %v4786 = vld [vmem:[#allocation3 + $0x48] sm:$0xff]
        %v4787 = vld [vmem:[#allocation3 + $0x50] sm:$0xff]
        %v4788 = vld [vmem:[#allocation3 + $0x58] sm:$0xff]
        %v4789 = vld [vmem:[#allocation3 + $0x60] sm:$0xff]
        %v4790 = vld [vmem:[#allocation3 + $0x68] sm:$0xff]
        %v4791 = vld [vmem:[#allocation3 + $0x70] sm:$0xff]
        %v4792 = vld [vmem:[#allocation3 + $0x78] sm:$0xff]
        %v4817 = vrot.slane %v4753, 6
        %v4818 = vrot.slane %v4817, 4
        %v4819 = vrot.slane %v4754, 6
        %v4820 = vsel %vm2981, %v4818, %v4819
        %v4821 = vrot.slane %v4819, 4
        %v4822 = vrot.slane %v4755, 6
        %v4823 = vsel %vm2981, %v4821, %v4822
        %v4824 = vrot.slane %v4756, 6
        %v4825 = vrot.slane %v4824, 4
        %v4826 = vrot.slane %v4757, 6
        %v4827 = vsel %vm2981, %v4825, %v4826
        %v4828 = vrot.slane %v4826, 4
        %v4829 = vrot.slane %v4758, 6
        %v4830 = vsel %vm2981, %v4828, %v4829
        %v4831 = vrot.slane %v4759, 6
        %v4832 = vrot.slane %v4831, 4
        %v4833 = vrot.slane %v4760, 6
        %v4834 = vsel %vm2981, %v4832, %v4833
        %v4835 = vrot.slane %v4833, 4
        %v4836 = vrot.slane %v4761, 6
        %v4837 = vsel %vm2981, %v4835, %v4836
        %v4838 = vrot.slane %v4762, 6
        %v4839 = vrot.slane %v4838, 4
        %v4840 = vrot.slane %v4763, 6
        %v4841 = vsel %vm2981, %v4839, %v4840
        %v4842 = vrot.slane %v4840, 4
        %v4843 = vrot.slane %v4764, 6
        %v4844 = vsel %vm2981, %v4842, %v4843
        %v4845 = vrot.slane %v4765, 6
        %v4846 = vrot.slane %v4845, 4
        %v4847 = vrot.slane %v4766, 6
        %v4848 = vsel %vm2981, %v4846, %v4847
        %v4849 = vrot.slane %v4847, 4
        %v4850 = vrot.slane %v4767, 6
        %v4851 = vsel %vm2981, %v4849, %v4850
        %v4852 = vrot.slane %v4768, 6
        %v4853 = vrot.slane %v4852, 4
        %v4854 = vrot.slane %v4769, 6
        %v4855 = vsel %vm2981, %v4853, %v4854
        %v4856 = vrot.slane %v4854, 4
        %v4857 = vrot.slane %v4770, 6
        %v4858 = vsel %vm2981, %v4856, %v4857
        %v4859 = vrot.slane %v4771, 6
        %v4860 = vrot.slane %v4859, 4
        %v4861 = vrot.slane %v4772, 6
        %v4862 = vsel %vm2981, %v4860, %v4861
        %v4863 = vrot.slane %v4861, 4
        %v4864 = vrot.slane %v4773, 6
        %v4865 = vsel %vm2981, %v4863, %v4864
        %v4866 = vrot.slane %v4774, 6
        %v4867 = vrot.slane %v4866, 4
        %v4868 = vrot.slane %v4775, 6
        %v4869 = vsel %vm2981, %v4867, %v4868
        %v4870 = vrot.slane %v4868, 4
        %v4871 = vrot.slane %v4776, 6
        %v4872 = vsel %vm2981, %v4870, %v4871
        %s4873 = scalar_lea.vmem %s5, 16
        %v4874 = vld [vmem:[%s4873] sm:$0x3]
        %v4875 = vunpack.c.l.b16 %v4820
        %v4876 = vunpack.c.l.b16 %v4823
        %v4877 = vunpack.c.l.b16 %v4827
        %v4878 = vunpack.c.l.b16 %v4830
        %v4879 = vunpack.c.l.b16 %v4834
        %v4880 = vunpack.c.l.b16 %v4837
        %v4881 = vunpack.c.l.b16 %v4841
        %v4882 = vunpack.c.l.b16 %v4844
        %v4883 = vunpack.c.l.b16 %v4848
        %v4884 = vunpack.c.l.b16 %v4851
        %v4885 = vunpack.c.l.b16 %v4855
        %v4886 = vunpack.c.l.b16 %v4858
        %v4887 = vunpack.c.l.b16 %v4862
        %v4888 = vunpack.c.l.b16 %v4865
        %v4889 = vunpack.c.l.b16 %v4869
        %v4890 = vunpack.c.l.b16 %v4872
        %v4891 = vpack.c.b16 %v4876, %v4875
        %v4892 = vpack.c.b16 %v4878, %v4877
        %v4893 = vpack.c.b16 %v4880, %v4879
        %v4894 = vpack.c.b16 %v4882, %v4881
        %v4895 = vpack.c.b16 %v4884, %v4883
        %v4896 = vpack.c.b16 %v4886, %v4885
        %v4897 = vpack.c.b16 %v4888, %v4887
        %v4898 = vpack.c.b16 %v4890, %v4889
        %v4900 = vsel %vm516, %v4891, 0
        %v4903 = vsel %vm516, %v4892, 0
        %v4906 = vsel %vm516, %v4893, 0
        %v4909 = vsel %vm516, %v4894, 0
        %v4912 = vsel %vm516, %v4895, 0
        %v4915 = vsel %vm516, %v4896, 0
        %v4918 = vsel %vm516, %v4897, 0
        %v4921 = vsel %vm516, %v4898, 0
        %v4924 = vsel %vm541, %v4874, 0
        %4926 = vmatpush.bf16.msra.mxu0 0
        %4927 = vmatpush.bf16.msra.mxu0 0
        %4928 = vmatpush.bf16.msra.mxu0 0
        %4929 = vmatpush.bf16.msra.mxu0 0
        %4930 = vmatpush.bf16.msra.mxu0 0
        %4931 = vmatpush.bf16.msra.mxu0 0
        %4932 = vmatpush.bf16.msra.mxu0 0
        %4933 = vmatpush.bf16.msra.mxu0 %v4924
        %4934 = vmatmul.bf16.gmra.mxu0 %v4900
        %v4935 = vpop.f32.mrf.mxu0
        %v4936 = vadd.f32 0.0, %v4935
        %v4937 = vpop.f32.mrf.mxu0
        %v4938 = vadd.f32 0.0, %v4937
        %4939 = vmatmul.bf16.gmra.mxu0 %v4903
        %v4940 = vpop.f32.mrf.mxu0
        %v4941 = vadd.f32 0.0, %v4940
        %v4942 = vpop.f32.mrf.mxu0
        %v4943 = vadd.f32 0.0, %v4942
        %4944 = vmatmul.bf16.gmra.mxu0 %v4906
        %v4945 = vpop.f32.mrf.mxu0
        %v4946 = vadd.f32 0.0, %v4945
        %v4947 = vpop.f32.mrf.mxu0
        %v4948 = vadd.f32 0.0, %v4947
        %4949 = vmatmul.bf16.gmra.mxu0 %v4909
        %v4950 = vpop.f32.mrf.mxu0
        %v4951 = vadd.f32 0.0, %v4950
        %v4952 = vpop.f32.mrf.mxu0
        %v4953 = vadd.f32 0.0, %v4952
        %4954 = vmatmul.bf16.gmra.mxu0 %v4912
        %v4955 = vpop.f32.mrf.mxu0
        %v4956 = vadd.f32 0.0, %v4955
        %v4957 = vpop.f32.mrf.mxu0
        %v4958 = vadd.f32 0.0, %v4957
        %4959 = vmatmul.bf16.gmra.mxu0 %v4915
        %v4960 = vpop.f32.mrf.mxu0
        %v4961 = vadd.f32 0.0, %v4960
        %v4962 = vpop.f32.mrf.mxu0
        %v4963 = vadd.f32 0.0, %v4962
        %4964 = vmatmul.bf16.gmra.mxu0 %v4918
        %v4965 = vpop.f32.mrf.mxu0
        %v4966 = vadd.f32 0.0, %v4965
        %v4967 = vpop.f32.mrf.mxu0
        %v4968 = vadd.f32 0.0, %v4967
        %4969 = vmatmul.bf16.gmra.mxu0 %v4921
        %v4970 = vpop.f32.mrf.mxu0
        %v4971 = vadd.f32 0.0, %v4970
        %v4972 = vpop.f32.mrf.mxu0
        %v4973 = vadd.f32 0.0, %v4972
        %4974 = vdwg.mxu0
        %v4975 = vadd.f32 %v4777, %v4936
        %v4976 = vadd.f32 %v4778, %v4938
        %v4977 = vadd.f32 %v4779, %v4941
        %v4978 = vadd.f32 %v4780, %v4943
        %v4979 = vadd.f32 %v4781, %v4946
        %v4980 = vadd.f32 %v4782, %v4948
        %v4981 = vadd.f32 %v4783, %v4951
        %v4982 = vadd.f32 %v4784, %v4953
        %v4983 = vadd.f32 %v4785, %v4956
        %v4984 = vadd.f32 %v4786, %v4958
        %v4985 = vadd.f32 %v4787, %v4961
        %v4986 = vadd.f32 %v4788, %v4963
        %v4987 = vadd.f32 %v4789, %v4966
        %v4988 = vadd.f32 %v4790, %v4968
        %v4989 = vadd.f32 %v4791, %v4971
        %v4990 = vadd.f32 %v4792, %v4973
        %4991 = vst.msk [vmem:[#allocation3] sm:$0xff] %vm594, %v4975
        %4992 = vst.msk [vmem:[#allocation3 + $0x8] sm:$0xff] %vm594, %v4976
        %4993 = vst.msk [vmem:[#allocation3 + $0x10] sm:$0xff] %vm594, %v4977
        %4994 = vst.msk [vmem:[#allocation3 + $0x18] sm:$0xff] %vm594, %v4978
        %4995 = vst.msk [vmem:[#allocation3 + $0x20] sm:$0xff] %vm594, %v4979
        %4996 = vst.msk [vmem:[#allocation3 + $0x28] sm:$0xff] %vm594, %v4980
        %4997 = vst.msk [vmem:[#allocation3 + $0x30] sm:$0xff] %vm594, %v4981
        %4998 = vst.msk [vmem:[#allocation3 + $0x38] sm:$0xff] %vm594, %v4982
        %4999 = vst.msk [vmem:[#allocation3 + $0x40] sm:$0xff] %vm594, %v4983
        %5000 = vst.msk [vmem:[#allocation3 + $0x48] sm:$0xff] %vm594, %v4984
        %5001 = vst.msk [vmem:[#allocation3 + $0x50] sm:$0xff] %vm594, %v4985
        %5002 = vst.msk [vmem:[#allocation3 + $0x58] sm:$0xff] %vm594, %v4986
        %5003 = vst.msk [vmem:[#allocation3 + $0x60] sm:$0xff] %vm594, %v4987
        %5004 = vst.msk [vmem:[#allocation3 + $0x68] sm:$0xff] %vm594, %v4988
        %5005 = vst.msk [vmem:[#allocation3 + $0x70] sm:$0xff] %vm594, %v4989
        %5006 = vst.msk [vmem:[#allocation3 + $0x78] sm:$0xff] %vm594, %v4990
        %v5007 = vld [vmem:[#allocation3] sm:$0xff]
        %v5008 = vld [vmem:[#allocation3 + $0x8] sm:$0xff]
        %v5009 = vld [vmem:[#allocation3 + $0x10] sm:$0xff]
        %v5010 = vld [vmem:[#allocation3 + $0x18] sm:$0xff]
        %v5011 = vld [vmem:[#allocation3 + $0x20] sm:$0xff]
        %v5012 = vld [vmem:[#allocation3 + $0x28] sm:$0xff]
        %v5013 = vld [vmem:[#allocation3 + $0x30] sm:$0xff]
        %v5014 = vld [vmem:[#allocation3 + $0x38] sm:$0xff]
        %v5015 = vld [vmem:[#allocation3 + $0x40] sm:$0xff]
        %v5016 = vld [vmem:[#allocation3 + $0x48] sm:$0xff]
        %v5017 = vld [vmem:[#allocation3 + $0x50] sm:$0xff]
        %v5018 = vld [vmem:[#allocation3 + $0x58] sm:$0xff]
        %v5019 = vld [vmem:[#allocation3 + $0x60] sm:$0xff]
        %v5020 = vld [vmem:[#allocation3 + $0x68] sm:$0xff]
        %v5021 = vld [vmem:[#allocation3 + $0x70] sm:$0xff]
        %v5022 = vld [vmem:[#allocation3 + $0x78] sm:$0xff]
        %5039 = vrot.lane.b32.xlu0 %v5007, 64
        %v5040 = vpop.permute.xlu0 %5039
        %5041 = vrot.lane.b32.xlu0 %v5008, 64
        %v5042 = vpop.permute.xlu0 %5041
        %5043 = vrot.lane.b32.xlu0 %v5009, 64
        %v5044 = vpop.permute.xlu0 %5043
        %5045 = vrot.lane.b32.xlu0 %v5010, 64
        %v5046 = vpop.permute.xlu0 %5045
        %5047 = vrot.lane.b32.xlu0 %v5011, 64
        %v5048 = vpop.permute.xlu0 %5047
        %5049 = vrot.lane.b32.xlu0 %v5012, 64
        %v5050 = vpop.permute.xlu0 %5049
        %5051 = vrot.lane.b32.xlu0 %v5013, 64
        %v5052 = vpop.permute.xlu0 %5051
        %5053 = vrot.lane.b32.xlu0 %v5014, 64
        %v5054 = vpop.permute.xlu0 %5053
        %5055 = vrot.lane.b32.xlu0 %v5015, 64
        %v5056 = vpop.permute.xlu0 %5055
        %5057 = vrot.lane.b32.xlu0 %v5016, 64
        %v5058 = vpop.permute.xlu0 %5057
        %5059 = vrot.lane.b32.xlu0 %v5017, 64
        %v5060 = vpop.permute.xlu0 %5059
        %5061 = vrot.lane.b32.xlu0 %v5018, 64
        %v5062 = vpop.permute.xlu0 %5061
        %5063 = vrot.lane.b32.xlu0 %v5019, 64
        %v5064 = vpop.permute.xlu0 %5063
        %5065 = vrot.lane.b32.xlu0 %v5020, 64
        %v5066 = vpop.permute.xlu0 %5065
        %5067 = vrot.lane.b32.xlu0 %v5021, 64
        %v5068 = vpop.permute.xlu0 %5067
        %5069 = vrot.lane.b32.xlu0 %v5022, 64
        %v5070 = vpop.permute.xlu0 %5069
        %vm5087 = vcmask 785920
        %5088 = vst.msk [vmem:[%s393] sm:$0xff] %vm5087, %v5040
        %5089 = vst.msk [vmem:[%s393 + $0x10] sm:$0xff] %vm5087, %v5042
        %5090 = vst.msk [vmem:[%s393 + $0x20] sm:$0xff] %vm5087, %v5044
        %5091 = vst.msk [vmem:[%s393 + $0x30] sm:$0xff] %vm5087, %v5046
        %5092 = vst.msk [vmem:[%s393 + $0x40] sm:$0xff] %vm5087, %v5048
        %5093 = vst.msk [vmem:[%s393 + $0x50] sm:$0xff] %vm5087, %v5050
        %5094 = vst.msk [vmem:[%s393 + $0x60] sm:$0xff] %vm5087, %v5052
        %5095 = vst.msk [vmem:[%s393 + $0x70] sm:$0xff] %vm5087, %v5054
        %5096 = vst.msk [vmem:[%s393 + $0x80] sm:$0xff] %vm5087, %v5056
        %5097 = vst.msk [vmem:[%s393 + $0x90] sm:$0xff] %vm5087, %v5058
        %5098 = vst.msk [vmem:[%s393 + $0xa0] sm:$0xff] %vm5087, %v5060
        %5099 = vst.msk [vmem:[%s393 + $0xb0] sm:$0xff] %vm5087, %v5062
        %5100 = vst.msk [vmem:[%s393 + $0xc0] sm:$0xff] %vm5087, %v5064
        %5101 = vst.msk [vmem:[%s393 + $0xd0] sm:$0xff] %vm5087, %v5066
        %5102 = vst.msk [vmem:[%s393 + $0xe0] sm:$0xff] %vm5087, %v5068
        %5103 = vst.msk [vmem:[%s393 + $0xf0] sm:$0xff] %vm5087, %v5070
        %v5104 = vld [vmem:[%s8] sm:$0x1]
        %v5106 = vperm.slane %v5104, 0
        %5108 = vst.msk [vmem:[#allocation3] sm:$0xff] %vm594, %v5106
        %5109 = vst.msk [vmem:[#allocation3 + $0x8] sm:$0xff] %vm594, %v5106
        %5110 = vst.msk [vmem:[#allocation3 + $0x10] sm:$0xff] %vm594, %v5106
        %5111 = vst.msk [vmem:[#allocation3 + $0x18] sm:$0xff] %vm594, %v5106
        %5112 = vst.msk [vmem:[#allocation3 + $0x20] sm:$0xff] %vm594, %v5106
        %5113 = vst.msk [vmem:[#allocation3 + $0x28] sm:$0xff] %vm594, %v5106
        %5114 = vst.msk [vmem:[#allocation3 + $0x30] sm:$0xff] %vm594, %v5106
        %5115 = vst.msk [vmem:[#allocation3 + $0x38] sm:$0xff] %vm594, %v5106
        %5116 = vst.msk [vmem:[#allocation3 + $0x40] sm:$0xff] %vm594, %v5106
        %5117 = vst.msk [vmem:[#allocation3 + $0x48] sm:$0xff] %vm594, %v5106
        %5118 = vst.msk [vmem:[#allocation3 + $0x50] sm:$0xff] %vm594, %v5106
        %5119 = vst.msk [vmem:[#allocation3 + $0x58] sm:$0xff] %vm594, %v5106
        %5120 = vst.msk [vmem:[#allocation3 + $0x60] sm:$0xff] %vm594, %v5106
        %5121 = vst.msk [vmem:[#allocation3 + $0x68] sm:$0xff] %vm594, %v5106
        %5122 = vst.msk [vmem:[#allocation3 + $0x70] sm:$0xff] %vm594, %v5106
        %5123 = vst.msk [vmem:[#allocation3 + $0x78] sm:$0xff] %vm594, %v5106
        %v5124 = vld [vmem:[%s454] sm:$0xf]
        %v5125 = vld [vmem:[%s454 + $0x4] sm:$0xf]
        %v5126 = vld [vmem:[%s454 + $0x8] sm:$0xf]
        %v5127 = vld [vmem:[%s454 + $0xc] sm:$0xf]
        %v5128 = vld [vmem:[%s454 + $0x10] sm:$0xf]
        %v5129 = vld [vmem:[%s454 + $0x14] sm:$0xf]
        %v5130 = vld [vmem:[%s454 + $0x18] sm:$0xf]
        %v5131 = vld [vmem:[%s454 + $0x1c] sm:$0xf]
        %v5132 = vld [vmem:[%s454 + $0x20] sm:$0xf]
        %v5133 = vld [vmem:[%s454 + $0x24] sm:$0xf]
        %v5134 = vld [vmem:[%s454 + $0x28] sm:$0xf]
        %v5135 = vld [vmem:[%s454 + $0x2c] sm:$0xf]
        %v5136 = vld [vmem:[%s454 + $0x30] sm:$0xf]
        %v5137 = vld [vmem:[%s454 + $0x34] sm:$0xf]
        %v5138 = vld [vmem:[%s454 + $0x38] sm:$0xf]
        %v5139 = vld [vmem:[%s454 + $0x3c] sm:$0xf]
        %v5140 = vld [vmem:[#allocation3] sm:$0xff]
        %v5141 = vld [vmem:[#allocation3 + $0x8] sm:$0xff]
        %v5142 = vld [vmem:[#allocation3 + $0x10] sm:$0xff]
        %v5143 = vld [vmem:[#allocation3 + $0x18] sm:$0xff]
        %v5144 = vld [vmem:[#allocation3 + $0x20] sm:$0xff]
        %v5145 = vld [vmem:[#allocation3 + $0x28] sm:$0xff]
        %v5146 = vld [vmem:[#allocation3 + $0x30] sm:$0xff]
        %v5147 = vld [vmem:[#allocation3 + $0x38] sm:$0xff]
        %v5148 = vld [vmem:[#allocation3 + $0x40] sm:$0xff]
        %v5149 = vld [vmem:[#allocation3 + $0x48] sm:$0xff]
        %v5150 = vld [vmem:[#allocation3 + $0x50] sm:$0xff]
        %v5151 = vld [vmem:[#allocation3 + $0x58] sm:$0xff]
        %v5152 = vld [vmem:[#allocation3 + $0x60] sm:$0xff]
        %v5153 = vld [vmem:[#allocation3 + $0x68] sm:$0xff]
        %v5154 = vld [vmem:[#allocation3 + $0x70] sm:$0xff]
        %v5155 = vld [vmem:[#allocation3 + $0x78] sm:$0xff]
        %s5156 = scalar_lea.vmem %s7, 8
        %v5157 = vld [vmem:[%s5156] sm:$0x3]
        %v5174 = vunpack.c.l.b16 %v5124
        %v5175 = vunpack.c.l.b16 %v5125
        %v5176 = vunpack.c.l.b16 %v5126
        %v5177 = vunpack.c.l.b16 %v5127
        %v5178 = vunpack.c.l.b16 %v5128
        %v5179 = vunpack.c.l.b16 %v5129
        %v5180 = vunpack.c.l.b16 %v5130
        %v5181 = vunpack.c.l.b16 %v5131
        %v5182 = vunpack.c.l.b16 %v5132
        %v5183 = vunpack.c.l.b16 %v5133
        %v5184 = vunpack.c.l.b16 %v5134
        %v5185 = vunpack.c.l.b16 %v5135
        %v5186 = vunpack.c.l.b16 %v5136
        %v5187 = vunpack.c.l.b16 %v5137
        %v5188 = vunpack.c.l.b16 %v5138
        %v5189 = vunpack.c.l.b16 %v5139
        %v5190 = vpack.c.b16 %v5175, %v5174
        %v5191 = vpack.c.b16 %v5177, %v5176
        %v5192 = vpack.c.b16 %v5179, %v5178
        %v5193 = vpack.c.b16 %v5181, %v5180
        %v5194 = vpack.c.b16 %v5183, %v5182
        %v5195 = vpack.c.b16 %v5185, %v5184
        %v5196 = vpack.c.b16 %v5187, %v5186
        %v5197 = vpack.c.b16 %v5189, %v5188
        %v5199 = vsel %vm516, %v5190, 0
        %v5202 = vsel %vm516, %v5191, 0
        %v5205 = vsel %vm516, %v5192, 0
        %v5208 = vsel %vm516, %v5193, 0
        %v5211 = vsel %vm516, %v5194, 0
        %v5214 = vsel %vm516, %v5195, 0
        %v5217 = vsel %vm516, %v5196, 0
        %v5220 = vsel %vm516, %v5197, 0
        %v5223 = vsel %vm541, %v5157, 0
        %5225 = vmatpush.bf16.msra.mxu0 0
        %5226 = vmatpush.bf16.msra.mxu0 0
        %5227 = vmatpush.bf16.msra.mxu0 0
        %5228 = vmatpush.bf16.msra.mxu0 0
        %5229 = vmatpush.bf16.msra.mxu0 0
        %5230 = vmatpush.bf16.msra.mxu0 0
        %5231 = vmatpush.bf16.msra.mxu0 0
        %5232 = vmatpush.bf16.msra.mxu0 %v5223
        %5233 = vmatmul.bf16.gmra.mxu0 %v5199
        %v5234 = vpop.f32.mrf.mxu0
        %v5235 = vadd.f32 0.0, %v5234
        %v5236 = vpop.f32.mrf.mxu0
        %v5237 = vadd.f32 0.0, %v5236
        %5238 = vmatmul.bf16.gmra.mxu0 %v5202
        %v5239 = vpop.f32.mrf.mxu0
        %v5240 = vadd.f32 0.0, %v5239
        %v5241 = vpop.f32.mrf.mxu0
        %v5242 = vadd.f32 0.0, %v5241
        %5243 = vmatmul.bf16.gmra.mxu0 %v5205
        %v5244 = vpop.f32.mrf.mxu0
        %v5245 = vadd.f32 0.0, %v5244
        %v5246 = vpop.f32.mrf.mxu0
        %v5247 = vadd.f32 0.0, %v5246
        %5248 = vmatmul.bf16.gmra.mxu0 %v5208
        %v5249 = vpop.f32.mrf.mxu0
        %v5250 = vadd.f32 0.0, %v5249
        %v5251 = vpop.f32.mrf.mxu0
        %v5252 = vadd.f32 0.0, %v5251
        %5253 = vmatmul.bf16.gmra.mxu0 %v5211
        %v5254 = vpop.f32.mrf.mxu0
        %v5255 = vadd.f32 0.0, %v5254
        %v5256 = vpop.f32.mrf.mxu0
        %v5257 = vadd.f32 0.0, %v5256
        %5258 = vmatmul.bf16.gmra.mxu0 %v5214
        %v5259 = vpop.f32.mrf.mxu0
        %v5260 = vadd.f32 0.0, %v5259
        %v5261 = vpop.f32.mrf.mxu0
        %v5262 = vadd.f32 0.0, %v5261
        %5263 = vmatmul.bf16.gmra.mxu0 %v5217
        %v5264 = vpop.f32.mrf.mxu0
        %v5265 = vadd.f32 0.0, %v5264
        %v5266 = vpop.f32.mrf.mxu0
        %v5267 = vadd.f32 0.0, %v5266
        %5268 = vmatmul.bf16.gmra.mxu0 %v5220
        %v5269 = vpop.f32.mrf.mxu0
        %v5270 = vadd.f32 0.0, %v5269
        %v5271 = vpop.f32.mrf.mxu0
        %v5272 = vadd.f32 0.0, %v5271
        %5273 = vdwg.mxu0
        %v5274 = vadd.f32 %v5140, %v5235
        %v5275 = vadd.f32 %v5141, %v5237
        %v5276 = vadd.f32 %v5142, %v5240
        %v5277 = vadd.f32 %v5143, %v5242
        %v5278 = vadd.f32 %v5144, %v5245
        %v5279 = vadd.f32 %v5145, %v5247
        %v5280 = vadd.f32 %v5146, %v5250
        %v5281 = vadd.f32 %v5147, %v5252
        %v5282 = vadd.f32 %v5148, %v5255
        %v5283 = vadd.f32 %v5149, %v5257
        %v5284 = vadd.f32 %v5150, %v5260
        %v5285 = vadd.f32 %v5151, %v5262
        %v5286 = vadd.f32 %v5152, %v5265
        %v5287 = vadd.f32 %v5153, %v5267
        %v5288 = vadd.f32 %v5154, %v5270
        %v5289 = vadd.f32 %v5155, %v5272
        %5290 = vst.msk [vmem:[#allocation3] sm:$0xff] %vm594, %v5274
        %5291 = vst.msk [vmem:[#allocation3 + $0x8] sm:$0xff] %vm594, %v5275
        %5292 = vst.msk [vmem:[#allocation3 + $0x10] sm:$0xff] %vm594, %v5276
        %5293 = vst.msk [vmem:[#allocation3 + $0x18] sm:$0xff] %vm594, %v5277
        %5294 = vst.msk [vmem:[#allocation3 + $0x20] sm:$0xff] %vm594, %v5278
        %5295 = vst.msk [vmem:[#allocation3 + $0x28] sm:$0xff] %vm594, %v5279
        %5296 = vst.msk [vmem:[#allocation3 + $0x30] sm:$0xff] %vm594, %v5280
        %5297 = vst.msk [vmem:[#allocation3 + $0x38] sm:$0xff] %vm594, %v5281
        %5298 = vst.msk [vmem:[#allocation3 + $0x40] sm:$0xff] %vm594, %v5282
        %5299 = vst.msk [vmem:[#allocation3 + $0x48] sm:$0xff] %vm594, %v5283
        %5300 = vst.msk [vmem:[#allocation3 + $0x50] sm:$0xff] %vm594, %v5284
        %5301 = vst.msk [vmem:[#allocation3 + $0x58] sm:$0xff] %vm594, %v5285
        %5302 = vst.msk [vmem:[#allocation3 + $0x60] sm:$0xff] %vm594, %v5286
        %5303 = vst.msk [vmem:[#allocation3 + $0x68] sm:$0xff] %vm594, %v5287
        %5304 = vst.msk [vmem:[#allocation3 + $0x70] sm:$0xff] %vm594, %v5288
        %5305 = vst.msk [vmem:[#allocation3 + $0x78] sm:$0xff] %vm594, %v5289
        %v5306 = vld [vmem:[#allocation3] sm:$0xff]
        %v5307 = vld [vmem:[#allocation3 + $0x8] sm:$0xff]
        %v5308 = vld [vmem:[#allocation3 + $0x10] sm:$0xff]
        %v5309 = vld [vmem:[#allocation3 + $0x18] sm:$0xff]
        %v5310 = vld [vmem:[#allocation3 + $0x20] sm:$0xff]
        %v5311 = vld [vmem:[#allocation3 + $0x28] sm:$0xff]
        %v5312 = vld [vmem:[#allocation3 + $0x30] sm:$0xff]
        %v5313 = vld [vmem:[#allocation3 + $0x38] sm:$0xff]
        %v5314 = vld [vmem:[#allocation3 + $0x40] sm:$0xff]
        %v5315 = vld [vmem:[#allocation3 + $0x48] sm:$0xff]
        %v5316 = vld [vmem:[#allocation3 + $0x50] sm:$0xff]
        %v5317 = vld [vmem:[#allocation3 + $0x58] sm:$0xff]
        %v5318 = vld [vmem:[#allocation3 + $0x60] sm:$0xff]
        %v5319 = vld [vmem:[#allocation3 + $0x68] sm:$0xff]
        %v5320 = vld [vmem:[#allocation3 + $0x70] sm:$0xff]
        %v5321 = vld [vmem:[#allocation3 + $0x78] sm:$0xff]
        %5338 = vrot.lane.b32.xlu0 %v5306, 96
        %v5339 = vpop.permute.xlu0 %5338
        %5340 = vrot.lane.b32.xlu0 %v5307, 96
        %v5341 = vpop.permute.xlu0 %5340
        %5342 = vrot.lane.b32.xlu0 %v5308, 96
        %v5343 = vpop.permute.xlu0 %5342
        %5344 = vrot.lane.b32.xlu0 %v5309, 96
        %v5345 = vpop.permute.xlu0 %5344
        %5346 = vrot.lane.b32.xlu0 %v5310, 96
        %v5347 = vpop.permute.xlu0 %5346
        %5348 = vrot.lane.b32.xlu0 %v5311, 96
        %v5349 = vpop.permute.xlu0 %5348
        %5350 = vrot.lane.b32.xlu0 %v5312, 96
        %v5351 = vpop.permute.xlu0 %5350
        %5352 = vrot.lane.b32.xlu0 %v5313, 96
        %v5353 = vpop.permute.xlu0 %5352
        %5354 = vrot.lane.b32.xlu0 %v5314, 96
        %v5355 = vpop.permute.xlu0 %5354
        %5356 = vrot.lane.b32.xlu0 %v5315, 96
        %v5357 = vpop.permute.xlu0 %5356
        %5358 = vrot.lane.b32.xlu0 %v5316, 96
        %v5359 = vpop.permute.xlu0 %5358
        %5360 = vrot.lane.b32.xlu0 %v5317, 96
        %v5361 = vpop.permute.xlu0 %5360
        %5362 = vrot.lane.b32.xlu0 %v5318, 96
        %v5363 = vpop.permute.xlu0 %5362
        %5364 = vrot.lane.b32.xlu0 %v5319, 96
        %v5365 = vpop.permute.xlu0 %5364
        %5366 = vrot.lane.b32.xlu0 %v5320, 96
        %v5367 = vpop.permute.xlu0 %5366
        %5368 = vrot.lane.b32.xlu0 %v5321, 96
        %v5369 = vpop.permute.xlu0 %5368
        %vm5386 = vcmask 1048320
        %5387 = vst.msk [vmem:[%s393] sm:$0xff] %vm5386, %v5339
        %5388 = vst.msk [vmem:[%s393 + $0x10] sm:$0xff] %vm5386, %v5341
        %5389 = vst.msk [vmem:[%s393 + $0x20] sm:$0xff] %vm5386, %v5343
        %5390 = vst.msk [vmem:[%s393 + $0x30] sm:$0xff] %vm5386, %v5345
        %5391 = vst.msk [vmem:[%s393 + $0x40] sm:$0xff] %vm5386, %v5347
        %5392 = vst.msk [vmem:[%s393 + $0x50] sm:$0xff] %vm5386, %v5349
        %5393 = vst.msk [vmem:[%s393 + $0x60] sm:$0xff] %vm5386, %v5351
        %5394 = vst.msk [vmem:[%s393 + $0x70] sm:$0xff] %vm5386, %v5353
        %5395 = vst.msk [vmem:[%s393 + $0x80] sm:$0xff] %vm5386, %v5355
        %5396 = vst.msk [vmem:[%s393 + $0x90] sm:$0xff] %vm5386, %v5357
        %5397 = vst.msk [vmem:[%s393 + $0xa0] sm:$0xff] %vm5386, %v5359
        %5398 = vst.msk [vmem:[%s393 + $0xb0] sm:$0xff] %vm5386, %v5361
        %5399 = vst.msk [vmem:[%s393 + $0xc0] sm:$0xff] %vm5386, %v5363
        %5400 = vst.msk [vmem:[%s393 + $0xd0] sm:$0xff] %vm5386, %v5365
        %5401 = vst.msk [vmem:[%s393 + $0xe0] sm:$0xff] %vm5386, %v5367
        %5402 = vst.msk [vmem:[%s393 + $0xf0] sm:$0xff] %vm5386, %v5369
        %s5403 = scalar_lea.vmem %s398, 144
        %v5404 = vld [vmem:[%s5403] sm:$0xf]
        %v5405 = vld [vmem:[%s5403 + $0x4] sm:$0xf]
        %v5406 = vld [vmem:[%s5403 + $0x8] sm:$0xf]
        %v5407 = vld [vmem:[%s5403 + $0xc] sm:$0xf]
        %v5408 = vld [vmem:[%s5403 + $0x10] sm:$0xf]
        %v5409 = vld [vmem:[%s5403 + $0x14] sm:$0xf]
        %v5410 = vld [vmem:[%s5403 + $0x18] sm:$0xf]
        %v5411 = vld [vmem:[%s5403 + $0x1c] sm:$0xf]
        %v5412 = vld [vmem:[%s5403 + $0x20] sm:$0xf]
        %v5413 = vld [vmem:[%s5403 + $0x24] sm:$0xf]
        %v5414 = vld [vmem:[%s5403 + $0x28] sm:$0xf]
        %v5415 = vld [vmem:[%s5403 + $0x2c] sm:$0xf]
        %v5416 = vld [vmem:[%s5403 + $0x30] sm:$0xf]
        %v5417 = vld [vmem:[%s5403 + $0x34] sm:$0xf]
        %v5418 = vld [vmem:[%s5403 + $0x38] sm:$0xf]
        %v5419 = vld [vmem:[%s5403 + $0x3c] sm:$0xf]
        %v5420 = vld [vmem:[%s5403 + $0x40] sm:$0xf]
        %v5421 = vld [vmem:[%s5403 + $0x44] sm:$0xf]
        %v5422 = vld [vmem:[%s5403 + $0x48] sm:$0xf]
        %v5423 = vld [vmem:[%s5403 + $0x4c] sm:$0xf]
        %v5424 = vld [vmem:[%s5403 + $0x50] sm:$0xf]
        %v5425 = vld [vmem:[%s5403 + $0x54] sm:$0xf]
        %v5426 = vld [vmem:[%s5403 + $0x58] sm:$0xf]
        %v5427 = vld [vmem:[%s5403 + $0x5c] sm:$0xf]
        %v5428 = vld [vmem:[%s5403 + $0x60] sm:$0xf]
        %v5429 = vld [vmem:[%s5403 + $0x64] sm:$0xf]
        %v5430 = vld [vmem:[%s5403 + $0x68] sm:$0xf]
        %v5431 = vld [vmem:[%s5403 + $0x6c] sm:$0xf]
        %v5432 = vld [vmem:[%s5403 + $0x70] sm:$0xf]
        %v5433 = vld [vmem:[%s5403 + $0x74] sm:$0xf]
        %v5434 = vld [vmem:[%s5403 + $0x78] sm:$0xf]
        %v5435 = vld [vmem:[%s5403 + $0x7c] sm:$0xf]
        %v5436 = vunpack.c.l.bf16 %v5404
        %v5437 = vunpack.c.l.bf16 %v5405
        %v5438 = vunpack.c.l.bf16 %v5406
        %v5439 = vunpack.c.l.bf16 %v5407
        %v5440 = vunpack.c.l.bf16 %v5408
        %v5441 = vunpack.c.l.bf16 %v5409
        %v5442 = vunpack.c.l.bf16 %v5410
        %v5443 = vunpack.c.l.bf16 %v5411
        %v5444 = vunpack.c.l.bf16 %v5412
        %v5445 = vunpack.c.l.bf16 %v5413
        %v5446 = vunpack.c.l.bf16 %v5414
        %v5447 = vunpack.c.l.bf16 %v5415
        %v5448 = vunpack.c.l.bf16 %v5416
        %v5449 = vunpack.c.l.bf16 %v5417
        %v5450 = vunpack.c.l.bf16 %v5418
        %v5451 = vunpack.c.l.bf16 %v5419
        %v5452 = vunpack.c.l.bf16 %v5420
        %v5453 = vunpack.c.l.bf16 %v5421
        %v5454 = vunpack.c.l.bf16 %v5422
        %v5455 = vunpack.c.l.bf16 %v5423
        %v5456 = vunpack.c.l.bf16 %v5424
        %v5457 = vunpack.c.l.bf16 %v5425
        %v5458 = vunpack.c.l.bf16 %v5426
        %v5459 = vunpack.c.l.bf16 %v5427
        %v5460 = vunpack.c.l.bf16 %v5428
        %v5461 = vunpack.c.l.bf16 %v5429
        %v5462 = vunpack.c.l.bf16 %v5430
        %v5463 = vunpack.c.l.bf16 %v5431
        %v5464 = vunpack.c.l.bf16 %v5432
        %v5465 = vunpack.c.l.bf16 %v5433
        %v5466 = vunpack.c.l.bf16 %v5434
        %v5467 = vunpack.c.l.bf16 %v5435
        %v5468 = vsel %vm516, %v5436, 0.0
        %v5469 = vsel %vm516, %v5438, 0.0
        %v5470 = vadd.f32 %v5468, %v5469
        %v5471 = vsel %vm516, %v5440, 0.0
        %v5472 = vadd.f32 %v5470, %v5471
        %v5473 = vsel %vm516, %v5442, 0.0
        %v5474 = vadd.f32 %v5472, %v5473
        %v5475 = vsel %vm516, %v5444, 0.0
        %v5476 = vadd.f32 %v5474, %v5475
        %v5477 = vsel %vm516, %v5446, 0.0
        %v5478 = vadd.f32 %v5476, %v5477
        %v5479 = vsel %vm516, %v5448, 0.0
        %v5480 = vadd.f32 %v5478, %v5479
        %v5481 = vsel %vm516, %v5450, 0.0
        %v5482 = vadd.f32 %v5480, %v5481
        %v5483 = vsel %vm516, %v5452, 0.0
        %v5484 = vadd.f32 %v5482, %v5483
        %v5485 = vsel %vm516, %v5454, 0.0
        %v5486 = vadd.f32 %v5484, %v5485
        %v5487 = vsel %vm516, %v5456, 0.0
        %v5488 = vadd.f32 %v5486, %v5487
        %v5489 = vsel %vm516, %v5458, 0.0
        %v5490 = vadd.f32 %v5488, %v5489
        %v5491 = vsel %vm516, %v5460, 0.0
        %v5492 = vadd.f32 %v5490, %v5491
        %v5493 = vsel %vm516, %v5462, 0.0
        %v5494 = vadd.f32 %v5492, %v5493
        %v5495 = vsel %vm516, %v5464, 0.0
        %v5496 = vadd.f32 %v5494, %v5495
        %v5497 = vsel %vm516, %v5466, 0.0
        %v5498 = vadd.f32 %v5496, %v5497
        %v5499 = vsel %vm516, %v5437, 0.0
        %v5500 = vsel %vm516, %v5439, 0.0
        %v5501 = vadd.f32 %v5499, %v5500
        %v5502 = vsel %vm516, %v5441, 0.0
        %v5503 = vadd.f32 %v5501, %v5502
        %v5504 = vsel %vm516, %v5443, 0.0
        %v5505 = vadd.f32 %v5503, %v5504
        %v5506 = vsel %vm516, %v5445, 0.0
        %v5507 = vadd.f32 %v5505, %v5506
        %v5508 = vsel %vm516, %v5447, 0.0
        %v5509 = vadd.f32 %v5507, %v5508
        %v5510 = vsel %vm516, %v5449, 0.0
        %v5511 = vadd.f32 %v5509, %v5510
        %v5512 = vsel %vm516, %v5451, 0.0
        %v5513 = vadd.f32 %v5511, %v5512
        %v5514 = vsel %vm516, %v5453, 0.0
        %v5515 = vadd.f32 %v5513, %v5514
        %v5516 = vsel %vm516, %v5455, 0.0
        %v5517 = vadd.f32 %v5515, %v5516
        %v5518 = vsel %vm516, %v5457, 0.0
        %v5519 = vadd.f32 %v5517, %v5518
        %v5520 = vsel %vm516, %v5459, 0.0
        %v5521 = vadd.f32 %v5519, %v5520
        %v5522 = vsel %vm516, %v5461, 0.0
        %v5523 = vadd.f32 %v5521, %v5522
        %v5524 = vsel %vm516, %v5463, 0.0
        %v5525 = vadd.f32 %v5523, %v5524
        %v5526 = vsel %vm516, %v5465, 0.0
        %v5527 = vadd.f32 %v5525, %v5526
        %v5528 = vsel %vm516, %v5467, 0.0
        %v5529 = vadd.f32 %v5527, %v5528
        %v5530 = vsel %vm516, %v5498, 0.0
        %v5531 = vsel %vm516, %v5529, 0.0
        %v5532 = vadd.f32 %v5530, %v5531
        %v5533 = vrot.slane %v5532, 4
        %v5534 = vadd.f32 %v5532, %v5533
        %v5535 = vrot.slane %v5534, 2
        %v5536 = vadd.f32 %v5534, %v5535
        %v5537 = vrot.slane %v5536, 1
        %v5538 = vadd.f32 %v5536, %v5537
        %v5539 = vmul.f32 %v5538, 0.00390625
        %v5540 = vpack.c.bf16 %v5539, %v5539
        %v5541 = vld [vmem:[%s9] sm:$0x3]
        %v5542 = vld [vmem:[%s10] sm:$0x1]
        %v5544 = vsel %vm516, %v5540, 0
        %v5547 = vsel %vm541, %v5541, 0
        %5549 = vmatpush.bf16.msra.mxu0 0
        %5550 = vmatpush.bf16.msra.mxu0 0
        %5551 = vmatpush.bf16.msra.mxu0 0
        %5552 = vmatpush.bf16.msra.mxu0 0
        %5553 = vmatpush.bf16.msra.mxu0 0
        %5554 = vmatpush.bf16.msra.mxu0 0
        %5555 = vmatpush.bf16.msra.mxu0 0
        %5556 = vmatpush.bf16.msra.mxu0 %v5547
        %5557 = vmatmul.bf16.gmra.mxu0 %v5544
        %v5558 = vpop.f32.mrf.mxu0
        %v5559 = vadd.f32 %v5542, %v5558
        %v5560 = vpop.f32.mrf.mxu0
        %5561 = vdwg.mxu0
        %v5562 = vperm.slane %v5559, 0
        %5563 = vst.msk [vmem:[%s393 + $0x8] sm:$0xff] %vm594, %v5562
        %5564 = vst.msk [vmem:[%s393 + $0x18] sm:$0xff] %vm594, %v5562
        %5565 = vst.msk [vmem:[%s393 + $0x28] sm:$0xff] %vm594, %v5562
        %5566 = vst.msk [vmem:[%s393 + $0x38] sm:$0xff] %vm594, %v5562
        %5567 = vst.msk [vmem:[%s393 + $0x48] sm:$0xff] %vm594, %v5562
        %5568 = vst.msk [vmem:[%s393 + $0x58] sm:$0xff] %vm594, %v5562
        %5569 = vst.msk [vmem:[%s393 + $0x68] sm:$0xff] %vm594, %v5562
        %5570 = vst.msk [vmem:[%s393 + $0x78] sm:$0xff] %vm594, %v5562
        %5571 = vst.msk [vmem:[%s393 + $0x88] sm:$0xff] %vm594, %v5562
        %5572 = vst.msk [vmem:[%s393 + $0x98] sm:$0xff] %vm594, %v5562
        %5573 = vst.msk [vmem:[%s393 + $0xa8] sm:$0xff] %vm594, %v5562
        %5574 = vst.msk [vmem:[%s393 + $0xb8] sm:$0xff] %vm594, %v5562
        %5575 = vst.msk [vmem:[%s393 + $0xc8] sm:$0xff] %vm594, %v5562
        %5576 = vst.msk [vmem:[%s393 + $0xd8] sm:$0xff] %vm594, %v5562
        %5577 = vst.msk [vmem:[%s393 + $0xe8] sm:$0xff] %vm594, %v5562
        %5578 = vst.msk [vmem:[%s393 + $0xf8] sm:$0xff] %vm594, %v5562
        %s5579 = sand.u32 %s283, 1
        %s5580 = scalar_lea.sflag [#allocation5], %s5579
        %s5581 = sand.u32 %s283, 1
        %s5582 = smul.addr %s5581, 256
        %s5583 = scalar_lea.vmem [#allocation4], %s5582
        // Predicated region
        $region65: #{tpu_custom_call.1} parent=63 // pred_check
          %p5584 = pneg %p293
        $region66: #{tpu_custom_call.1} parent=63 // pred_check_branch
          %5586 = sbr.rel (%p5584) target = $region68
        $region67: #{tpu_custom_call.1} parent=63 // pred_region
          %s5587 = smul.u32 8, %s30
          %5589 = vsyncadd %s5580, 0
          %s5590 = smul.addr %s5587, 4
          %s5591 = smul.addr %s29, 64
          %s5592 = sadd.s32 %s5590, %s5591
          %s5593 = smul.addr %s5592, 8
          %s5594 = scalar_lea.hbm %s11, %s5593
          %s5595 = sshll.u32 %s5583, 4
          %s5596 = int_to_ptr.vmem [resolvable:$true] %s5595
          %s5597 = sshll.u32 %s5594, 4
          %s5598 = int_to_ptr.hbm [resolvable:$true] %s5597
          %5603 = dma.vmem_to_hbm [thread:$0]  %s5596, 4096, %s5598, %s5580, 256, 256, 16
        $region68: #{tpu_custom_call.1} parent=63 // pred_fallthru
          _
      $region64: #{tpu_custom_call.1} parent=5 // pred_fallthru
        _
      %p5604 = scmp.le.s32.totalorder 2, %s20
      // Predicated region
      $region69: #{tpu_custom_call.1} parent=5 // pred_check
        %p5605 = pneg %p5604
      $region70: #{tpu_custom_call.1} parent=5 // pred_check_branch
        %5607 = sbr.rel (%p5605) target = $region72
      $region71: #{tpu_custom_call.1} parent=5 // pred_region
        %s5608 = ssub.s32 %s20, 2
        // Predicated region
        $region73: #{tpu_custom_call.1} parent=71 // pred_check
          %p5609 = pneg %p299
        $region74: #{tpu_custom_call.1} parent=71 // pred_check_branch
          %5611 = sbr.rel (%p5609) target = $region76
        $region75: #{tpu_custom_call.1} parent=71 // pred_region
          %s5612 = sand.u32 %s284, 1
          %s5613 = scalar_lea.sflag [#allocation5], %s5612
          %s5614 = sand.u32 %s284, 1
          %s5615 = smul.addr %s5614, 256
          %s5616 = scalar_lea.vmem [#allocation4], %s5615
          %5618 = dma.done %s5613, 4096
        $region76: #{tpu_custom_call.1} parent=71 // pred_fallthru
          _
      $region72: #{tpu_custom_call.1} parent=5 // pred_fallthru
        _
    $region6: #{tpu_custom_call.1} parent=1 // loop_footer
      %s24 = sadd.s32 1, %s20
    $region7: #{tpu_custom_call.1} parent=1 // loop_footer_branch
      %19 = sbr.rel target = $region3
    $region8: #{tpu_custom_call.1} parent=1 // loop_exit
      _
    %5619 = vsyncpa [#allocation5], 1
    %s5620 = scalar_lea.sflag [#allocation5], 1
    %5621 = vsyncpa %s5620, 1

</llo_original>
